<compile_context>
chip_gen: v6e
topology: v6e:2x2x1
jax: 0.10.0
libtpu: 0.0.40
codegen_flags: <defaults>
</compile_context>

<pallas_src>
import jax
import jax.numpy as jnp
from jax.experimental import pallas as pl
from jax.experimental.pallas import tpu as pltpu

EPS = 1e-5   # nn.InstanceNorm2d default eps
LP = 8       # sublane-aligned column offset of the image interior in the pad scratch


def _resblock_kernel(x_ref, w1_ref, g1_ref, be1_ref, w2_ref, g2_ref, be2_ref,
                     o_ref, pad_ref):
    # x_ref block: (1, H, W, C) float32 for one batch element.
    x = x_ref[0]                                   # (H, W, C)
    H, W, C = x.shape

    def fill_reflect_pad(a):
        # ReflectionPad2d(1) written into the persistent VMEM scratch.
        # Interior occupies columns [LP, LP+W): the bulk store is sublane-aligned.
        pad_ref[1:H + 1, LP:LP + W, :] = a
        pad_ref[0:1, LP:LP + W, :] = a[1:2]                    # top pad    = row 1
        pad_ref[H + 1:H + 2, LP:LP + W, :] = a[H - 2:H - 1]    # bottom pad = row H-2
        # Left / right reflected columns; done after the rows so corners are correct.
        pad_ref[:, LP - 1:LP, :] = pad_ref[:, LP + 1:LP + 2, :]                    # col -1 = col 1
        pad_ref[:, LP + W:LP + W + 1, :] = pad_ref[:, LP + W - 2:LP + W - 1, :]    # col  W = col W-2

    def conv3x3(a, w_ref):
        # w_ref: (3, 3*C, C) bf16, K ordered (kw, cin).  3 MXU dots of K = 3*C.
        # NOTE: conv bias intentionally dropped -- it is cancelled exactly by the
        # per-channel mean subtraction of the InstanceNorm that follows.
        fill_reflect_pad(a)
        acc = jnp.zeros((H * W, C), jnp.float32)
        for kh in range(3):
            taps = [pad_ref[kh:kh + H, LP - 1 + kw:LP - 1 + kw + W, :]
                    for kw in range(3)]                        # 3 x (H, W, C) ref views
            patch = jnp.concatenate(taps, axis=2).reshape(H * W, 3 * C)
            acc = acc + jnp.dot(patch.astype(jnp.bfloat16), w_ref[kh],
                                preferred_element_type=jnp.float32)
        return acc                                             # (H*W, C) f32

    def inst_norm(a2, g_ref, be_ref):
        # Fused affine instance norm: one reduction pass + one FMA-style pass (f32).
        mean = jnp.mean(a2, axis=0, keepdims=True)                       # (1, C)
        var = jnp.mean(a2 * a2, axis=0, keepdims=True) - mean * mean     # biased var
        s = g_ref[...] * jax.lax.rsqrt(var + EPS)
        t = be_ref[...] - mean * s
        return a2 * s + t

    h = conv3x3(x, w1_ref)
    h = jnp.maximum(inst_norm(h, g1_ref, be1_ref), 0.0).reshape(H, W, C)
    h = conv3x3(h, w2_ref)
    h = inst_norm(h, g2_ref, be2_ref).reshape(H, W, C)
    o_ref[0] = h + x                                            # residual add


def residual_block_instance_norm(x_nchw, params):
    """Forward pass of ResidualBlock_InstanceNorm. Input/output are NCHW."""
    x = jnp.transpose(x_nchw, (0, 2, 3, 1)).astype(jnp.float32)   # NHWC
    B, H, W, C = x.shape
    assert H >= 2 and W >= 2, "reflection pad of 1 needs H, W >= 2"

    # PyTorch Conv2d weights (Cout, Cin, 3, 3) -> HWIO -> kw-fused (3, 3*C, C) bf16.
    def fuse_w(w_oihw):
        w_hwio = jnp.transpose(w_oihw, (2, 3, 1, 0))              # (3, 3, Cin, Cout)
        return w_hwio.reshape(3, 3 * C, C).astype(jnp.bfloat16)

    w1 = fuse_w(params["w1"])
    w2 = fuse_w(params["w2"])
    # Conv biases params["b1"]/params["b2"] are NOT passed to the kernel:
    # they are cancelled by the following InstanceNorm mean subtraction.
    g1 = params["g1"].reshape(1, C).astype(jnp.float32)
    be1 = params["be1"].reshape(1, C).astype(jnp.float32)
    g2 = params["g2"].reshape(1, C).astype(jnp.float32)
    be2 = params["be2"].reshape(1, C).astype(jnp.float32)

    full3 = lambda b: (0, 0, 0)
    full2 = lambda b: (0, 0)

    img_bytes = H * W * C * 4
    pad_bytes = (H + 2) * (W + LP + 1) * C * 4
    vmem_limit = int(min(64 * 1024 * 1024,
                         8 * 1024 * 1024 + 16 * img_bytes + 2 * pad_bytes))

    out = pl.pallas_call(
        _resblock_kernel,
        out_shape=jax.ShapeDtypeStruct((B, H, W, C), jnp.float32),
        grid_spec=pltpu.PrefetchScalarGridSpec(
            num_scalar_prefetch=0,
            grid=(B,),                                   # one batch element per step
            in_specs=[
                pl.BlockSpec((1, H, W, C), lambda b: (b, 0, 0, 0)),   # x
                pl.BlockSpec((3, 3 * C, C), full3),                   # w1 (kw-fused, bf16)
                pl.BlockSpec((1, C), full2),                          # gamma1
                pl.BlockSpec((1, C), full2),                          # beta1
                pl.BlockSpec((3, 3 * C, C), full3),                   # w2 (kw-fused, bf16)
                pl.BlockSpec((1, C), full2),                          # gamma2
                pl.BlockSpec((1, C), full2),                          # beta2
            ],
            out_specs=pl.BlockSpec((1, H, W, C), lambda b: (b, 0, 0, 0)),
            scratch_shapes=[pltpu.VMEM((H + 2, W + LP + 1, C), jnp.float32)],
        ),
        compiler_params=pltpu.CompilerParams(
            dimension_semantics=("parallel",),           # batch elems independent -> megacore
            vmem_limit_bytes=vmem_limit),
    )(x, w1, g1, be1, w2, g2, be2)

    return jnp.transpose(out, (0, 3, 1, 2))              # back to NCHW


# ---------------- pure-JAX references (NCHW, mirror PyTorch semantics) ------
def _ref_forward(x, p, matmul_dtype=jnp.float32):
    """matmul_dtype=bf16 mirrors the kernel's mixed-precision MXU path."""
    def conv(a, w, b):
        ap = jnp.pad(a, ((0, 0), (0, 0), (1, 1), (1, 1)), mode="reflect")
        y = jax.lax.conv_general_dilated(
            ap.astype(matmul_dtype), w.astype(matmul_dtype),
            window_strides=(1, 1), padding="VALID",
            dimension_numbers=("NCHW", "OIHW", "NCHW"),
            preferred_element_type=jnp.float32)
        return y + b[None, :, None, None]

    def inorm(a, g, be):
        mean = jnp.mean(a, axis=(2, 3), keepdims=True)
        var = jnp.mean((a - mean) ** 2, axis=(2, 3), keepdims=True)
        return ((a - mean) / jnp.sqrt(var + EPS)) * g[None, :, None, None] \
            + be[None, :, None, None]

    h = jax.nn.relu(inorm(conv(x, p["w1"], p["b1"]), p["g1"], p["be1"]))
    h = inorm(conv(h, p["w2"], p["b2"]), p["g2"], p["be2"])
    return h + x


if __name__ == "__main__":
    B, C, H, W = 2, 4, 16, 16
    key = jax.random.PRNGKey(0)
    ks = jax.random.split(key, 9)

    x = jax.random.normal(ks[0], (B, C, H, W), jnp.float32)
    params = {
        "w1": 0.2 * jax.random.normal(ks[1], (C, C, 3, 3), jnp.float32),
        "b1": 0.1 * jax.random.normal(ks[2], (C,), jnp.float32),
        "g1": 1.0 + 0.1 * jax.random.normal(ks[3], (C,), jnp.float32),
        "be1": 0.1 * jax.random.normal(ks[4], (C,), jnp.float32),
        "w2": 0.2 * jax.random.normal(ks[5], (C, C, 3, 3), jnp.float32),
        "b2": 0.1 * jax.random.normal(ks[6], (C,), jnp.float32),
        "g2": 1.0 + 0.1 * jax.random.normal(ks[7], (C,), jnp.float32),
        "be2": 0.1 * jax.random.normal(ks[8], (C,), jnp.float32),
    }

    y = jax.block_until_ready(residual_block_instance_norm(x, params))
    assert y.shape == (B, C, H, W)

    # Tight check vs a reference that mirrors the kernel's bf16-in / f32-acc matmuls.
    y_ref_bf16 = jax.block_until_ready(_ref_forward(x, params, jnp.bfloat16))
    err_bf16 = jnp.max(jnp.abs(y - y_ref_bf16))
    assert jnp.allclose(y, y_ref_bf16, atol=5e-3, rtol=5e-3), \
        f"max abs err vs bf16-mirror reference {err_bf16}"

    # Looser check vs the full-f32 PyTorch-semantics reference (bf16 MXU rounding).
    y_ref_f32 = jax.block_until_ready(_ref_forward(x, params, jnp.float32))
    err_f32 = jnp.max(jnp.abs(y - y_ref_f32))
    assert jnp.allclose(y, y_ref_f32, atol=5e-2, rtol=5e-2), \
        f"max abs err vs f32 reference {err_f32}"

    print("KERNEL_OK")
</pallas_src>

<mosaic_0001>
module attributes {stable_mosaic.version = 11 : i64} {
  func.func @_resblock_kernel(%arg0: i32, %arg1: memref<1x16x16x4xf32, #tpu.memory_space<vmem>>, %arg2: memref<3x12x4xbf16, #tpu.memory_space<vmem>>, %arg3: memref<1x4xf32, #tpu.memory_space<vmem>>, %arg4: memref<1x4xf32, #tpu.memory_space<vmem>>, %arg5: memref<3x12x4xbf16, #tpu.memory_space<vmem>>, %arg6: memref<1x4xf32, #tpu.memory_space<vmem>>, %arg7: memref<1x4xf32, #tpu.memory_space<vmem>>, %arg8: memref<1x16x16x4xf32, #tpu.memory_space<vmem>>, %arg9: memref<18x25x4xf32, #tpu.memory_space<vmem>>) attributes {dimension_semantics = [#tpu.dimension_semantics<parallel>], iteration_bounds = array<i64: 2>, scalar_prefetch = 0 : i64, scratch_operands = 1 : i64, tpu.core_type = #tpu.core_type<tc>, window_params = [{transform_indices = @transform_0, window_bounds = array<i64: 1, 16, 16, 4>}, {pipeline_mode = #tpu.pipeline_mode<synchronous>, transform_indices = @transform_1, window_bounds = array<i64: 3, 12, 4>}, {pipeline_mode = #tpu.pipeline_mode<synchronous>, transform_indices = @transform_2, window_bounds = array<i64: 1, 4>}, {pipeline_mode = #tpu.pipeline_mode<synchronous>, transform_indices = @transform_3, window_bounds = array<i64: 1, 4>}, {pipeline_mode = #tpu.pipeline_mode<synchronous>, transform_indices = @transform_4, window_bounds = array<i64: 3, 12, 4>}, {pipeline_mode = #tpu.pipeline_mode<synchronous>, transform_indices = @transform_5, window_bounds = array<i64: 1, 4>}, {pipeline_mode = #tpu.pipeline_mode<synchronous>, transform_indices = @transform_6, window_bounds = array<i64: 1, 4>}, {transform_indices = @transform_7, window_bounds = array<i64: 1, 16, 16, 4>}]} {
    %c0 = arith.constant 0 : index
    %c0_0 = arith.constant 0 : index
    %c0_1 = arith.constant 0 : index
    %c0_2 = arith.constant 0 : index
    %0 = vector.load %arg1[%c0, %c0_0, %c0_1, %c0_2] : memref<1x16x16x4xf32, #tpu.memory_space<vmem>>, vector<1x16x16x4xf32>
    %1 = vector.shape_cast %0 : vector<1x16x16x4xf32> to vector<16x16x4xf32>
    %c1 = arith.constant 1 : index
    %c8 = arith.constant 8 : index
    %c0_3 = arith.constant 0 : index
    %2 = vector.load %arg9[%c1, %c8, %c0_3] : memref<18x25x4xf32, #tpu.memory_space<vmem>>, vector<16x16x4xf32>
    tpu.vector_store %arg9[%c1, %c8, %c0_3], %1 {strides = array<i32>} : memref<18x25x4xf32, #tpu.memory_space<vmem>>, vector<16x16x4xf32>,
    %3 = vector.extract_strided_slice %1 {offsets = [1, 0, 0], sizes = [1, 16, 4], strides = [1, 1, 1]} : vector<16x16x4xf32> to vector<1x16x4xf32>
    %c0_4 = arith.constant 0 : index
    %c8_5 = arith.constant 8 : index
    %c0_6 = arith.constant 0 : index
    %4 = vector.load %arg9[%c0_4, %c8_5, %c0_6] : memref<18x25x4xf32, #tpu.memory_space<vmem>>, vector<1x16x4xf32>
    tpu.vector_store %arg9[%c0_4, %c8_5, %c0_6], %3 {strides = array<i32>} : memref<18x25x4xf32, #tpu.memory_space<vmem>>, vector<1x16x4xf32>,
    %5 = vector.extract_strided_slice %1 {offsets = [14, 0, 0], sizes = [1, 16, 4], strides = [1, 1, 1]} : vector<16x16x4xf32> to vector<1x16x4xf32>
    %c17 = arith.constant 17 : index
    %c8_7 = arith.constant 8 : index
    %c0_8 = arith.constant 0 : index
    %6 = vector.load %arg9[%c17, %c8_7, %c0_8] : memref<18x25x4xf32, #tpu.memory_space<vmem>>, vector<1x16x4xf32>
    tpu.vector_store %arg9[%c17, %c8_7, %c0_8], %5 {strides = array<i32>} : memref<18x25x4xf32, #tpu.memory_space<vmem>>, vector<1x16x4xf32>,
    %c0_9 = arith.constant 0 : index
    %c9 = arith.constant 9 : index
    %c0_10 = arith.constant 0 : index
    %7 = vector.load %arg9[%c0_9, %c9, %c0_10] : memref<18x25x4xf32, #tpu.memory_space<vmem>>, vector<18x1x4xf32>
    %c0_11 = arith.constant 0 : index
    %c7 = arith.constant 7 : index
    %c0_12 = arith.constant 0 : index
    %8 = vector.load %arg9[%c0_11, %c7, %c0_12] : memref<18x25x4xf32, #tpu.memory_space<vmem>>, vector<18x1x4xf32>
    tpu.vector_store %arg9[%c0_11, %c7, %c0_12], %7 {strides = array<i32>} : memref<18x25x4xf32, #tpu.memory_space<vmem>>, vector<18x1x4xf32>,
    %c0_13 = arith.constant 0 : index
    %c22 = arith.constant 22 : index
    %c0_14 = arith.constant 0 : index
    %9 = vector.load %arg9[%c0_13, %c22, %c0_14] : memref<18x25x4xf32, #tpu.memory_space<vmem>>, vector<18x1x4xf32>
    %c0_15 = arith.constant 0 : index
    %c24 = arith.constant 24 : index
    %c0_16 = arith.constant 0 : index
    %10 = vector.load %arg9[%c0_15, %c24, %c0_16] : memref<18x25x4xf32, #tpu.memory_space<vmem>>, vector<18x1x4xf32>
    tpu.vector_store %arg9[%c0_15, %c24, %c0_16], %9 {strides = array<i32>} : memref<18x25x4xf32, #tpu.memory_space<vmem>>, vector<18x1x4xf32>,
    %cst = arith.constant 0.000000e+00 : f32
    %11 = vector.broadcast %cst : f32 to vector<256x4xf32>
    %c0_17 = arith.constant 0 : index
    %c7_18 = arith.constant 7 : index
    %c0_19 = arith.constant 0 : index
    %12 = vector.load %arg9[%c0_17, %c7_18, %c0_19] : memref<18x25x4xf32, #tpu.memory_space<vmem>>, vector<16x16x4xf32>
    %c0_20 = arith.constant 0 : index
    %c8_21 = arith.constant 8 : index
    %c0_22 = arith.constant 0 : index
    %13 = vector.load %arg9[%c0_20, %c8_21, %c0_22] : memref<18x25x4xf32, #tpu.memory_space<vmem>>, vector<16x16x4xf32>
    %c0_23 = arith.constant 0 : index
    %c9_24 = arith.constant 9 : index
    %c0_25 = arith.constant 0 : index
    %14 = vector.load %arg9[%c0_23, %c9_24, %c0_25] : memref<18x25x4xf32, #tpu.memory_space<vmem>>, vector<16x16x4xf32>
    %15 = tpu.concatenate %12, %13, %14 in 2 : vector<16x16x4xf32>, vector<16x16x4xf32>, vector<16x16x4xf32> -> vector<16x16x12xf32>
    %16 = vector.shape_cast %15 : vector<16x16x12xf32> to vector<256x12xf32>
    %17 = arith.truncf %16 : vector<256x12xf32> to vector<256x12xbf16>
    %c0_26 = arith.constant 0 : index
    %c0_27 = arith.constant 0 : index
    %c0_28 = arith.constant 0 : index
    %18 = vector.load %arg2[%c0_26, %c0_27, %c0_28] : memref<3x12x4xbf16, #tpu.memory_space<vmem>>, vector<1x12x4xbf16>
    %19 = vector.shape_cast %18 : vector<1x12x4xbf16> to vector<12x4xbf16>
    %cst_29 = arith.constant dense<0.000000e+00> : vector<256x4xf32>
    %20 = tpu.matmul %17, %19, %cst_29 {dimension_numbers = #tpu.dot_dimension_numbers<[1], [0], [0], [1], [0, 0, 1, 1], [], []>} : vector<256x12xbf16>, vector<12x4xbf16>, vector<256x4xf32> -> vector<256x4xf32>
    %21 = arith.addf %11, %20 : vector<256x4xf32>
    %c1_30 = arith.constant 1 : index
    %c7_31 = arith.constant 7 : index
    %c0_32 = arith.constant 0 : index
    %22 = vector.load %arg9[%c1_30, %c7_31, %c0_32] : memref<18x25x4xf32, #tpu.memory_space<vmem>>, vector<16x16x4xf32>
    %c1_33 = arith.constant 1 : index
    %c8_34 = arith.constant 8 : index
    %c0_35 = arith.constant 0 : index
    %23 = vector.load %arg9[%c1_33, %c8_34, %c0_35] : memref<18x25x4xf32, #tpu.memory_space<vmem>>, vector<16x16x4xf32>
    %c1_36 = arith.constant 1 : index
    %c9_37 = arith.constant 9 : index
    %c0_38 = arith.constant 0 : index
    %24 = vector.load %arg9[%c1_36, %c9_37, %c0_38] : memref<18x25x4xf32, #tpu.memory_space<vmem>>, vector<16x16x4xf32>
    %25 = tpu.concatenate %22, %23, %24 in 2 : vector<16x16x4xf32>, vector<16x16x4xf32>, vector<16x16x4xf32> -> vector<16x16x12xf32>
    %26 = vector.shape_cast %25 : vector<16x16x12xf32> to vector<256x12xf32>
    %27 = arith.truncf %26 : vector<256x12xf32> to vector<256x12xbf16>
    %c1_39 = arith.constant 1 : index
    %c0_40 = arith.constant 0 : index
    %c0_41 = arith.constant 0 : index
    %28 = vector.load %arg2[%c1_39, %c0_40, %c0_41] : memref<3x12x4xbf16, #tpu.memory_space<vmem>>, vector<1x12x4xbf16>
    %29 = vector.shape_cast %28 : vector<1x12x4xbf16> to vector<12x4xbf16>
    %cst_42 = arith.constant dense<0.000000e+00> : vector<256x4xf32>
    %30 = tpu.matmul %27, %29, %cst_42 {dimension_numbers = #tpu.dot_dimension_numbers<[1], [0], [0], [1], [0, 0, 1, 1], [], []>} : vector<256x12xbf16>, vector<12x4xbf16>, vector<256x4xf32> -> vector<256x4xf32>
    %31 = arith.addf %21, %30 : vector<256x4xf32>
    %c2 = arith.constant 2 : index
    %c7_43 = arith.constant 7 : index
    %c0_44 = arith.constant 0 : index
    %32 = vector.load %arg9[%c2, %c7_43, %c0_44] : memref<18x25x4xf32, #tpu.memory_space<vmem>>, vector<16x16x4xf32>
    %c2_45 = arith.constant 2 : index
    %c8_46 = arith.constant 8 : index
    %c0_47 = arith.constant 0 : index
    %33 = vector.load %arg9[%c2_45, %c8_46, %c0_47] : memref<18x25x4xf32, #tpu.memory_space<vmem>>, vector<16x16x4xf32>
    %c2_48 = arith.constant 2 : index
    %c9_49 = arith.constant 9 : index
    %c0_50 = arith.constant 0 : index
    %34 = vector.load %arg9[%c2_48, %c9_49, %c0_50] : memref<18x25x4xf32, #tpu.memory_space<vmem>>, vector<16x16x4xf32>
    %35 = tpu.concatenate %32, %33, %34 in 2 : vector<16x16x4xf32>, vector<16x16x4xf32>, vector<16x16x4xf32> -> vector<16x16x12xf32>
    %36 = vector.shape_cast %35 : vector<16x16x12xf32> to vector<256x12xf32>
    %37 = arith.truncf %36 : vector<256x12xf32> to vector<256x12xbf16>
    %c2_51 = arith.constant 2 : index
    %c0_52 = arith.constant 0 : index
    %c0_53 = arith.constant 0 : index
    %38 = vector.load %arg2[%c2_51, %c0_52, %c0_53] : memref<3x12x4xbf16, #tpu.memory_space<vmem>>, vector<1x12x4xbf16>
    %39 = vector.shape_cast %38 : vector<1x12x4xbf16> to vector<12x4xbf16>
    %cst_54 = arith.constant dense<0.000000e+00> : vector<256x4xf32>
    %40 = tpu.matmul %37, %39, %cst_54 {dimension_numbers = #tpu.dot_dimension_numbers<[1], [0], [0], [1], [0, 0, 1, 1], [], []>} : vector<256x12xbf16>, vector<12x4xbf16>, vector<256x4xf32> -> vector<256x4xf32>
    %41 = arith.addf %31, %40 : vector<256x4xf32>
    %cst_55 = arith.constant dense<0.000000e+00> : vector<4xf32>
    %42 = vector.multi_reduction <add>, %41, %cst_55 [0] : vector<256x4xf32> to vector<4xf32>
    %43 = vector.shape_cast %42 : vector<4xf32> to vector<1x4xf32>
    %cst_56 = arith.constant 2.560000e+02 : f32
    %44 = vector.broadcast %cst_56 : f32 to vector<1x4xf32>
    %45 = arith.divf %43, %44 : vector<1x4xf32>
    %46 = arith.mulf %41, %41 : vector<256x4xf32>
    %cst_57 = arith.constant dense<0.000000e+00> : vector<4xf32>
    %47 = vector.multi_reduction <add>, %46, %cst_57 [0] : vector<256x4xf32> to vector<4xf32>
    %48 = vector.shape_cast %47 : vector<4xf32> to vector<1x4xf32>
    %cst_58 = arith.constant 2.560000e+02 : f32
    %49 = vector.broadcast %cst_58 : f32 to vector<1x4xf32>
    %50 = arith.divf %48, %49 : vector<1x4xf32>
    %51 = arith.mulf %45, %45 : vector<1x4xf32>
    %52 = arith.subf %50, %51 : vector<1x4xf32>
    %c0_59 = arith.constant 0 : index
    %c0_60 = arith.constant 0 : index
    %53 = vector.load %arg3[%c0_59, %c0_60] : memref<1x4xf32, #tpu.memory_space<vmem>>, vector<1x4xf32>
    %cst_61 = arith.constant 9.99999974E-6 : f32
    %54 = vector.broadcast %cst_61 : f32 to vector<1x4xf32>
    %55 = arith.addf %52, %54 : vector<1x4xf32>
    %56 = math.rsqrt %55 : vector<1x4xf32>
    %57 = arith.mulf %53, %56 : vector<1x4xf32>
    %c0_62 = arith.constant 0 : index
    %c0_63 = arith.constant 0 : index
    %58 = vector.load %arg4[%c0_62, %c0_63] : memref<1x4xf32, #tpu.memory_space<vmem>>, vector<1x4xf32>
    %59 = arith.mulf %45, %57 : vector<1x4xf32>
    %60 = arith.subf %58, %59 : vector<1x4xf32>
    %61 = vector.broadcast %57 : vector<1x4xf32> to vector<256x4xf32>
    %62 = arith.mulf %41, %61 : vector<256x4xf32>
    %63 = vector.broadcast %60 : vector<1x4xf32> to vector<256x4xf32>
    %64 = arith.addf %62, %63 : vector<256x4xf32>
    %cst_64 = arith.constant 0.000000e+00 : f32
    %65 = vector.broadcast %cst_64 : f32 to vector<256x4xf32>
    %66 = arith.maximumf %64, %65 : vector<256x4xf32>
    %67 = vector.shape_cast %66 : vector<256x4xf32> to vector<16x16x4xf32>
    %c1_65 = arith.constant 1 : index
    %c8_66 = arith.constant 8 : index
    %c0_67 = arith.constant 0 : index
    %68 = vector.load %arg9[%c1_65, %c8_66, %c0_67] : memref<18x25x4xf32, #tpu.memory_space<vmem>>, vector<16x16x4xf32>
    tpu.vector_store %arg9[%c1_65, %c8_66, %c0_67], %67 {strides = array<i32>} : memref<18x25x4xf32, #tpu.memory_space<vmem>>, vector<16x16x4xf32>,
    %69 = vector.extract_strided_slice %67 {offsets = [1, 0, 0], sizes = [1, 16, 4], strides = [1, 1, 1]} : vector<16x16x4xf32> to vector<1x16x4xf32>
    %c0_68 = arith.constant 0 : index
    %c8_69 = arith.constant 8 : index
    %c0_70 = arith.constant 0 : index
    %70 = vector.load %arg9[%c0_68, %c8_69, %c0_70] : memref<18x25x4xf32, #tpu.memory_space<vmem>>, vector<1x16x4xf32>
    tpu.vector_store %arg9[%c0_68, %c8_69, %c0_70], %69 {strides = array<i32>} : memref<18x25x4xf32, #tpu.memory_space<vmem>>, vector<1x16x4xf32>,
    %71 = vector.extract_strided_slice %67 {offsets = [14, 0, 0], sizes = [1, 16, 4], strides = [1, 1, 1]} : vector<16x16x4xf32> to vector<1x16x4xf32>
    %c17_71 = arith.constant 17 : index
    %c8_72 = arith.constant 8 : index
    %c0_73 = arith.constant 0 : index
    %72 = vector.load %arg9[%c17_71, %c8_72, %c0_73] : memref<18x25x4xf32, #tpu.memory_space<vmem>>, vector<1x16x4xf32>
    tpu.vector_store %arg9[%c17_71, %c8_72, %c0_73], %71 {strides = array<i32>} : memref<18x25x4xf32, #tpu.memory_space<vmem>>, vector<1x16x4xf32>,
    %c0_74 = arith.constant 0 : index
    %c9_75 = arith.constant 9 : index
    %c0_76 = arith.constant 0 : index
    %73 = vector.load %arg9[%c0_74, %c9_75, %c0_76] : memref<18x25x4xf32, #tpu.memory_space<vmem>>, vector<18x1x4xf32>
    %c0_77 = arith.constant 0 : index
    %c7_78 = arith.constant 7 : index
    %c0_79 = arith.constant 0 : index
    %74 = vector.load %arg9[%c0_77, %c7_78, %c0_79] : memref<18x25x4xf32, #tpu.memory_space<vmem>>, vector<18x1x4xf32>
    tpu.vector_store %arg9[%c0_77, %c7_78, %c0_79], %73 {strides = array<i32>} : memref<18x25x4xf32, #tpu.memory_space<vmem>>, vector<18x1x4xf32>,
    %c0_80 = arith.constant 0 : index
    %c22_81 = arith.constant 22 : index
    %c0_82 = arith.constant 0 : index
    %75 = vector.load %arg9[%c0_80, %c22_81, %c0_82] : memref<18x25x4xf32, #tpu.memory_space<vmem>>, vector<18x1x4xf32>
    %c0_83 = arith.constant 0 : index
    %c24_84 = arith.constant 24 : index
    %c0_85 = arith.constant 0 : index
    %76 = vector.load %arg9[%c0_83, %c24_84, %c0_85] : memref<18x25x4xf32, #tpu.memory_space<vmem>>, vector<18x1x4xf32>
    tpu.vector_store %arg9[%c0_83, %c24_84, %c0_85], %75 {strides = array<i32>} : memref<18x25x4xf32, #tpu.memory_space<vmem>>, vector<18x1x4xf32>,
    %cst_86 = arith.constant 0.000000e+00 : f32
    %77 = vector.broadcast %cst_86 : f32 to vector<256x4xf32>
    %c0_87 = arith.constant 0 : index
    %c7_88 = arith.constant 7 : index
    %c0_89 = arith.constant 0 : index
    %78 = vector.load %arg9[%c0_87, %c7_88, %c0_89] : memref<18x25x4xf32, #tpu.memory_space<vmem>>, vector<16x16x4xf32>
    %c0_90 = arith.constant 0 : index
    %c8_91 = arith.constant 8 : index
    %c0_92 = arith.constant 0 : index
    %79 = vector.load %arg9[%c0_90, %c8_91, %c0_92] : memref<18x25x4xf32, #tpu.memory_space<vmem>>, vector<16x16x4xf32>
    %c0_93 = arith.constant 0 : index
    %c9_94 = arith.constant 9 : index
    %c0_95 = arith.constant 0 : index
    %80 = vector.load %arg9[%c0_93, %c9_94, %c0_95] : memref<18x25x4xf32, #tpu.memory_space<vmem>>, vector<16x16x4xf32>
    %81 = tpu.concatenate %78, %79, %80 in 2 : vector<16x16x4xf32>, vector<16x16x4xf32>, vector<16x16x4xf32> -> vector<16x16x12xf32>
    %82 = vector.shape_cast %81 : vector<16x16x12xf32> to vector<256x12xf32>
    %83 = arith.truncf %82 : vector<256x12xf32> to vector<256x12xbf16>
    %c0_96 = arith.constant 0 : index
    %c0_97 = arith.constant 0 : index
    %c0_98 = arith.constant 0 : index
    %84 = vector.load %arg5[%c0_96, %c0_97, %c0_98] : memref<3x12x4xbf16, #tpu.memory_space<vmem>>, vector<1x12x4xbf16>
    %85 = vector.shape_cast %84 : vector<1x12x4xbf16> to vector<12x4xbf16>
    %cst_99 = arith.constant dense<0.000000e+00> : vector<256x4xf32>
    %86 = tpu.matmul %83, %85, %cst_99 {dimension_numbers = #tpu.dot_dimension_numbers<[1], [0], [0], [1], [0, 0, 1, 1], [], []>} : vector<256x12xbf16>, vector<12x4xbf16>, vector<256x4xf32> -> vector<256x4xf32>
    %87 = arith.addf %77, %86 : vector<256x4xf32>
    %c1_100 = arith.constant 1 : index
    %c7_101 = arith.constant 7 : index
    %c0_102 = arith.constant 0 : index
    %88 = vector.load %arg9[%c1_100, %c7_101, %c0_102] : memref<18x25x4xf32, #tpu.memory_space<vmem>>, vector<16x16x4xf32>
    %c1_103 = arith.constant 1 : index
    %c8_104 = arith.constant 8 : index
    %c0_105 = arith.constant 0 : index
    %89 = vector.load %arg9[%c1_103, %c8_104, %c0_105] : memref<18x25x4xf32, #tpu.memory_space<vmem>>, vector<16x16x4xf32>
    %c1_106 = arith.constant 1 : index
    %c9_107 = arith.constant 9 : index
    %c0_108 = arith.constant 0 : index
    %90 = vector.load %arg9[%c1_106, %c9_107, %c0_108] : memref<18x25x4xf32, #tpu.memory_space<vmem>>, vector<16x16x4xf32>
    %91 = tpu.concatenate %88, %89, %90 in 2 : vector<16x16x4xf32>, vector<16x16x4xf32>, vector<16x16x4xf32> -> vector<16x16x12xf32>
    %92 = vector.shape_cast %91 : vector<16x16x12xf32> to vector<256x12xf32>
    %93 = arith.truncf %92 : vector<256x12xf32> to vector<256x12xbf16>
    %c1_109 = arith.constant 1 : index
    %c0_110 = arith.constant 0 : index
    %c0_111 = arith.constant 0 : index
    %94 = vector.load %arg5[%c1_109, %c0_110, %c0_111] : memref<3x12x4xbf16, #tpu.memory_space<vmem>>, vector<1x12x4xbf16>
    %95 = vector.shape_cast %94 : vector<1x12x4xbf16> to vector<12x4xbf16>
    %cst_112 = arith.constant dense<0.000000e+00> : vector<256x4xf32>
    %96 = tpu.matmul %93, %95, %cst_112 {dimension_numbers = #tpu.dot_dimension_numbers<[1], [0], [0], [1], [0, 0, 1, 1], [], []>} : vector<256x12xbf16>, vector<12x4xbf16>, vector<256x4xf32> -> vector<256x4xf32>
    %97 = arith.addf %87, %96 : vector<256x4xf32>
    %c2_113 = arith.constant 2 : index
    %c7_114 = arith.constant 7 : index
    %c0_115 = arith.constant 0 : index
    %98 = vector.load %arg9[%c2_113, %c7_114, %c0_115] : memref<18x25x4xf32, #tpu.memory_space<vmem>>, vector<16x16x4xf32>
    %c2_116 = arith.constant 2 : index
    %c8_117 = arith.constant 8 : index
    %c0_118 = arith.constant 0 : index
    %99 = vector.load %arg9[%c2_116, %c8_117, %c0_118] : memref<18x25x4xf32, #tpu.memory_space<vmem>>, vector<16x16x4xf32>
    %c2_119 = arith.constant 2 : index
    %c9_120 = arith.constant 9 : index
    %c0_121 = arith.constant 0 : index
    %100 = vector.load %arg9[%c2_119, %c9_120, %c0_121] : memref<18x25x4xf32, #tpu.memory_space<vmem>>, vector<16x16x4xf32>
    %101 = tpu.concatenate %98, %99, %100 in 2 : vector<16x16x4xf32>, vector<16x16x4xf32>, vector<16x16x4xf32> -> vector<16x16x12xf32>
    %102 = vector.shape_cast %101 : vector<16x16x12xf32> to vector<256x12xf32>
    %103 = arith.truncf %102 : vector<256x12xf32> to vector<256x12xbf16>
    %c2_122 = arith.constant 2 : index
    %c0_123 = arith.constant 0 : index
    %c0_124 = arith.constant 0 : index
    %104 = vector.load %arg5[%c2_122, %c0_123, %c0_124] : memref<3x12x4xbf16, #tpu.memory_space<vmem>>, vector<1x12x4xbf16>
    %105 = vector.shape_cast %104 : vector<1x12x4xbf16> to vector<12x4xbf16>
    %cst_125 = arith.constant dense<0.000000e+00> : vector<256x4xf32>
    %106 = tpu.matmul %103, %105, %cst_125 {dimension_numbers = #tpu.dot_dimension_numbers<[1], [0], [0], [1], [0, 0, 1, 1], [], []>} : vector<256x12xbf16>, vector<12x4xbf16>, vector<256x4xf32> -> vector<256x4xf32>
    %107 = arith.addf %97, %106 : vector<256x4xf32>
    %cst_126 = arith.constant dense<0.000000e+00> : vector<4xf32>
    %108 = vector.multi_reduction <add>, %107, %cst_126 [0] : vector<256x4xf32> to vector<4xf32>
    %109 = vector.shape_cast %108 : vector<4xf32> to vector<1x4xf32>
    %cst_127 = arith.constant 2.560000e+02 : f32
    %110 = vector.broadcast %cst_127 : f32 to vector<1x4xf32>
    %111 = arith.divf %109, %110 : vector<1x4xf32>
    %112 = arith.mulf %107, %107 : vector<256x4xf32>
    %cst_128 = arith.constant dense<0.000000e+00> : vector<4xf32>
    %113 = vector.multi_reduction <add>, %112, %cst_128 [0] : vector<256x4xf32> to vector<4xf32>
    %114 = vector.shape_cast %113 : vector<4xf32> to vector<1x4xf32>
    %cst_129 = arith.constant 2.560000e+02 : f32
    %115 = vector.broadcast %cst_129 : f32 to vector<1x4xf32>
    %116 = arith.divf %114, %115 : vector<1x4xf32>
    %117 = arith.mulf %111, %111 : vector<1x4xf32>
    %118 = arith.subf %116, %117 : vector<1x4xf32>
    %c0_130 = arith.constant 0 : index
    %c0_131 = arith.constant 0 : index
    %119 = vector.load %arg6[%c0_130, %c0_131] : memref<1x4xf32, #tpu.memory_space<vmem>>, vector<1x4xf32>
    %cst_132 = arith.constant 9.99999974E-6 : f32
    %120 = vector.broadcast %cst_132 : f32 to vector<1x4xf32>
    %121 = arith.addf %118, %120 : vector<1x4xf32>
    %122 = math.rsqrt %121 : vector<1x4xf32>
    %123 = arith.mulf %119, %122 : vector<1x4xf32>
    %c0_133 = arith.constant 0 : index
    %c0_134 = arith.constant 0 : index
    %124 = vector.load %arg7[%c0_133, %c0_134] : memref<1x4xf32, #tpu.memory_space<vmem>>, vector<1x4xf32>
    %125 = arith.mulf %111, %123 : vector<1x4xf32>
    %126 = arith.subf %124, %125 : vector<1x4xf32>
    %127 = vector.broadcast %123 : vector<1x4xf32> to vector<256x4xf32>
    %128 = arith.mulf %107, %127 : vector<256x4xf32>
    %129 = vector.broadcast %126 : vector<1x4xf32> to vector<256x4xf32>
    %130 = arith.addf %128, %129 : vector<256x4xf32>
    %131 = vector.shape_cast %130 : vector<256x4xf32> to vector<16x16x4xf32>
    %132 = arith.addf %131, %1 : vector<16x16x4xf32>
    %c0_135 = arith.constant 0 : index
    %c0_136 = arith.constant 0 : index
    %c0_137 = arith.constant 0 : index
    %c0_138 = arith.constant 0 : index
    %133 = vector.load %arg8[%c0_135, %c0_136, %c0_137, %c0_138] : memref<1x16x16x4xf32, #tpu.memory_space<vmem>>, vector<1x16x16x4xf32>
    %134 = vector.shape_cast %133 : vector<1x16x16x4xf32> to vector<16x16x4xf32>
    %135 = vector.shape_cast %132 : vector<16x16x4xf32> to vector<1x16x16x4xf32>
    tpu.vector_store %arg8[%c0_135, %c0_136, %c0_137, %c0_138], %135 {strides = array<i32>} : memref<1x16x16x4xf32, #tpu.memory_space<vmem>>, vector<1x16x16x4xf32>,
    return
  }
  func.func @transform_0(%arg0: i32) -> (i32, i32, i32, i32) {
    %c0_i32 = arith.constant 0 : i32
    %c0_i32_0 = arith.constant 0 : i32
    %c0_i32_1 = arith.constant 0 : i32
    %c0_i32_2 = arith.constant 0 : i32
    return %arg0, %c0_i32, %c0_i32_0, %c0_i32_1 : i32, i32, i32, i32
  }
  func.func @transform_1(%arg0: i32) -> (i32, i32, i32) {
    %c0_i32 = arith.constant 0 : i32
    %c0_i32_0 = arith.constant 0 : i32
    %c0_i32_1 = arith.constant 0 : i32
    %c0_i32_2 = arith.constant 0 : i32
    return %c0_i32, %c0_i32_0, %c0_i32_1 : i32, i32, i32
  }
  func.func @transform_2(%arg0: i32) -> (i32, i32) {
    %c0_i32 = arith.constant 0 : i32
    %c0_i32_0 = arith.constant 0 : i32
    %c0_i32_1 = arith.constant 0 : i32
    return %c0_i32, %c0_i32_0 : i32, i32
  }
  func.func @transform_3(%arg0: i32) -> (i32, i32) {
    %c0_i32 = arith.constant 0 : i32
    %c0_i32_0 = arith.constant 0 : i32
    %c0_i32_1 = arith.constant 0 : i32
    return %c0_i32, %c0_i32_0 : i32, i32
  }
  func.func @transform_4(%arg0: i32) -> (i32, i32, i32) {
    %c0_i32 = arith.constant 0 : i32
    %c0_i32_0 = arith.constant 0 : i32
    %c0_i32_1 = arith.constant 0 : i32
    %c0_i32_2 = arith.constant 0 : i32
    return %c0_i32, %c0_i32_0, %c0_i32_1 : i32, i32, i32
  }
  func.func @transform_5(%arg0: i32) -> (i32, i32) {
    %c0_i32 = arith.constant 0 : i32
    %c0_i32_0 = arith.constant 0 : i32
    %c0_i32_1 = arith.constant 0 : i32
    return %c0_i32, %c0_i32_0 : i32, i32
  }
  func.func @transform_6(%arg0: i32) -> (i32, i32) {
    %c0_i32 = arith.constant 0 : i32
    %c0_i32_0 = arith.constant 0 : i32
    %c0_i32_1 = arith.constant 0 : i32
    return %c0_i32, %c0_i32_0 : i32, i32
  }
  func.func @transform_7(%arg0: i32) -> (i32, i32, i32, i32) {
    %c0_i32 = arith.constant 0 : i32
    %c0_i32_0 = arith.constant 0 : i32
    %c0_i32_1 = arith.constant 0 : i32
    %c0_i32_2 = arith.constant 0 : i32
    return %arg0, %c0_i32, %c0_i32_0, %c0_i32_1 : i32, i32, i32, i32
  }
}

</mosaic_0001>

<llo_original>
// kernel: tpu_custom_call.1
$region0: #{tpu_custom_call.1}
  #allocation0 [shape = 'u32[]', space=smem, size = 0x4, offset = 0x4, fixed_abs, tag = 'smem constant byte address 0x4 - core index']
  #allocation1 [shape = 'u32[144,128]{1,0:T(1,128)}', space=vmem, size = 0x12000, scoped, tag = 'internal scratch']
  #allocation2 [shape = 'f32[18,25,4]{2,1,0:T(8,128)}', space=vmem, size = 0x48000, scoped, tag = 'scratch operand']
  %s0 = inlined_call_operand.vmem [shape: f32[2,16,16,4], index: 0, kind: input, shape index: {}]
  %s1 = inlined_call_operand.vmem [shape: bf16[3,12,4], index: 1, kind: input, shape index: {}]
  %s2 = inlined_call_operand.vmem [shape: f32[1,4], index: 2, kind: input, shape index: {}]
  %s3 = inlined_call_operand.vmem [shape: f32[1,4], index: 3, kind: input, shape index: {}]
  %s4 = inlined_call_operand.vmem [shape: bf16[3,12,4], index: 4, kind: input, shape index: {}]
  %s5 = inlined_call_operand.vmem [shape: f32[1,4], index: 5, kind: input, shape index: {}]
  %s6 = inlined_call_operand.vmem [shape: f32[1,4], index: 6, kind: input, shape index: {}]
  %s7 = inlined_call_operand.vmem [shape: f32[2,16,16,4], index: 7, kind: output, shape index: {}]
  %s8 = sld [smem:[#allocation0]]
  $region61: #{tpu_custom_call.1} parent=0
    _
  %s10 = ssub.s32 1, %s8
  %s11 = scalar_select 0, %s10, %s8
  loop: start=0, step=1, limit=4
  $region2: #{tpu_custom_call.1} parent=0 // loop_pre_header
    _
  $region3: #{tpu_custom_call.1} parent=0 // loop_header
    %s13 = sphi 0, %s17
    %p14 = scmp.ge.s32.totalorder %s13, 4
    %s23 = sphi 0, %s25
    %s26 = sphi 0, %s23
    %s27 = sphi 0, %s26
    %s43 = sphi 0, %s27
    %s47 = sphi 0, %s47
    %s49 = sphi 0, %s47
    %s50 = sphi 0, %s49
    %s64 = sphi 0, %s50
    %s68 = sphi 0, %s68
    %s70 = sphi 0, %s68
    %s71 = sphi 0, %s70
    %s85 = sphi 0, %s71
    %s89 = sphi 0, %s89
    %s91 = sphi 0, %s89
    %s92 = sphi 0, %s91
    %s106 = sphi 0, %s92
    %s110 = sphi 0, %s110
    %s112 = sphi 0, %s110
    %s113 = sphi 0, %s112
    %s127 = sphi 0, %s113
    %s131 = sphi 0, %s131
    %s133 = sphi 0, %s131
    %s134 = sphi 0, %s133
    %s148 = sphi 0, %s134
    %s152 = sphi 0, %s152
    %s154 = sphi 0, %s152
    %s155 = sphi 0, %s154
    %s169 = sphi 0, %s155
    %s175 = sphi 0, %s177
    %s178 = sphi 0, %s175
    %s179 = sphi 0, %s178
    %s195 = sphi 0, %s179
  $region4: #{tpu_custom_call.1} parent=0 // loop_header_branch
    %16 = sbr.rel (%p14) target = $region8
  $region5: #{tpu_custom_call.1} parent=0 // loop_body
    %s18 = ssub.s32 %s13, 1
    %s19 = ssub.s32 %s13, 2
    %s20 = sadd.s32 %s13, 1
    %s21 = ssub.s32 %s13, %s20
    %p22 = scmp.eq.s32.totalorder %s21, 0
    %s24 = sadd.s32 %s23, 1
    %s25 = scalar_select %p22, %s23, %s24
    %p28 = pneg %p22
    %p29 = scmp.eq.s32.totalorder %s13, 1
    %p30 = por %p28, %p29
    %p31 = scmp.ne.s32.totalorder %s23, %s26
    %p32 = scmp.eq.s32.totalorder %s13, 0
    %p33 = por %p31, %p32
    %p34 = scmp.ne.s32.totalorder %s23, %s26
    %p35 = scmp.eq.s32.totalorder %s18, 1
    %p36 = por %p34, %p35
    %p37 = scmp.ne.s32.totalorder %s26, %s27
    %p38 = scmp.eq.s32.totalorder %s18, 0
    %p39 = por %p37, %p38
    %p40 = scmp.ne.s32.totalorder %s26, %s27
    %p41 = scmp.eq.s32.totalorder %s19, 1
    %p42 = por %p40, %p41
    %p44 = scmp.ne.s32.totalorder %s27, %s43
    %p45 = scmp.eq.s32.totalorder %s19, 0
    %p46 = por %p44, %p45
    %s48 = sadd.s32 %s47, 1
    %p51 = scmp.eq.s32.totalorder %s13, 1
    %p52 = scmp.ne.s32.totalorder %s47, %s49
    %p53 = scmp.eq.s32.totalorder %s13, 0
    %p54 = por %p52, %p53
    %p55 = scmp.ne.s32.totalorder %s47, %s49
    %p56 = scmp.eq.s32.totalorder %s18, 1
    %p57 = por %p55, %p56
    %p58 = scmp.ne.s32.totalorder %s49, %s50
    %p59 = scmp.eq.s32.totalorder %s18, 0
    %p60 = por %p58, %p59
    %p61 = scmp.ne.s32.totalorder %s49, %s50
    %p62 = scmp.eq.s32.totalorder %s19, 1
    %p63 = por %p61, %p62
    %p65 = scmp.ne.s32.totalorder %s50, %s64
    %p66 = scmp.eq.s32.totalorder %s19, 0
    %p67 = por %p65, %p66
    %s69 = sadd.s32 %s68, 1
    %p72 = scmp.eq.s32.totalorder %s13, 1
    %p73 = scmp.ne.s32.totalorder %s68, %s70
    %p74 = scmp.eq.s32.totalorder %s13, 0
    %p75 = por %p73, %p74
    %p76 = scmp.ne.s32.totalorder %s68, %s70
    %p77 = scmp.eq.s32.totalorder %s18, 1
    %p78 = por %p76, %p77
    %p79 = scmp.ne.s32.totalorder %s70, %s71
    %p80 = scmp.eq.s32.totalorder %s18, 0
    %p81 = por %p79, %p80
    %p82 = scmp.ne.s32.totalorder %s70, %s71
    %p83 = scmp.eq.s32.totalorder %s19, 1
    %p84 = por %p82, %p83
    %p86 = scmp.ne.s32.totalorder %s71, %s85
    %p87 = scmp.eq.s32.totalorder %s19, 0
    %p88 = por %p86, %p87
    %s90 = sadd.s32 %s89, 1
    %p93 = scmp.eq.s32.totalorder %s13, 1
    %p94 = scmp.ne.s32.totalorder %s89, %s91
    %p95 = scmp.eq.s32.totalorder %s13, 0
    %p96 = por %p94, %p95
    %p97 = scmp.ne.s32.totalorder %s89, %s91
    %p98 = scmp.eq.s32.totalorder %s18, 1
    %p99 = por %p97, %p98
    %p100 = scmp.ne.s32.totalorder %s91, %s92
    %p101 = scmp.eq.s32.totalorder %s18, 0
    %p102 = por %p100, %p101
    %p103 = scmp.ne.s32.totalorder %s91, %s92
    %p104 = scmp.eq.s32.totalorder %s19, 1
    %p105 = por %p103, %p104
    %p107 = scmp.ne.s32.totalorder %s92, %s106
    %p108 = scmp.eq.s32.totalorder %s19, 0
    %p109 = por %p107, %p108
    %s111 = sadd.s32 %s110, 1
    %p114 = scmp.eq.s32.totalorder %s13, 1
    %p115 = scmp.ne.s32.totalorder %s110, %s112
    %p116 = scmp.eq.s32.totalorder %s13, 0
    %p117 = por %p115, %p116
    %p118 = scmp.ne.s32.totalorder %s110, %s112
    %p119 = scmp.eq.s32.totalorder %s18, 1
    %p120 = por %p118, %p119
    %p121 = scmp.ne.s32.totalorder %s112, %s113
    %p122 = scmp.eq.s32.totalorder %s18, 0
    %p123 = por %p121, %p122
    %p124 = scmp.ne.s32.totalorder %s112, %s113
    %p125 = scmp.eq.s32.totalorder %s19, 1
    %p126 = por %p124, %p125
    %p128 = scmp.ne.s32.totalorder %s113, %s127
    %p129 = scmp.eq.s32.totalorder %s19, 0
    %p130 = por %p128, %p129
    %s132 = sadd.s32 %s131, 1
    %p135 = scmp.eq.s32.totalorder %s13, 1
    %p136 = scmp.ne.s32.totalorder %s131, %s133
    %p137 = scmp.eq.s32.totalorder %s13, 0
    %p138 = por %p136, %p137
    %p139 = scmp.ne.s32.totalorder %s131, %s133
    %p140 = scmp.eq.s32.totalorder %s18, 1
    %p141 = por %p139, %p140
    %p142 = scmp.ne.s32.totalorder %s133, %s134
    %p143 = scmp.eq.s32.totalorder %s18, 0
    %p144 = por %p142, %p143
    %p145 = scmp.ne.s32.totalorder %s133, %s134
    %p146 = scmp.eq.s32.totalorder %s19, 1
    %p147 = por %p145, %p146
    %p149 = scmp.ne.s32.totalorder %s134, %s148
    %p150 = scmp.eq.s32.totalorder %s19, 0
    %p151 = por %p149, %p150
    %s153 = sadd.s32 %s152, 1
    %p156 = scmp.eq.s32.totalorder %s13, 1
    %p157 = scmp.ne.s32.totalorder %s152, %s154
    %p158 = scmp.eq.s32.totalorder %s13, 0
    %p159 = por %p157, %p158
    %p160 = scmp.ne.s32.totalorder %s152, %s154
    %p161 = scmp.eq.s32.totalorder %s18, 1
    %p162 = por %p160, %p161
    %p163 = scmp.ne.s32.totalorder %s154, %s155
    %p164 = scmp.eq.s32.totalorder %s18, 0
    %p165 = por %p163, %p164
    %p166 = scmp.ne.s32.totalorder %s154, %s155
    %p167 = scmp.eq.s32.totalorder %s19, 1
    %p168 = por %p166, %p167
    %p170 = scmp.ne.s32.totalorder %s155, %s169
    %p171 = scmp.eq.s32.totalorder %s19, 0
    %p172 = por %p170, %p171
    %s173 = ssub.s32 %s13, %s20
    %p174 = scmp.eq.s32.totalorder %s173, 0
    %s176 = sadd.s32 %s175, 1
    %s177 = scalar_select %p174, %s175, %s176
    %p180 = pneg %p174
    %p181 = scmp.eq.s32.totalorder %s13, 1
    %p182 = por %p180, %p181
    %p183 = scmp.ne.s32.totalorder %s175, %s178
    %p184 = scmp.eq.s32.totalorder %s13, 0
    %p185 = por %p183, %p184
    %p186 = scmp.ne.s32.totalorder %s175, %s178
    %p187 = scmp.eq.s32.totalorder %s18, 1
    %p188 = por %p186, %p187
    %p189 = scmp.ne.s32.totalorder %s178, %s179
    %p190 = scmp.eq.s32.totalorder %s18, 0
    %p191 = por %p189, %p190
    %p192 = scmp.ne.s32.totalorder %s178, %s179
    %p193 = scmp.eq.s32.totalorder %s19, 1
    %p194 = por %p192, %p193
    %p196 = scmp.ne.s32.totalorder %s179, %s195
    %p197 = scmp.eq.s32.totalorder %s19, 0
    %p198 = por %p196, %p197
    %p199 = scmp.le.s32.totalorder 1, %s13
    %p200 = scmp.lt.s32.totalorder %s13, 3
    %p201 = pnand %p199, %p200
    %p202 = pneg %p201
    // Predicated region
    $region9: #{tpu_custom_call.1} parent=5 // pred_check
      _
    $region10: #{tpu_custom_call.1} parent=5 // pred_check_branch
      %204 = sbr.rel (%p201) target = $region12
    $region11: #{tpu_custom_call.1} parent=5 // pred_region
      %s205 = ssub.s32 %s13, 1
      // Predicated region
      $region13: #{tpu_custom_call.1} parent=11 // pred_check
        %p206 = pneg %p60
      $region14: #{tpu_custom_call.1} parent=11 // pred_check_branch
        %208 = sbr.rel (%p206) target = $region16
      $region15: #{tpu_custom_call.1} parent=11 // pred_region
        _
      $region16: #{tpu_custom_call.1} parent=11 // pred_fallthru
        _
      // Predicated region
      $region17: #{tpu_custom_call.1} parent=11 // pred_check
        %p209 = pneg %p81
      $region18: #{tpu_custom_call.1} parent=11 // pred_check_branch
        %211 = sbr.rel (%p209) target = $region20
      $region19: #{tpu_custom_call.1} parent=11 // pred_region
        _
      $region20: #{tpu_custom_call.1} parent=11 // pred_fallthru
        _
      // Predicated region
      $region21: #{tpu_custom_call.1} parent=11 // pred_check
        %p212 = pneg %p102
      $region22: #{tpu_custom_call.1} parent=11 // pred_check_branch
        %214 = sbr.rel (%p212) target = $region24
      $region23: #{tpu_custom_call.1} parent=11 // pred_region
        _
      $region24: #{tpu_custom_call.1} parent=11 // pred_fallthru
        _
      // Predicated region
      $region25: #{tpu_custom_call.1} parent=11 // pred_check
        %p215 = pneg %p123
      $region26: #{tpu_custom_call.1} parent=11 // pred_check_branch
        %217 = sbr.rel (%p215) target = $region28
      $region27: #{tpu_custom_call.1} parent=11 // pred_region
        _
      $region28: #{tpu_custom_call.1} parent=11 // pred_fallthru
        _
      // Predicated region
      $region29: #{tpu_custom_call.1} parent=11 // pred_check
        %p218 = pneg %p144
      $region30: #{tpu_custom_call.1} parent=11 // pred_check_branch
        %220 = sbr.rel (%p218) target = $region32
      $region31: #{tpu_custom_call.1} parent=11 // pred_region
        _
      $region32: #{tpu_custom_call.1} parent=11 // pred_fallthru
        _
      // Predicated region
      $region33: #{tpu_custom_call.1} parent=11 // pred_check
        %p221 = pneg %p165
      $region34: #{tpu_custom_call.1} parent=11 // pred_check_branch
        %223 = sbr.rel (%p221) target = $region36
      $region35: #{tpu_custom_call.1} parent=11 // pred_region
        _
      $region36: #{tpu_custom_call.1} parent=11 // pred_fallthru
        _
    $region12: #{tpu_custom_call.1} parent=5 // pred_fallthru
      _
    %p224 = scmp.lt.s32.totalorder %s13, 2
    // Predicated region
    $region37: #{tpu_custom_call.1} parent=5 // pred_check
      %p225 = pneg %p224
    $region38: #{tpu_custom_call.1} parent=5 // pred_check_branch
      %227 = sbr.rel (%p225) target = $region40
    $region39: #{tpu_custom_call.1} parent=5 // pred_region
      // Predicated region
      $region41: #{tpu_custom_call.1} parent=39 // pred_check
        %p228 = pneg %p33
      $region42: #{tpu_custom_call.1} parent=39 // pred_check_branch
        %230 = sbr.rel (%p228) target = $region44
      $region43: #{tpu_custom_call.1} parent=39 // pred_region
        %p231 = scmp.lt.s32.totalorder %s13, 1
        %s232 = scalar_select %p231, %s13, 1
        %s233 = smul.addr %s232, 32
        %s234 = smul.addr %s233, 8
        %s235 = scalar_lea.vmem %s0, %s234
      $region44: #{tpu_custom_call.1} parent=39 // pred_fallthru
        _
    $region40: #{tpu_custom_call.1} parent=5 // pred_fallthru
      _
    %p236 = scmp.le.s32.totalorder 1, %s13
    %p237 = scmp.lt.s32.totalorder %s13, 3
    %p238 = pnand %p236, %p237
    %p239 = pneg %p238
    // Predicated region
    $region45: #{tpu_custom_call.1} parent=5 // pred_check
      _
    $region46: #{tpu_custom_call.1} parent=5 // pred_check_branch
      %241 = sbr.rel (%p238) target = $region48
    $region47: #{tpu_custom_call.1} parent=5 // pred_region
      %s242 = ssub.s32 %s13, 1
      %p243 = scmp.lt.s32.totalorder %s18, 1
      %s244 = scalar_select %p243, %s18, 1
      %s245 = smul.addr %s244, 32
      %s246 = smul.addr %s245, 8
      %s247 = scalar_lea.vmem %s0, %s246
      %p248 = pneg %p39
      %p249 = pneg %p36
      %p250 = pneg %p60
      %p251 = pneg %p57
      %p252 = pneg %p81
      %p253 = pneg %p78
      %p254 = pneg %p102
      %p255 = pneg %p99
      %p256 = pneg %p123
      %p257 = pneg %p120
      %p258 = pneg %p144
      %p259 = pneg %p141
      %p260 = pneg %p165
      %p261 = pneg %p162
      %p262 = pneg %p191
      %p263 = pneg %p188
      %p264 = scmp.lt.s32.totalorder %s18, 1
      %s265 = scalar_select %p264, %s18, 1
      %s266 = smul.addr %s265, 32
      %s267 = smul.addr %s266, 8
      %s268 = scalar_lea.vmem %s7, %s267
      %p269 = scmp.lt.s32.totalorder %s18, 1
      %s270 = scalar_select %p269, %s18, 1
      %s271 = smul.addr %s270, 32
      %s272 = smul.addr %s271, 8
      %s273 = scalar_lea.vmem %s0, %s272
      %p274 = scmp.lt.s32.totalorder %s18, 1
      %s275 = scalar_select %p274, %s18, 1
      %s276 = smul.addr %s275, 32
      %s277 = smul.addr %s276, 8
      %s278 = scalar_lea.vmem %s7, %s277
      %v280 = vld [vmem:[%s273] sm:$0xff]
      %v281 = vld [vmem:[%s273 + $0x8] sm:$0xff]
      %v282 = vld [vmem:[%s273 + $0x10] sm:$0xff]
      %v283 = vld [vmem:[%s273 + $0x18] sm:$0xff]
      %v284 = vld [vmem:[%s273 + $0x20] sm:$0xff]
      %v285 = vld [vmem:[%s273 + $0x28] sm:$0xff]
      %v286 = vld [vmem:[%s273 + $0x30] sm:$0xff]
      %v287 = vld [vmem:[%s273 + $0x38] sm:$0xff]
      %v288 = vld [vmem:[%s273 + $0x40] sm:$0xff]
      %v289 = vld [vmem:[%s273 + $0x48] sm:$0xff]
      %v290 = vld [vmem:[%s273 + $0x50] sm:$0xff]
      %v291 = vld [vmem:[%s273 + $0x58] sm:$0xff]
      %v292 = vld [vmem:[%s273 + $0x60] sm:$0xff]
      %v293 = vld [vmem:[%s273 + $0x68] sm:$0xff]
      %v294 = vld [vmem:[%s273 + $0x70] sm:$0xff]
      %v295 = vld [vmem:[%s273 + $0x78] sm:$0xff]
      %v296 = vld [vmem:[%s273 + $0x80] sm:$0xff]
      %v297 = vld [vmem:[%s273 + $0x88] sm:$0xff]
      %v298 = vld [vmem:[%s273 + $0x90] sm:$0xff]
      %v299 = vld [vmem:[%s273 + $0x98] sm:$0xff]
      %v300 = vld [vmem:[%s273 + $0xa0] sm:$0xff]
      %v301 = vld [vmem:[%s273 + $0xa8] sm:$0xff]
      %v302 = vld [vmem:[%s273 + $0xb0] sm:$0xff]
      %v303 = vld [vmem:[%s273 + $0xb8] sm:$0xff]
      %v304 = vld [vmem:[%s273 + $0xc0] sm:$0xff]
      %v305 = vld [vmem:[%s273 + $0xc8] sm:$0xff]
      %v306 = vld [vmem:[%s273 + $0xd0] sm:$0xff]
      %v307 = vld [vmem:[%s273 + $0xd8] sm:$0xff]
      %v308 = vld [vmem:[%s273 + $0xe0] sm:$0xff]
      %v309 = vld [vmem:[%s273 + $0xe8] sm:$0xff]
      %v310 = vld [vmem:[%s273 + $0xf0] sm:$0xff]
      %v311 = vld [vmem:[%s273 + $0xf8] sm:$0xff]
      %s312 = scalar_lea.vmem [#allocation2], 32
      %vm313 = vcmask 31744
      %314 = vst.msk [vmem:[%s312 + $0x8] sm:$0xff] %vm313, %v280
      %315 = vst.msk [vmem:[%s312 + $0x10] sm:$0xff] %vm313, %v281
      %316 = vst.msk [vmem:[%s312 + $0x28] sm:$0xff] %vm313, %v282
      %317 = vst.msk [vmem:[%s312 + $0x30] sm:$0xff] %vm313, %v283
      %318 = vst.msk [vmem:[%s312 + $0x48] sm:$0xff] %vm313, %v284
      %319 = vst.msk [vmem:[%s312 + $0x50] sm:$0xff] %vm313, %v285
      %320 = vst.msk [vmem:[%s312 + $0x68] sm:$0xff] %vm313, %v286
      %321 = vst.msk [vmem:[%s312 + $0x70] sm:$0xff] %vm313, %v287
      %322 = vst.msk [vmem:[%s312 + $0x88] sm:$0xff] %vm313, %v288
      %323 = vst.msk [vmem:[%s312 + $0x90] sm:$0xff] %vm313, %v289
      %324 = vst.msk [vmem:[%s312 + $0xa8] sm:$0xff] %vm313, %v290
      %325 = vst.msk [vmem:[%s312 + $0xb0] sm:$0xff] %vm313, %v291
      %326 = vst.msk [vmem:[%s312 + $0xc8] sm:$0xff] %vm313, %v292
      %327 = vst.msk [vmem:[%s312 + $0xd0] sm:$0xff] %vm313, %v293
      %328 = vst.msk [vmem:[%s312 + $0xe8] sm:$0xff] %vm313, %v294
      %329 = vst.msk [vmem:[%s312 + $0xf0] sm:$0xff] %vm313, %v295
      %330 = vst.msk [vmem:[%s312 + $0x108] sm:$0xff] %vm313, %v296
      %331 = vst.msk [vmem:[%s312 + $0x110] sm:$0xff] %vm313, %v297
      %332 = vst.msk [vmem:[%s312 + $0x128] sm:$0xff] %vm313, %v298
      %333 = vst.msk [vmem:[%s312 + $0x130] sm:$0xff] %vm313, %v299
      %334 = vst.msk [vmem:[%s312 + $0x148] sm:$0xff] %vm313, %v300
      %335 = vst.msk [vmem:[%s312 + $0x150] sm:$0xff] %vm313, %v301
      %336 = vst.msk [vmem:[%s312 + $0x168] sm:$0xff] %vm313, %v302
      %337 = vst.msk [vmem:[%s312 + $0x170] sm:$0xff] %vm313, %v303
      %338 = vst.msk [vmem:[%s312 + $0x188] sm:$0xff] %vm313, %v304
      %339 = vst.msk [vmem:[%s312 + $0x190] sm:$0xff] %vm313, %v305
      %340 = vst.msk [vmem:[%s312 + $0x1a8] sm:$0xff] %vm313, %v306
      %341 = vst.msk [vmem:[%s312 + $0x1b0] sm:$0xff] %vm313, %v307
      %342 = vst.msk [vmem:[%s312 + $0x1c8] sm:$0xff] %vm313, %v308
      %343 = vst.msk [vmem:[%s312 + $0x1d0] sm:$0xff] %vm313, %v309
      %344 = vst.msk [vmem:[%s312 + $0x1e8] sm:$0xff] %vm313, %v310
      %345 = vst.msk [vmem:[%s312 + $0x1f0] sm:$0xff] %vm313, %v311
      %346 = vst.msk [vmem:[#allocation2 + $0x8] sm:$0xff] %vm313, %v282
      %347 = vst.msk [vmem:[#allocation2 + $0x10] sm:$0xff] %vm313, %v283
      %s348 = scalar_lea.vmem [#allocation2], 544
      %349 = vst.msk [vmem:[%s348 + $0x8] sm:$0xff] %vm313, %v308
      %350 = vst.msk [vmem:[%s348 + $0x10] sm:$0xff] %vm313, %v309
      %v351 = vld [vmem:[#allocation2 + $0x9] sm:$0x1]
      %v352 = vld [vmem:[#allocation2 + $0x29] sm:$0x1]
      %v353 = vld [vmem:[#allocation2 + $0x49] sm:$0x1]
      %v354 = vld [vmem:[#allocation2 + $0x69] sm:$0x1]
      %v355 = vld [vmem:[#allocation2 + $0x89] sm:$0x1]
      %v356 = vld [vmem:[#allocation2 + $0xa9] sm:$0x1]
      %v357 = vld [vmem:[#allocation2 + $0xc9] sm:$0x1]
      %v358 = vld [vmem:[#allocation2 + $0xe9] sm:$0x1]
      %v359 = vld [vmem:[#allocation2 + $0x109] sm:$0x1]
      %v360 = vld [vmem:[#allocation2 + $0x129] sm:$0x1]
      %v361 = vld [vmem:[#allocation2 + $0x149] sm:$0x1]
      %v362 = vld [vmem:[#allocation2 + $0x169] sm:$0x1]
      %v363 = vld [vmem:[#allocation2 + $0x189] sm:$0x1]
      %v364 = vld [vmem:[#allocation2 + $0x1a9] sm:$0x1]
      %v365 = vld [vmem:[#allocation2 + $0x1c9] sm:$0x1]
      %v366 = vld [vmem:[#allocation2 + $0x1e9] sm:$0x1]
      %v367 = vld [vmem:[#allocation2 + $0x209] sm:$0x1]
      %v368 = vld [vmem:[#allocation2 + $0x229] sm:$0x1]
      %vm369 = vcmask 24576
      %370 = vst.msk [vmem:[#allocation2 + $0x7] sm:$0x1] %vm369, %v351
      %371 = vst.msk [vmem:[#allocation2 + $0x27] sm:$0x1] %vm369, %v352
      %372 = vst.msk [vmem:[#allocation2 + $0x47] sm:$0x1] %vm369, %v353
      %373 = vst.msk [vmem:[#allocation2 + $0x67] sm:$0x1] %vm369, %v354
      %374 = vst.msk [vmem:[#allocation2 + $0x87] sm:$0x1] %vm369, %v355
      %375 = vst.msk [vmem:[#allocation2 + $0xa7] sm:$0x1] %vm369, %v356
      %376 = vst.msk [vmem:[#allocation2 + $0xc7] sm:$0x1] %vm369, %v357
      %377 = vst.msk [vmem:[#allocation2 + $0xe7] sm:$0x1] %vm369, %v358
      %378 = vst.msk [vmem:[#allocation2 + $0x107] sm:$0x1] %vm369, %v359
      %379 = vst.msk [vmem:[#allocation2 + $0x127] sm:$0x1] %vm369, %v360
      %380 = vst.msk [vmem:[#allocation2 + $0x147] sm:$0x1] %vm369, %v361
      %381 = vst.msk [vmem:[#allocation2 + $0x167] sm:$0x1] %vm369, %v362
      %382 = vst.msk [vmem:[#allocation2 + $0x187] sm:$0x1] %vm369, %v363
      %383 = vst.msk [vmem:[#allocation2 + $0x1a7] sm:$0x1] %vm369, %v364
      %384 = vst.msk [vmem:[#allocation2 + $0x1c7] sm:$0x1] %vm369, %v365
      %385 = vst.msk [vmem:[#allocation2 + $0x1e7] sm:$0x1] %vm369, %v366
      %386 = vst.msk [vmem:[#allocation2 + $0x207] sm:$0x1] %vm369, %v367
      %387 = vst.msk [vmem:[#allocation2 + $0x227] sm:$0x1] %vm369, %v368
      %v388 = vld [vmem:[#allocation2 + $0x16] sm:$0x1]
      %v389 = vld [vmem:[#allocation2 + $0x36] sm:$0x1]
      %v390 = vld [vmem:[#allocation2 + $0x56] sm:$0x1]
      %v391 = vld [vmem:[#allocation2 + $0x76] sm:$0x1]
      %v392 = vld [vmem:[#allocation2 + $0x96] sm:$0x1]
      %v393 = vld [vmem:[#allocation2 + $0xb6] sm:$0x1]
      %v394 = vld [vmem:[#allocation2 + $0xd6] sm:$0x1]
      %v395 = vld [vmem:[#allocation2 + $0xf6] sm:$0x1]
      %v396 = vld [vmem:[#allocation2 + $0x116] sm:$0x1]
      %v397 = vld [vmem:[#allocation2 + $0x136] sm:$0x1]
      %v398 = vld [vmem:[#allocation2 + $0x156] sm:$0x1]
      %v399 = vld [vmem:[#allocation2 + $0x176] sm:$0x1]
      %v400 = vld [vmem:[#allocation2 + $0x196] sm:$0x1]
      %v401 = vld [vmem:[#allocation2 + $0x1b6] sm:$0x1]
      %v402 = vld [vmem:[#allocation2 + $0x1d6] sm:$0x1]
      %v403 = vld [vmem:[#allocation2 + $0x1f6] sm:$0x1]
      %v404 = vld [vmem:[#allocation2 + $0x216] sm:$0x1]
      %v405 = vld [vmem:[#allocation2 + $0x236] sm:$0x1]
      %406 = vst.msk [vmem:[#allocation2 + $0x18] sm:$0x1] %vm369, %v388
      %407 = vst.msk [vmem:[#allocation2 + $0x38] sm:$0x1] %vm369, %v389
      %408 = vst.msk [vmem:[#allocation2 + $0x58] sm:$0x1] %vm369, %v390
      %409 = vst.msk [vmem:[#allocation2 + $0x78] sm:$0x1] %vm369, %v391
      %410 = vst.msk [vmem:[#allocation2 + $0x98] sm:$0x1] %vm369, %v392
      %411 = vst.msk [vmem:[#allocation2 + $0xb8] sm:$0x1] %vm369, %v393
      %412 = vst.msk [vmem:[#allocation2 + $0xd8] sm:$0x1] %vm369, %v394
      %413 = vst.msk [vmem:[#allocation2 + $0xf8] sm:$0x1] %vm369, %v395
      %414 = vst.msk [vmem:[#allocation2 + $0x118] sm:$0x1] %vm369, %v396
      %415 = vst.msk [vmem:[#allocation2 + $0x138] sm:$0x1] %vm369, %v397
      %416 = vst.msk [vmem:[#allocation2 + $0x158] sm:$0x1] %vm369, %v398
      %417 = vst.msk [vmem:[#allocation2 + $0x178] sm:$0x1] %vm369, %v399
      %418 = vst.msk [vmem:[#allocation2 + $0x198] sm:$0x1] %vm369, %v400
      %419 = vst.msk [vmem:[#allocation2 + $0x1b8] sm:$0x1] %vm369, %v401
      %420 = vst.msk [vmem:[#allocation2 + $0x1d8] sm:$0x1] %vm369, %v402
      %421 = vst.msk [vmem:[#allocation2 + $0x1f8] sm:$0x1] %vm369, %v403
      %422 = vst.msk [vmem:[#allocation2 + $0x218] sm:$0x1] %vm369, %v404
      %423 = vst.msk [vmem:[#allocation2 + $0x238] sm:$0x1] %vm369, %v405
      %v424 = vld [vmem:[#allocation2 + $0x7] sm:$0xff]
      %v425 = vld [vmem:[#allocation2 + $0xf] sm:$0xff]
      %v426 = vld [vmem:[#allocation2 + $0x27] sm:$0xff]
      %v427 = vld [vmem:[#allocation2 + $0x2f] sm:$0xff]
      %v428 = vld [vmem:[#allocation2 + $0x47] sm:$0xff]
      %v429 = vld [vmem:[#allocation2 + $0x4f] sm:$0xff]
      %v430 = vld [vmem:[#allocation2 + $0x67] sm:$0xff]
      %v431 = vld [vmem:[#allocation2 + $0x6f] sm:$0xff]
      %v432 = vld [vmem:[#allocation2 + $0x87] sm:$0xff]
      %v433 = vld [vmem:[#allocation2 + $0x8f] sm:$0xff]
      %v434 = vld [vmem:[#allocation2 + $0xa7] sm:$0xff]
      %v435 = vld [vmem:[#allocation2 + $0xaf] sm:$0xff]
      %v436 = vld [vmem:[#allocation2 + $0xc7] sm:$0xff]
      %v437 = vld [vmem:[#allocation2 + $0xcf] sm:$0xff]
      %v438 = vld [vmem:[#allocation2 + $0xe7] sm:$0xff]
      %v439 = vld [vmem:[#allocation2 + $0xef] sm:$0xff]
      %v440 = vld [vmem:[#allocation2 + $0x107] sm:$0xff]
      %v441 = vld [vmem:[#allocation2 + $0x10f] sm:$0xff]
      %v442 = vld [vmem:[#allocation2 + $0x127] sm:$0xff]
      %v443 = vld [vmem:[#allocation2 + $0x12f] sm:$0xff]
      %v444 = vld [vmem:[#allocation2 + $0x147] sm:$0xff]
      %v445 = vld [vmem:[#allocation2 + $0x14f] sm:$0xff]
      %v446 = vld [vmem:[#allocation2 + $0x167] sm:$0xff]
      %v447 = vld [vmem:[#allocation2 + $0x16f] sm:$0xff]
      %v448 = vld [vmem:[#allocation2 + $0x187] sm:$0xff]
      %v449 = vld [vmem:[#allocation2 + $0x18f] sm:$0xff]
      %v450 = vld [vmem:[#allocation2 + $0x1a7] sm:$0xff]
      %v451 = vld [vmem:[#allocation2 + $0x1af] sm:$0xff]
      %v452 = vld [vmem:[#allocation2 + $0x1c7] sm:$0xff]
      %v453 = vld [vmem:[#allocation2 + $0x1cf] sm:$0xff]
      %v454 = vld [vmem:[#allocation2 + $0x1e7] sm:$0xff]
      %v455 = vld [vmem:[#allocation2 + $0x1ef] sm:$0xff]
      %v456 = vld [vmem:[#allocation2 + $0x8] sm:$0xff]
      %v457 = vld [vmem:[#allocation2 + $0x10] sm:$0xff]
      %v458 = vld [vmem:[#allocation2 + $0x28] sm:$0xff]
      %v459 = vld [vmem:[#allocation2 + $0x30] sm:$0xff]
      %v460 = vld [vmem:[#allocation2 + $0x48] sm:$0xff]
      %v461 = vld [vmem:[#allocation2 + $0x50] sm:$0xff]
      %v462 = vld [vmem:[#allocation2 + $0x68] sm:$0xff]
      %v463 = vld [vmem:[#allocation2 + $0x70] sm:$0xff]
      %v464 = vld [vmem:[#allocation2 + $0x88] sm:$0xff]
      %v465 = vld [vmem:[#allocation2 + $0x90] sm:$0xff]
      %v466 = vld [vmem:[#allocation2 + $0xa8] sm:$0xff]
      %v467 = vld [vmem:[#allocation2 + $0xb0] sm:$0xff]
      %v468 = vld [vmem:[#allocation2 + $0xc8] sm:$0xff]
      %v469 = vld [vmem:[#allocation2 + $0xd0] sm:$0xff]
      %v470 = vld [vmem:[#allocation2 + $0xe8] sm:$0xff]
      %v471 = vld [vmem:[#allocation2 + $0xf0] sm:$0xff]
      %v472 = vld [vmem:[#allocation2 + $0x108] sm:$0xff]
      %v473 = vld [vmem:[#allocation2 + $0x110] sm:$0xff]
      %v474 = vld [vmem:[#allocation2 + $0x128] sm:$0xff]
      %v475 = vld [vmem:[#allocation2 + $0x130] sm:$0xff]
      %v476 = vld [vmem:[#allocation2 + $0x148] sm:$0xff]
      %v477 = vld [vmem:[#allocation2 + $0x150] sm:$0xff]
      %v478 = vld [vmem:[#allocation2 + $0x168] sm:$0xff]
      %v479 = vld [vmem:[#allocation2 + $0x170] sm:$0xff]
      %v480 = vld [vmem:[#allocation2 + $0x188] sm:$0xff]
      %v481 = vld [vmem:[#allocation2 + $0x190] sm:$0xff]
      %v482 = vld [vmem:[#allocation2 + $0x1a8] sm:$0xff]
      %v483 = vld [vmem:[#allocation2 + $0x1b0] sm:$0xff]
      %v484 = vld [vmem:[#allocation2 + $0x1c8] sm:$0xff]
      %v485 = vld [vmem:[#allocation2 + $0x1d0] sm:$0xff]
      %v486 = vld [vmem:[#allocation2 + $0x1e8] sm:$0xff]
      %v487 = vld [vmem:[#allocation2 + $0x1f0] sm:$0xff]
      %v488 = vld [vmem:[#allocation2 + $0x9] sm:$0xff]
      %v489 = vld [vmem:[#allocation2 + $0x11] sm:$0xff]
      %v490 = vld [vmem:[#allocation2 + $0x29] sm:$0xff]
      %v491 = vld [vmem:[#allocation2 + $0x31] sm:$0xff]
      %v492 = vld [vmem:[#allocation2 + $0x49] sm:$0xff]
      %v493 = vld [vmem:[#allocation2 + $0x51] sm:$0xff]
      %v494 = vld [vmem:[#allocation2 + $0x69] sm:$0xff]
      %v495 = vld [vmem:[#allocation2 + $0x71] sm:$0xff]
      %v496 = vld [vmem:[#allocation2 + $0x89] sm:$0xff]
      %v497 = vld [vmem:[#allocation2 + $0x91] sm:$0xff]
      %v498 = vld [vmem:[#allocation2 + $0xa9] sm:$0xff]
      %v499 = vld [vmem:[#allocation2 + $0xb1] sm:$0xff]
      %v500 = vld [vmem:[#allocation2 + $0xc9] sm:$0xff]
      %v501 = vld [vmem:[#allocation2 + $0xd1] sm:$0xff]
      %v502 = vld [vmem:[#allocation2 + $0xe9] sm:$0xff]
      %v503 = vld [vmem:[#allocation2 + $0xf1] sm:$0xff]
      %v504 = vld [vmem:[#allocation2 + $0x109] sm:$0xff]
      %v505 = vld [vmem:[#allocation2 + $0x111] sm:$0xff]
      %v506 = vld [vmem:[#allocation2 + $0x129] sm:$0xff]
      %v507 = vld [vmem:[#allocation2 + $0x131] sm:$0xff]
      %v508 = vld [vmem:[#allocation2 + $0x149] sm:$0xff]
      %v509 = vld [vmem:[#allocation2 + $0x151] sm:$0xff]
      %v510 = vld [vmem:[#allocation2 + $0x169] sm:$0xff]
      %v511 = vld [vmem:[#allocation2 + $0x171] sm:$0xff]
      %v512 = vld [vmem:[#allocation2 + $0x189] sm:$0xff]
      %v513 = vld [vmem:[#allocation2 + $0x191] sm:$0xff]
      %v514 = vld [vmem:[#allocation2 + $0x1a9] sm:$0xff]
      %v515 = vld [vmem:[#allocation2 + $0x1b1] sm:$0xff]
      %v516 = vld [vmem:[#allocation2 + $0x1c9] sm:$0xff]
      %v517 = vld [vmem:[#allocation2 + $0x1d1] sm:$0xff]
      %v518 = vld [vmem:[#allocation2 + $0x1e9] sm:$0xff]
      %v519 = vld [vmem:[#allocation2 + $0x1f1] sm:$0xff]
      %552 = vrot.lane.b32.xlu0 %v456, 4
      %v553 = vpop.permute.xlu0 %552
      %554 = vrot.lane.b32.xlu0 %v457, 4
      %v555 = vpop.permute.xlu0 %554
      %556 = vrot.lane.b32.xlu0 %v458, 4
      %v557 = vpop.permute.xlu0 %556
      %558 = vrot.lane.b32.xlu0 %v459, 4
      %v559 = vpop.permute.xlu0 %558
      %560 = vrot.lane.b32.xlu0 %v460, 4
      %v561 = vpop.permute.xlu0 %560
      %562 = vrot.lane.b32.xlu0 %v461, 4
      %v563 = vpop.permute.xlu0 %562
      %564 = vrot.lane.b32.xlu0 %v462, 4
      %v565 = vpop.permute.xlu0 %564
      %566 = vrot.lane.b32.xlu0 %v463, 4
      %v567 = vpop.permute.xlu0 %566
      %568 = vrot.lane.b32.xlu0 %v464, 4
      %v569 = vpop.permute.xlu0 %568
      %570 = vrot.lane.b32.xlu0 %v465, 4
      %v571 = vpop.permute.xlu0 %570
      %572 = vrot.lane.b32.xlu0 %v466, 4
      %v573 = vpop.permute.xlu0 %572
      %574 = vrot.lane.b32.xlu0 %v467, 4
      %v575 = vpop.permute.xlu0 %574
      %576 = vrot.lane.b32.xlu0 %v468, 4
      %v577 = vpop.permute.xlu0 %576
      %578 = vrot.lane.b32.xlu0 %v469, 4
      %v579 = vpop.permute.xlu0 %578
      %580 = vrot.lane.b32.xlu0 %v470, 4
      %v581 = vpop.permute.xlu0 %580
      %582 = vrot.lane.b32.xlu0 %v471, 4
      %v583 = vpop.permute.xlu0 %582
      %584 = vrot.lane.b32.xlu0 %v472, 4
      %v585 = vpop.permute.xlu0 %584
      %586 = vrot.lane.b32.xlu0 %v473, 4
      %v587 = vpop.permute.xlu0 %586
      %588 = vrot.lane.b32.xlu0 %v474, 4
      %v589 = vpop.permute.xlu0 %588
      %590 = vrot.lane.b32.xlu0 %v475, 4
      %v591 = vpop.permute.xlu0 %590
      %592 = vrot.lane.b32.xlu0 %v476, 4
      %v593 = vpop.permute.xlu0 %592
      %594 = vrot.lane.b32.xlu0 %v477, 4
      %v595 = vpop.permute.xlu0 %594
      %596 = vrot.lane.b32.xlu0 %v478, 4
      %v597 = vpop.permute.xlu0 %596
      %598 = vrot.lane.b32.xlu0 %v479, 4
      %v599 = vpop.permute.xlu0 %598
      %600 = vrot.lane.b32.xlu0 %v480, 4
      %v601 = vpop.permute.xlu0 %600
      %602 = vrot.lane.b32.xlu0 %v481, 4
      %v603 = vpop.permute.xlu0 %602
      %604 = vrot.lane.b32.xlu0 %v482, 4
      %v605 = vpop.permute.xlu0 %604
      %606 = vrot.lane.b32.xlu0 %v483, 4
      %v607 = vpop.permute.xlu0 %606
      %608 = vrot.lane.b32.xlu0 %v484, 4
      %v609 = vpop.permute.xlu0 %608
      %610 = vrot.lane.b32.xlu0 %v485, 4
      %v611 = vpop.permute.xlu0 %610
      %612 = vrot.lane.b32.xlu0 %v486, 4
      %v613 = vpop.permute.xlu0 %612
      %614 = vrot.lane.b32.xlu0 %v487, 4
      %v615 = vpop.permute.xlu0 %614
      %680 = vrot.lane.b32.xlu0 %v488, 8
      %v681 = vpop.permute.xlu0 %680
      %682 = vrot.lane.b32.xlu0 %v489, 8
      %v683 = vpop.permute.xlu0 %682
      %684 = vrot.lane.b32.xlu0 %v490, 8
      %v685 = vpop.permute.xlu0 %684
      %686 = vrot.lane.b32.xlu0 %v491, 8
      %v687 = vpop.permute.xlu0 %686
      %688 = vrot.lane.b32.xlu0 %v492, 8
      %v689 = vpop.permute.xlu0 %688
      %690 = vrot.lane.b32.xlu0 %v493, 8
      %v691 = vpop.permute.xlu0 %690
      %692 = vrot.lane.b32.xlu0 %v494, 8
      %v693 = vpop.permute.xlu0 %692
      %694 = vrot.lane.b32.xlu0 %v495, 8
      %v695 = vpop.permute.xlu0 %694
      %696 = vrot.lane.b32.xlu0 %v496, 8
      %v697 = vpop.permute.xlu0 %696
      %698 = vrot.lane.b32.xlu0 %v497, 8
      %v699 = vpop.permute.xlu0 %698
      %700 = vrot.lane.b32.xlu0 %v498, 8
      %v701 = vpop.permute.xlu0 %700
      %702 = vrot.lane.b32.xlu0 %v499, 8
      %v703 = vpop.permute.xlu0 %702
      %704 = vrot.lane.b32.xlu0 %v500, 8
      %v705 = vpop.permute.xlu0 %704
      %706 = vrot.lane.b32.xlu0 %v501, 8
      %v707 = vpop.permute.xlu0 %706
      %708 = vrot.lane.b32.xlu0 %v502, 8
      %v709 = vpop.permute.xlu0 %708
      %710 = vrot.lane.b32.xlu0 %v503, 8
      %v711 = vpop.permute.xlu0 %710
      %712 = vrot.lane.b32.xlu0 %v504, 8
      %v713 = vpop.permute.xlu0 %712
      %714 = vrot.lane.b32.xlu0 %v505, 8
      %v715 = vpop.permute.xlu0 %714
      %716 = vrot.lane.b32.xlu0 %v506, 8
      %v717 = vpop.permute.xlu0 %716
      %718 = vrot.lane.b32.xlu0 %v507, 8
      %v719 = vpop.permute.xlu0 %718
      %720 = vrot.lane.b32.xlu0 %v508, 8
      %v721 = vpop.permute.xlu0 %720
      %722 = vrot.lane.b32.xlu0 %v509, 8
      %v723 = vpop.permute.xlu0 %722
      %724 = vrot.lane.b32.xlu0 %v510, 8
      %v725 = vpop.permute.xlu0 %724
      %726 = vrot.lane.b32.xlu0 %v511, 8
      %v727 = vpop.permute.xlu0 %726
      %728 = vrot.lane.b32.xlu0 %v512, 8
      %v729 = vpop.permute.xlu0 %728
      %730 = vrot.lane.b32.xlu0 %v513, 8
      %v731 = vpop.permute.xlu0 %730
      %732 = vrot.lane.b32.xlu0 %v514, 8
      %v733 = vpop.permute.xlu0 %732
      %734 = vrot.lane.b32.xlu0 %v515, 8
      %v735 = vpop.permute.xlu0 %734
      %736 = vrot.lane.b32.xlu0 %v516, 8
      %v737 = vpop.permute.xlu0 %736
      %738 = vrot.lane.b32.xlu0 %v517, 8
      %v739 = vpop.permute.xlu0 %738
      %740 = vrot.lane.b32.xlu0 %v518, 8
      %v741 = vpop.permute.xlu0 %740
      %742 = vrot.lane.b32.xlu0 %v519, 8
      %v743 = vpop.permute.xlu0 %742
      %v776 = vsel %vm313, %v424, %v553
      %v777 = vsel %vm313, %v425, %v555
      %v778 = vsel %vm313, %v426, %v557
      %v779 = vsel %vm313, %v427, %v559
      %v780 = vsel %vm313, %v428, %v561
      %v781 = vsel %vm313, %v429, %v563
      %v782 = vsel %vm313, %v430, %v565
      %v783 = vsel %vm313, %v431, %v567
      %v784 = vsel %vm313, %v432, %v569
      %v785 = vsel %vm313, %v433, %v571
      %v786 = vsel %vm313, %v434, %v573
      %v787 = vsel %vm313, %v435, %v575
      %v788 = vsel %vm313, %v436, %v577
      %v789 = vsel %vm313, %v437, %v579
      %v790 = vsel %vm313, %v438, %v581
      %v791 = vsel %vm313, %v439, %v583
      %v792 = vsel %vm313, %v440, %v585
      %v793 = vsel %vm313, %v441, %v587
      %v794 = vsel %vm313, %v442, %v589
      %v795 = vsel %vm313, %v443, %v591
      %v796 = vsel %vm313, %v444, %v593
      %v797 = vsel %vm313, %v445, %v595
      %v798 = vsel %vm313, %v446, %v597
      %v799 = vsel %vm313, %v447, %v599
      %v800 = vsel %vm313, %v448, %v601
      %v801 = vsel %vm313, %v449, %v603
      %v802 = vsel %vm313, %v450, %v605
      %v803 = vsel %vm313, %v451, %v607
      %v804 = vsel %vm313, %v452, %v609
      %v805 = vsel %vm313, %v453, %v611
      %v806 = vsel %vm313, %v454, %v613
      %v807 = vsel %vm313, %v455, %v615
      %vm808 = vcmask 64512
      %v809 = vsel %vm808, %v776, %v681
      %v810 = vsel %vm808, %v777, %v683
      %v811 = vsel %vm808, %v778, %v685
      %v812 = vsel %vm808, %v779, %v687
      %v813 = vsel %vm808, %v780, %v689
      %v814 = vsel %vm808, %v781, %v691
      %v815 = vsel %vm808, %v782, %v693
      %v816 = vsel %vm808, %v783, %v695
      %v817 = vsel %vm808, %v784, %v697
      %v818 = vsel %vm808, %v785, %v699
      %v819 = vsel %vm808, %v786, %v701
      %v820 = vsel %vm808, %v787, %v703
      %v821 = vsel %vm808, %v788, %v705
      %v822 = vsel %vm808, %v789, %v707
      %v823 = vsel %vm808, %v790, %v709
      %v824 = vsel %vm808, %v791, %v711
      %v825 = vsel %vm808, %v792, %v713
      %v826 = vsel %vm808, %v793, %v715
      %v827 = vsel %vm808, %v794, %v717
      %v828 = vsel %vm808, %v795, %v719
      %v829 = vsel %vm808, %v796, %v721
      %v830 = vsel %vm808, %v797, %v723
      %v831 = vsel %vm808, %v798, %v725
      %v832 = vsel %vm808, %v799, %v727
      %v833 = vsel %vm808, %v800, %v729
      %v834 = vsel %vm808, %v801, %v731
      %v835 = vsel %vm808, %v802, %v733
      %v836 = vsel %vm808, %v803, %v735
      %v837 = vsel %vm808, %v804, %v737
      %v838 = vsel %vm808, %v805, %v739
      %v839 = vsel %vm808, %v806, %v741
      %v840 = vsel %vm808, %v807, %v743
      %v841 = vpack.c.bf16 %v810, %v809
      %v842 = vpack.c.bf16 %v812, %v811
      %v843 = vpack.c.bf16 %v814, %v813
      %v844 = vpack.c.bf16 %v816, %v815
      %v845 = vpack.c.bf16 %v818, %v817
      %v846 = vpack.c.bf16 %v820, %v819
      %v847 = vpack.c.bf16 %v822, %v821
      %v848 = vpack.c.bf16 %v824, %v823
      %v849 = vpack.c.bf16 %v826, %v825
      %v850 = vpack.c.bf16 %v828, %v827
      %v851 = vpack.c.bf16 %v830, %v829
      %v852 = vpack.c.bf16 %v832, %v831
      %v853 = vpack.c.bf16 %v834, %v833
      %v854 = vpack.c.bf16 %v836, %v835
      %v855 = vpack.c.bf16 %v838, %v837
      %v856 = vpack.c.bf16 %v840, %v839
      %v857 = vld [vmem:[%s1] sm:$0xf]
      %v858 = vld [vmem:[%s1 + $0x4] sm:$0x3]
      %v859 = vld [vmem:[%s312 + $0x7] sm:$0xff]
      %v860 = vld [vmem:[%s312 + $0xf] sm:$0xff]
      %v861 = vld [vmem:[%s312 + $0x27] sm:$0xff]
      %v862 = vld [vmem:[%s312 + $0x2f] sm:$0xff]
      %v863 = vld [vmem:[%s312 + $0x47] sm:$0xff]
      %v864 = vld [vmem:[%s312 + $0x4f] sm:$0xff]
      %v865 = vld [vmem:[%s312 + $0x67] sm:$0xff]
      %v866 = vld [vmem:[%s312 + $0x6f] sm:$0xff]
      %v867 = vld [vmem:[%s312 + $0x87] sm:$0xff]
      %v868 = vld [vmem:[%s312 + $0x8f] sm:$0xff]
      %v869 = vld [vmem:[%s312 + $0xa7] sm:$0xff]
      %v870 = vld [vmem:[%s312 + $0xaf] sm:$0xff]
      %v871 = vld [vmem:[%s312 + $0xc7] sm:$0xff]
      %v872 = vld [vmem:[%s312 + $0xcf] sm:$0xff]
      %v873 = vld [vmem:[%s312 + $0xe7] sm:$0xff]
      %v874 = vld [vmem:[%s312 + $0xef] sm:$0xff]
      %v875 = vld [vmem:[%s312 + $0x107] sm:$0xff]
      %v876 = vld [vmem:[%s312 + $0x10f] sm:$0xff]
      %v877 = vld [vmem:[%s312 + $0x127] sm:$0xff]
      %v878 = vld [vmem:[%s312 + $0x12f] sm:$0xff]
      %v879 = vld [vmem:[%s312 + $0x147] sm:$0xff]
      %v880 = vld [vmem:[%s312 + $0x14f] sm:$0xff]
      %v881 = vld [vmem:[%s312 + $0x167] sm:$0xff]
      %v882 = vld [vmem:[%s312 + $0x16f] sm:$0xff]
      %v883 = vld [vmem:[%s312 + $0x187] sm:$0xff]
      %v884 = vld [vmem:[%s312 + $0x18f] sm:$0xff]
      %v885 = vld [vmem:[%s312 + $0x1a7] sm:$0xff]
      %v886 = vld [vmem:[%s312 + $0x1af] sm:$0xff]
      %v887 = vld [vmem:[%s312 + $0x1c7] sm:$0xff]
      %v888 = vld [vmem:[%s312 + $0x1cf] sm:$0xff]
      %v889 = vld [vmem:[%s312 + $0x1e7] sm:$0xff]
      %v890 = vld [vmem:[%s312 + $0x1ef] sm:$0xff]
      %v891 = vld [vmem:[%s312 + $0x8] sm:$0xff]
      %v892 = vld [vmem:[%s312 + $0x10] sm:$0xff]
      %v893 = vld [vmem:[%s312 + $0x28] sm:$0xff]
      %v894 = vld [vmem:[%s312 + $0x30] sm:$0xff]
      %v895 = vld [vmem:[%s312 + $0x48] sm:$0xff]
      %v896 = vld [vmem:[%s312 + $0x50] sm:$0xff]
      %v897 = vld [vmem:[%s312 + $0x68] sm:$0xff]
      %v898 = vld [vmem:[%s312 + $0x70] sm:$0xff]
      %v899 = vld [vmem:[%s312 + $0x88] sm:$0xff]
      %v900 = vld [vmem:[%s312 + $0x90] sm:$0xff]
      %v901 = vld [vmem:[%s312 + $0xa8] sm:$0xff]
      %v902 = vld [vmem:[%s312 + $0xb0] sm:$0xff]
      %v903 = vld [vmem:[%s312 + $0xc8] sm:$0xff]
      %v904 = vld [vmem:[%s312 + $0xd0] sm:$0xff]
      %v905 = vld [vmem:[%s312 + $0xe8] sm:$0xff]
      %v906 = vld [vmem:[%s312 + $0xf0] sm:$0xff]
      %v907 = vld [vmem:[%s312 + $0x108] sm:$0xff]
      %v908 = vld [vmem:[%s312 + $0x110] sm:$0xff]
      %v909 = vld [vmem:[%s312 + $0x128] sm:$0xff]
      %v910 = vld [vmem:[%s312 + $0x130] sm:$0xff]
      %v911 = vld [vmem:[%s312 + $0x148] sm:$0xff]
      %v912 = vld [vmem:[%s312 + $0x150] sm:$0xff]
      %v913 = vld [vmem:[%s312 + $0x168] sm:$0xff]
      %v914 = vld [vmem:[%s312 + $0x170] sm:$0xff]
      %v915 = vld [vmem:[%s312 + $0x188] sm:$0xff]
      %v916 = vld [vmem:[%s312 + $0x190] sm:$0xff]
      %v917 = vld [vmem:[%s312 + $0x1a8] sm:$0xff]
      %v918 = vld [vmem:[%s312 + $0x1b0] sm:$0xff]
      %v919 = vld [vmem:[%s312 + $0x1c8] sm:$0xff]
      %v920 = vld [vmem:[%s312 + $0x1d0] sm:$0xff]
      %v921 = vld [vmem:[%s312 + $0x1e8] sm:$0xff]
      %v922 = vld [vmem:[%s312 + $0x1f0] sm:$0xff]
      %v923 = vld [vmem:[%s312 + $0x9] sm:$0xff]
      %v924 = vld [vmem:[%s312 + $0x11] sm:$0xff]
      %v925 = vld [vmem:[%s312 + $0x29] sm:$0xff]
      %v926 = vld [vmem:[%s312 + $0x31] sm:$0xff]
      %v927 = vld [vmem:[%s312 + $0x49] sm:$0xff]
      %v928 = vld [vmem:[%s312 + $0x51] sm:$0xff]
      %v929 = vld [vmem:[%s312 + $0x69] sm:$0xff]
      %v930 = vld [vmem:[%s312 + $0x71] sm:$0xff]
      %v931 = vld [vmem:[%s312 + $0x89] sm:$0xff]
      %v932 = vld [vmem:[%s312 + $0x91] sm:$0xff]
      %v933 = vld [vmem:[%s312 + $0xa9] sm:$0xff]
      %v934 = vld [vmem:[%s312 + $0xb1] sm:$0xff]
      %v935 = vld [vmem:[%s312 + $0xc9] sm:$0xff]
      %v936 = vld [vmem:[%s312 + $0xd1] sm:$0xff]
      %v937 = vld [vmem:[%s312 + $0xe9] sm:$0xff]
      %v938 = vld [vmem:[%s312 + $0xf1] sm:$0xff]
      %v939 = vld [vmem:[%s312 + $0x109] sm:$0xff]
      %v940 = vld [vmem:[%s312 + $0x111] sm:$0xff]
      %v941 = vld [vmem:[%s312 + $0x129] sm:$0xff]
      %v942 = vld [vmem:[%s312 + $0x131] sm:$0xff]
      %v943 = vld [vmem:[%s312 + $0x149] sm:$0xff]
      %v944 = vld [vmem:[%s312 + $0x151] sm:$0xff]
      %v945 = vld [vmem:[%s312 + $0x169] sm:$0xff]
      %v946 = vld [vmem:[%s312 + $0x171] sm:$0xff]
      %v947 = vld [vmem:[%s312 + $0x189] sm:$0xff]
      %v948 = vld [vmem:[%s312 + $0x191] sm:$0xff]
      %v949 = vld [vmem:[%s312 + $0x1a9] sm:$0xff]
      %v950 = vld [vmem:[%s312 + $0x1b1] sm:$0xff]
      %v951 = vld [vmem:[%s312 + $0x1c9] sm:$0xff]
      %v952 = vld [vmem:[%s312 + $0x1d1] sm:$0xff]
      %v953 = vld [vmem:[%s312 + $0x1e9] sm:$0xff]
      %v954 = vld [vmem:[%s312 + $0x1f1] sm:$0xff]
      %987 = vrot.lane.b32.xlu0 %v891, 4
      %v988 = vpop.permute.xlu0 %987
      %989 = vrot.lane.b32.xlu0 %v892, 4
      %v990 = vpop.permute.xlu0 %989
      %991 = vrot.lane.b32.xlu0 %v893, 4
      %v992 = vpop.permute.xlu0 %991
      %993 = vrot.lane.b32.xlu0 %v894, 4
      %v994 = vpop.permute.xlu0 %993
      %995 = vrot.lane.b32.xlu0 %v895, 4
      %v996 = vpop.permute.xlu0 %995
      %997 = vrot.lane.b32.xlu0 %v896, 4
      %v998 = vpop.permute.xlu0 %997
      %999 = vrot.lane.b32.xlu0 %v897, 4
      %v1000 = vpop.permute.xlu0 %999
      %1001 = vrot.lane.b32.xlu0 %v898, 4
      %v1002 = vpop.permute.xlu0 %1001
      %1003 = vrot.lane.b32.xlu0 %v899, 4
      %v1004 = vpop.permute.xlu0 %1003
      %1005 = vrot.lane.b32.xlu0 %v900, 4
      %v1006 = vpop.permute.xlu0 %1005
      %1007 = vrot.lane.b32.xlu0 %v901, 4
      %v1008 = vpop.permute.xlu0 %1007
      %1009 = vrot.lane.b32.xlu0 %v902, 4
      %v1010 = vpop.permute.xlu0 %1009
      %1011 = vrot.lane.b32.xlu0 %v903, 4
      %v1012 = vpop.permute.xlu0 %1011
      %1013 = vrot.lane.b32.xlu0 %v904, 4
      %v1014 = vpop.permute.xlu0 %1013
      %1015 = vrot.lane.b32.xlu0 %v905, 4
      %v1016 = vpop.permute.xlu0 %1015
      %1017 = vrot.lane.b32.xlu0 %v906, 4
      %v1018 = vpop.permute.xlu0 %1017
      %1019 = vrot.lane.b32.xlu0 %v907, 4
      %v1020 = vpop.permute.xlu0 %1019
      %1021 = vrot.lane.b32.xlu0 %v908, 4
      %v1022 = vpop.permute.xlu0 %1021
      %1023 = vrot.lane.b32.xlu0 %v909, 4
      %v1024 = vpop.permute.xlu0 %1023
      %1025 = vrot.lane.b32.xlu0 %v910, 4
      %v1026 = vpop.permute.xlu0 %1025
      %1027 = vrot.lane.b32.xlu0 %v911, 4
      %v1028 = vpop.permute.xlu0 %1027
      %1029 = vrot.lane.b32.xlu0 %v912, 4
      %v1030 = vpop.permute.xlu0 %1029
      %1031 = vrot.lane.b32.xlu0 %v913, 4
      %v1032 = vpop.permute.xlu0 %1031
      %1033 = vrot.lane.b32.xlu0 %v914, 4
      %v1034 = vpop.permute.xlu0 %1033
      %1035 = vrot.lane.b32.xlu0 %v915, 4
      %v1036 = vpop.permute.xlu0 %1035
      %1037 = vrot.lane.b32.xlu0 %v916, 4
      %v1038 = vpop.permute.xlu0 %1037
      %1039 = vrot.lane.b32.xlu0 %v917, 4
      %v1040 = vpop.permute.xlu0 %1039
      %1041 = vrot.lane.b32.xlu0 %v918, 4
      %v1042 = vpop.permute.xlu0 %1041
      %1043 = vrot.lane.b32.xlu0 %v919, 4
      %v1044 = vpop.permute.xlu0 %1043
      %1045 = vrot.lane.b32.xlu0 %v920, 4
      %v1046 = vpop.permute.xlu0 %1045
      %1047 = vrot.lane.b32.xlu0 %v921, 4
      %v1048 = vpop.permute.xlu0 %1047
      %1049 = vrot.lane.b32.xlu0 %v922, 4
      %v1050 = vpop.permute.xlu0 %1049
      %1115 = vrot.lane.b32.xlu0 %v923, 8
      %v1116 = vpop.permute.xlu0 %1115
      %1117 = vrot.lane.b32.xlu0 %v924, 8
      %v1118 = vpop.permute.xlu0 %1117
      %1119 = vrot.lane.b32.xlu0 %v925, 8
      %v1120 = vpop.permute.xlu0 %1119
      %1121 = vrot.lane.b32.xlu0 %v926, 8
      %v1122 = vpop.permute.xlu0 %1121
      %1123 = vrot.lane.b32.xlu0 %v927, 8
      %v1124 = vpop.permute.xlu0 %1123
      %1125 = vrot.lane.b32.xlu0 %v928, 8
      %v1126 = vpop.permute.xlu0 %1125
      %1127 = vrot.lane.b32.xlu0 %v929, 8
      %v1128 = vpop.permute.xlu0 %1127
      %1129 = vrot.lane.b32.xlu0 %v930, 8
      %v1130 = vpop.permute.xlu0 %1129
      %1131 = vrot.lane.b32.xlu0 %v931, 8
      %v1132 = vpop.permute.xlu0 %1131
      %1133 = vrot.lane.b32.xlu0 %v932, 8
      %v1134 = vpop.permute.xlu0 %1133
      %1135 = vrot.lane.b32.xlu0 %v933, 8
      %v1136 = vpop.permute.xlu0 %1135
      %1137 = vrot.lane.b32.xlu0 %v934, 8
      %v1138 = vpop.permute.xlu0 %1137
      %1139 = vrot.lane.b32.xlu0 %v935, 8
      %v1140 = vpop.permute.xlu0 %1139
      %1141 = vrot.lane.b32.xlu0 %v936, 8
      %v1142 = vpop.permute.xlu0 %1141
      %1143 = vrot.lane.b32.xlu0 %v937, 8
      %v1144 = vpop.permute.xlu0 %1143
      %1145 = vrot.lane.b32.xlu0 %v938, 8
      %v1146 = vpop.permute.xlu0 %1145
      %1147 = vrot.lane.b32.xlu0 %v939, 8
      %v1148 = vpop.permute.xlu0 %1147
      %1149 = vrot.lane.b32.xlu0 %v940, 8
      %v1150 = vpop.permute.xlu0 %1149
      %1151 = vrot.lane.b32.xlu0 %v941, 8
      %v1152 = vpop.permute.xlu0 %1151
      %1153 = vrot.lane.b32.xlu0 %v942, 8
      %v1154 = vpop.permute.xlu0 %1153
      %1155 = vrot.lane.b32.xlu0 %v943, 8
      %v1156 = vpop.permute.xlu0 %1155
      %1157 = vrot.lane.b32.xlu0 %v944, 8
      %v1158 = vpop.permute.xlu0 %1157
      %1159 = vrot.lane.b32.xlu0 %v945, 8
      %v1160 = vpop.permute.xlu0 %1159
      %1161 = vrot.lane.b32.xlu0 %v946, 8
      %v1162 = vpop.permute.xlu0 %1161
      %1163 = vrot.lane.b32.xlu0 %v947, 8
      %v1164 = vpop.permute.xlu0 %1163
      %1165 = vrot.lane.b32.xlu0 %v948, 8
      %v1166 = vpop.permute.xlu0 %1165
      %1167 = vrot.lane.b32.xlu0 %v949, 8
      %v1168 = vpop.permute.xlu0 %1167
      %1169 = vrot.lane.b32.xlu0 %v950, 8
      %v1170 = vpop.permute.xlu0 %1169
      %1171 = vrot.lane.b32.xlu0 %v951, 8
      %v1172 = vpop.permute.xlu0 %1171
      %1173 = vrot.lane.b32.xlu0 %v952, 8
      %v1174 = vpop.permute.xlu0 %1173
      %1175 = vrot.lane.b32.xlu0 %v953, 8
      %v1176 = vpop.permute.xlu0 %1175
      %1177 = vrot.lane.b32.xlu0 %v954, 8
      %v1178 = vpop.permute.xlu0 %1177
      %v1211 = vsel %vm313, %v859, %v988
      %v1212 = vsel %vm313, %v860, %v990
      %v1213 = vsel %vm313, %v861, %v992
      %v1214 = vsel %vm313, %v862, %v994
      %v1215 = vsel %vm313, %v863, %v996
      %v1216 = vsel %vm313, %v864, %v998
      %v1217 = vsel %vm313, %v865, %v1000
      %v1218 = vsel %vm313, %v866, %v1002
      %v1219 = vsel %vm313, %v867, %v1004
      %v1220 = vsel %vm313, %v868, %v1006
      %v1221 = vsel %vm313, %v869, %v1008
      %v1222 = vsel %vm313, %v870, %v1010
      %v1223 = vsel %vm313, %v871, %v1012
      %v1224 = vsel %vm313, %v872, %v1014
      %v1225 = vsel %vm313, %v873, %v1016
      %v1226 = vsel %vm313, %v874, %v1018
      %v1227 = vsel %vm313, %v875, %v1020
      %v1228 = vsel %vm313, %v876, %v1022
      %v1229 = vsel %vm313, %v877, %v1024
      %v1230 = vsel %vm313, %v878, %v1026
      %v1231 = vsel %vm313, %v879, %v1028
      %v1232 = vsel %vm313, %v880, %v1030
      %v1233 = vsel %vm313, %v881, %v1032
      %v1234 = vsel %vm313, %v882, %v1034
      %v1235 = vsel %vm313, %v883, %v1036
      %v1236 = vsel %vm313, %v884, %v1038
      %v1237 = vsel %vm313, %v885, %v1040
      %v1238 = vsel %vm313, %v886, %v1042
      %v1239 = vsel %vm313, %v887, %v1044
      %v1240 = vsel %vm313, %v888, %v1046
      %v1241 = vsel %vm313, %v889, %v1048
      %v1242 = vsel %vm313, %v890, %v1050
      %v1243 = vsel %vm808, %v1211, %v1116
      %v1244 = vsel %vm808, %v1212, %v1118
      %v1245 = vsel %vm808, %v1213, %v1120
      %v1246 = vsel %vm808, %v1214, %v1122
      %v1247 = vsel %vm808, %v1215, %v1124
      %v1248 = vsel %vm808, %v1216, %v1126
      %v1249 = vsel %vm808, %v1217, %v1128
      %v1250 = vsel %vm808, %v1218, %v1130
      %v1251 = vsel %vm808, %v1219, %v1132
      %v1252 = vsel %vm808, %v1220, %v1134
      %v1253 = vsel %vm808, %v1221, %v1136
      %v1254 = vsel %vm808, %v1222, %v1138
      %v1255 = vsel %vm808, %v1223, %v1140
      %v1256 = vsel %vm808, %v1224, %v1142
      %v1257 = vsel %vm808, %v1225, %v1144
      %v1258 = vsel %vm808, %v1226, %v1146
      %v1259 = vsel %vm808, %v1227, %v1148
      %v1260 = vsel %vm808, %v1228, %v1150
      %v1261 = vsel %vm808, %v1229, %v1152
      %v1262 = vsel %vm808, %v1230, %v1154
      %v1263 = vsel %vm808, %v1231, %v1156
      %v1264 = vsel %vm808, %v1232, %v1158
      %v1265 = vsel %vm808, %v1233, %v1160
      %v1266 = vsel %vm808, %v1234, %v1162
      %v1267 = vsel %vm808, %v1235, %v1164
      %v1268 = vsel %vm808, %v1236, %v1166
      %v1269 = vsel %vm808, %v1237, %v1168
      %v1270 = vsel %vm808, %v1238, %v1170
      %v1271 = vsel %vm808, %v1239, %v1172
      %v1272 = vsel %vm808, %v1240, %v1174
      %v1273 = vsel %vm808, %v1241, %v1176
      %v1274 = vsel %vm808, %v1242, %v1178
      %v1275 = vpack.c.bf16 %v1244, %v1243
      %v1276 = vpack.c.bf16 %v1246, %v1245
      %v1277 = vpack.c.bf16 %v1248, %v1247
      %v1278 = vpack.c.bf16 %v1250, %v1249
      %v1279 = vpack.c.bf16 %v1252, %v1251
      %v1280 = vpack.c.bf16 %v1254, %v1253
      %v1281 = vpack.c.bf16 %v1256, %v1255
      %v1282 = vpack.c.bf16 %v1258, %v1257
      %v1283 = vpack.c.bf16 %v1260, %v1259
      %v1284 = vpack.c.bf16 %v1262, %v1261
      %v1285 = vpack.c.bf16 %v1264, %v1263
      %v1286 = vpack.c.bf16 %v1266, %v1265
      %v1287 = vpack.c.bf16 %v1268, %v1267
      %v1288 = vpack.c.bf16 %v1270, %v1269
      %v1289 = vpack.c.bf16 %v1272, %v1271
      %v1290 = vpack.c.bf16 %v1274, %v1273
      %s1291 = scalar_lea.vmem %s1, 8
      %v1292 = vld [vmem:[%s1291] sm:$0xf]
      %v1293 = vld [vmem:[%s1291 + $0x4] sm:$0x3]
      %v1296 = vunpack.c.l.b16 %v1292
      %v1297 = vunpack.c.l.b16 %v1293
      %v1298 = vpack.c.b16 %v1297, %v1296
      %vm1299 = vcmask 97280
      %v1301 = vsel %vm1299, %v1275, 0
      %v1304 = vsel %vm1299, %v1276, 0
      %v1307 = vsel %vm1299, %v1277, 0
      %v1310 = vsel %vm1299, %v1278, 0
      %v1313 = vsel %vm1299, %v1279, 0
      %v1316 = vsel %vm1299, %v1280, 0
      %v1319 = vsel %vm1299, %v1281, 0
      %v1322 = vsel %vm1299, %v1282, 0
      %v1325 = vsel %vm1299, %v1283, 0
      %v1328 = vsel %vm1299, %v1284, 0
      %v1331 = vsel %vm1299, %v1285, 0
      %v1334 = vsel %vm1299, %v1286, 0
      %v1337 = vsel %vm1299, %v1287, 0
      %v1340 = vsel %vm1299, %v1288, 0
      %v1343 = vsel %vm1299, %v1289, 0
      %v1346 = vsel %vm1299, %v1290, 0
      %vm1348 = vcmask 1045504
      %v1350 = vsel %vm1348, %v1298, 0
      %1352 = vmatprep.subr.bf16.mxu0 0
      %1353 = vmatpush1.bf16.msra.mxu0 0
      %1354 = vmatprep.subr.bf16.mxu0 0
      %1355 = vmatpush1.bf16.msra.mxu0 0
      %1356 = vmatprep.subr.bf16.mxu0 0
      %1357 = vmatpush1.bf16.msra.mxu0 0
      %1358 = vmatprep.subr.bf16.mxu0 0
      %1359 = vmatpush1.bf16.msra.mxu0 0
      %1360 = vmatprep.subr.bf16.mxu0 0
      %1361 = vmatpush1.bf16.msra.mxu0 0
      %1362 = vmatprep.subr.bf16.mxu0 0
      %1363 = vmatpush1.bf16.msra.mxu0 0
      %1364 = vmatprep.subr.bf16.mxu0 0
      %1365 = vmatpush1.bf16.msra.mxu0 0
      %1366 = vmatprep.subr.bf16.mxu0 0
      %1367 = vmatpush1.bf16.msra.mxu0 %v1350
      %1368 = vmatprep.subr.bf16.mxu0 0
      %1369 = vmatpush2.bf16.msra.mxu0 0
      %1370 = vmatprep.subr.bf16.mxu0 0
      %1371 = vmatpush2.bf16.msra.mxu0 0
      %1372 = vmatprep.subr.bf16.mxu0 0
      %1373 = vmatpush2.bf16.msra.mxu0 0
      %1374 = vmatprep.subr.bf16.mxu0 0
      %1375 = vmatpush2.bf16.msra.mxu0 0
      %1376 = vmatprep.subr.bf16.mxu0 0
      %1377 = vmatpush2.bf16.msra.mxu0 0
      %1378 = vmatprep.subr.bf16.mxu0 0
      %1379 = vmatpush2.bf16.msra.mxu0 0
      %1380 = vmatprep.subr.bf16.mxu0 0
      %1381 = vmatpush2.bf16.msra.mxu0 0
      %1382 = vmatprep.subr.bf16.mxu0 0
      %1383 = vmatpush2.bf16.msra.mxu0 0
      %1384 = vmatprep.mubr.bf16.mxu0 0
      %1385 = vmatmul.mubr.bf16.gmra.mxu0 %v1301
      %v1386 = vpop.f32.mrf.mxu0
      %v1387 = vadd.f32 0.0, %v1386
      %v1388 = vpop.f32.mrf.mxu0
      %v1389 = vpop.f32.mrf.mxu0
      %v1390 = vadd.f32 0.0, %v1389
      %v1391 = vpop.f32.mrf.mxu0
      %1392 = vmatprep.mubr.bf16.mxu0 0
      %1393 = vmatmul.mubr.bf16.gmra.mxu0 %v1304
      %v1394 = vpop.f32.mrf.mxu0
      %v1395 = vadd.f32 0.0, %v1394
      %v1396 = vpop.f32.mrf.mxu0
      %v1397 = vpop.f32.mrf.mxu0
      %v1398 = vadd.f32 0.0, %v1397
      %v1399 = vpop.f32.mrf.mxu0
      %1400 = vmatprep.mubr.bf16.mxu0 0
      %1401 = vmatmul.mubr.bf16.gmra.mxu0 %v1307
      %v1402 = vpop.f32.mrf.mxu0
      %v1403 = vadd.f32 0.0, %v1402
      %v1404 = vpop.f32.mrf.mxu0
      %v1405 = vpop.f32.mrf.mxu0
      %v1406 = vadd.f32 0.0, %v1405
      %v1407 = vpop.f32.mrf.mxu0
      %1408 = vmatprep.mubr.bf16.mxu0 0
      %1409 = vmatmul.mubr.bf16.gmra.mxu0 %v1310
      %v1410 = vpop.f32.mrf.mxu0
      %v1411 = vadd.f32 0.0, %v1410
      %v1412 = vpop.f32.mrf.mxu0
      %v1413 = vpop.f32.mrf.mxu0
      %v1414 = vadd.f32 0.0, %v1413
      %v1415 = vpop.f32.mrf.mxu0
      %1416 = vmatprep.mubr.bf16.mxu0 0
      %1417 = vmatmul.mubr.bf16.gmra.mxu0 %v1313
      %v1418 = vpop.f32.mrf.mxu0
      %v1419 = vadd.f32 0.0, %v1418
      %v1420 = vpop.f32.mrf.mxu0
      %v1421 = vpop.f32.mrf.mxu0
      %v1422 = vadd.f32 0.0, %v1421
      %v1423 = vpop.f32.mrf.mxu0
      %1424 = vmatprep.mubr.bf16.mxu0 0
      %1425 = vmatmul.mubr.bf16.gmra.mxu0 %v1316
      %v1426 = vpop.f32.mrf.mxu0
      %v1427 = vadd.f32 0.0, %v1426
      %v1428 = vpop.f32.mrf.mxu0
      %v1429 = vpop.f32.mrf.mxu0
      %v1430 = vadd.f32 0.0, %v1429
      %v1431 = vpop.f32.mrf.mxu0
      %1432 = vmatprep.mubr.bf16.mxu0 0
      %1433 = vmatmul.mubr.bf16.gmra.mxu0 %v1319
      %v1434 = vpop.f32.mrf.mxu0
      %v1435 = vadd.f32 0.0, %v1434
      %v1436 = vpop.f32.mrf.mxu0
      %v1437 = vpop.f32.mrf.mxu0
      %v1438 = vadd.f32 0.0, %v1437
      %v1439 = vpop.f32.mrf.mxu0
      %1440 = vmatprep.mubr.bf16.mxu0 0
      %1441 = vmatmul.mubr.bf16.gmra.mxu0 %v1322
      %v1442 = vpop.f32.mrf.mxu0
      %v1443 = vadd.f32 0.0, %v1442
      %v1444 = vpop.f32.mrf.mxu0
      %v1445 = vpop.f32.mrf.mxu0
      %v1446 = vadd.f32 0.0, %v1445
      %v1447 = vpop.f32.mrf.mxu0
      %1448 = vmatprep.mubr.bf16.mxu0 0
      %1449 = vmatmul.mubr.bf16.gmra.mxu0 %v1325
      %v1450 = vpop.f32.mrf.mxu0
      %v1451 = vadd.f32 0.0, %v1450
      %v1452 = vpop.f32.mrf.mxu0
      %v1453 = vpop.f32.mrf.mxu0
      %v1454 = vadd.f32 0.0, %v1453
      %v1455 = vpop.f32.mrf.mxu0
      %1456 = vmatprep.mubr.bf16.mxu0 0
      %1457 = vmatmul.mubr.bf16.gmra.mxu0 %v1328
      %v1458 = vpop.f32.mrf.mxu0
      %v1459 = vadd.f32 0.0, %v1458
      %v1460 = vpop.f32.mrf.mxu0
      %v1461 = vpop.f32.mrf.mxu0
      %v1462 = vadd.f32 0.0, %v1461
      %v1463 = vpop.f32.mrf.mxu0
      %1464 = vmatprep.mubr.bf16.mxu0 0
      %1465 = vmatmul.mubr.bf16.gmra.mxu0 %v1331
      %v1466 = vpop.f32.mrf.mxu0
      %v1467 = vadd.f32 0.0, %v1466
      %v1468 = vpop.f32.mrf.mxu0
      %v1469 = vpop.f32.mrf.mxu0
      %v1470 = vadd.f32 0.0, %v1469
      %v1471 = vpop.f32.mrf.mxu0
      %1472 = vmatprep.mubr.bf16.mxu0 0
      %1473 = vmatmul.mubr.bf16.gmra.mxu0 %v1334
      %v1474 = vpop.f32.mrf.mxu0
      %v1475 = vadd.f32 0.0, %v1474
      %v1476 = vpop.f32.mrf.mxu0
      %v1477 = vpop.f32.mrf.mxu0
      %v1478 = vadd.f32 0.0, %v1477
      %v1479 = vpop.f32.mrf.mxu0
      %1480 = vmatprep.mubr.bf16.mxu0 0
      %1481 = vmatmul.mubr.bf16.gmra.mxu0 %v1337
      %v1482 = vpop.f32.mrf.mxu0
      %v1483 = vadd.f32 0.0, %v1482
      %v1484 = vpop.f32.mrf.mxu0
      %v1485 = vpop.f32.mrf.mxu0
      %v1486 = vadd.f32 0.0, %v1485
      %v1487 = vpop.f32.mrf.mxu0
      %1488 = vmatprep.mubr.bf16.mxu0 0
      %1489 = vmatmul.mubr.bf16.gmra.mxu0 %v1340
      %v1490 = vpop.f32.mrf.mxu0
      %v1491 = vadd.f32 0.0, %v1490
      %v1492 = vpop.f32.mrf.mxu0
      %v1493 = vpop.f32.mrf.mxu0
      %v1494 = vadd.f32 0.0, %v1493
      %v1495 = vpop.f32.mrf.mxu0
      %1496 = vmatprep.mubr.bf16.mxu0 0
      %1497 = vmatmul.mubr.bf16.gmra.mxu0 %v1343
      %v1498 = vpop.f32.mrf.mxu0
      %v1499 = vadd.f32 0.0, %v1498
      %v1500 = vpop.f32.mrf.mxu0
      %v1501 = vpop.f32.mrf.mxu0
      %v1502 = vadd.f32 0.0, %v1501
      %v1503 = vpop.f32.mrf.mxu0
      %1504 = vmatprep.mubr.bf16.mxu0 0
      %1505 = vmatmul.mubr.bf16.gmra.mxu0 %v1346
      %v1506 = vpop.f32.mrf.mxu0
      %v1507 = vadd.f32 0.0, %v1506
      %v1508 = vpop.f32.mrf.mxu0
      %v1509 = vpop.f32.mrf.mxu0
      %v1510 = vadd.f32 0.0, %v1509
      %v1511 = vpop.f32.mrf.mxu0
      %1512 = vdwg.mxu0
      %v1515 = vunpack.c.l.b16 %v857
      %v1516 = vunpack.c.l.b16 %v858
      %v1517 = vpack.c.b16 %v1516, %v1515
      %v1519 = vsel %vm1299, %v841, 0
      %v1522 = vsel %vm1299, %v842, 0
      %v1525 = vsel %vm1299, %v843, 0
      %v1528 = vsel %vm1299, %v844, 0
      %v1531 = vsel %vm1299, %v845, 0
      %v1534 = vsel %vm1299, %v846, 0
      %v1537 = vsel %vm1299, %v847, 0
      %v1540 = vsel %vm1299, %v848, 0
      %v1543 = vsel %vm1299, %v849, 0
      %v1546 = vsel %vm1299, %v850, 0
      %v1549 = vsel %vm1299, %v851, 0
      %v1552 = vsel %vm1299, %v852, 0
      %v1555 = vsel %vm1299, %v853, 0
      %v1558 = vsel %vm1299, %v854, 0
      %v1561 = vsel %vm1299, %v855, 0
      %v1564 = vsel %vm1299, %v856, 0
      %v1567 = vsel %vm1348, %v1517, 0
      %1569 = vmatprep.subr.bf16.mxu0 0
      %1570 = vmatpush1.bf16.msra.mxu0 0
      %1571 = vmatprep.subr.bf16.mxu0 0
      %1572 = vmatpush1.bf16.msra.mxu0 0
      %1573 = vmatprep.subr.bf16.mxu0 0
      %1574 = vmatpush1.bf16.msra.mxu0 0
      %1575 = vmatprep.subr.bf16.mxu0 0
      %1576 = vmatpush1.bf16.msra.mxu0 0
      %1577 = vmatprep.subr.bf16.mxu0 0
      %1578 = vmatpush1.bf16.msra.mxu0 0
      %1579 = vmatprep.subr.bf16.mxu0 0
      %1580 = vmatpush1.bf16.msra.mxu0 0
      %1581 = vmatprep.subr.bf16.mxu0 0
      %1582 = vmatpush1.bf16.msra.mxu0 0
      %1583 = vmatprep.subr.bf16.mxu0 0
      %1584 = vmatpush1.bf16.msra.mxu0 %v1567
      %1585 = vmatprep.subr.bf16.mxu0 0
      %1586 = vmatpush2.bf16.msra.mxu0 0
      %1587 = vmatprep.subr.bf16.mxu0 0
      %1588 = vmatpush2.bf16.msra.mxu0 0
      %1589 = vmatprep.subr.bf16.mxu0 0
      %1590 = vmatpush2.bf16.msra.mxu0 0
      %1591 = vmatprep.subr.bf16.mxu0 0
      %1592 = vmatpush2.bf16.msra.mxu0 0
      %1593 = vmatprep.subr.bf16.mxu0 0
      %1594 = vmatpush2.bf16.msra.mxu0 0
      %1595 = vmatprep.subr.bf16.mxu0 0
      %1596 = vmatpush2.bf16.msra.mxu0 0
      %1597 = vmatprep.subr.bf16.mxu0 0
      %1598 = vmatpush2.bf16.msra.mxu0 0
      %1599 = vmatprep.subr.bf16.mxu0 0
      %1600 = vmatpush2.bf16.msra.mxu0 0
      %1601 = vmatprep.mubr.bf16.mxu0 0
      %1602 = vmatmul.mubr.bf16.gmra.mxu0 %v1519
      %v1603 = vpop.f32.mrf.mxu0
      %v1604 = vadd.f32 %v1387, %v1603
      %v1605 = vpop.f32.mrf.mxu0
      %v1606 = vpop.f32.mrf.mxu0
      %v1607 = vadd.f32 %v1390, %v1606
      %v1608 = vpop.f32.mrf.mxu0
      %1609 = vmatprep.mubr.bf16.mxu0 0
      %1610 = vmatmul.mubr.bf16.gmra.mxu0 %v1522
      %v1611 = vpop.f32.mrf.mxu0
      %v1612 = vadd.f32 %v1395, %v1611
      %v1613 = vpop.f32.mrf.mxu0
      %v1614 = vpop.f32.mrf.mxu0
      %v1615 = vadd.f32 %v1398, %v1614
      %v1616 = vpop.f32.mrf.mxu0
      %1617 = vmatprep.mubr.bf16.mxu0 0
      %1618 = vmatmul.mubr.bf16.gmra.mxu0 %v1525
      %v1619 = vpop.f32.mrf.mxu0
      %v1620 = vadd.f32 %v1403, %v1619
      %v1621 = vpop.f32.mrf.mxu0
      %v1622 = vpop.f32.mrf.mxu0
      %v1623 = vadd.f32 %v1406, %v1622
      %v1624 = vpop.f32.mrf.mxu0
      %1625 = vmatprep.mubr.bf16.mxu0 0
      %1626 = vmatmul.mubr.bf16.gmra.mxu0 %v1528
      %v1627 = vpop.f32.mrf.mxu0
      %v1628 = vadd.f32 %v1411, %v1627
      %v1629 = vpop.f32.mrf.mxu0
      %v1630 = vpop.f32.mrf.mxu0
      %v1631 = vadd.f32 %v1414, %v1630
      %v1632 = vpop.f32.mrf.mxu0
      %1633 = vmatprep.mubr.bf16.mxu0 0
      %1634 = vmatmul.mubr.bf16.gmra.mxu0 %v1531
      %v1635 = vpop.f32.mrf.mxu0
      %v1636 = vadd.f32 %v1419, %v1635
      %v1637 = vpop.f32.mrf.mxu0
      %v1638 = vpop.f32.mrf.mxu0
      %v1639 = vadd.f32 %v1422, %v1638
      %v1640 = vpop.f32.mrf.mxu0
      %1641 = vmatprep.mubr.bf16.mxu0 0
      %1642 = vmatmul.mubr.bf16.gmra.mxu0 %v1534
      %v1643 = vpop.f32.mrf.mxu0
      %v1644 = vadd.f32 %v1427, %v1643
      %v1645 = vpop.f32.mrf.mxu0
      %v1646 = vpop.f32.mrf.mxu0
      %v1647 = vadd.f32 %v1430, %v1646
      %v1648 = vpop.f32.mrf.mxu0
      %1649 = vmatprep.mubr.bf16.mxu0 0
      %1650 = vmatmul.mubr.bf16.gmra.mxu0 %v1537
      %v1651 = vpop.f32.mrf.mxu0
      %v1652 = vadd.f32 %v1435, %v1651
      %v1653 = vpop.f32.mrf.mxu0
      %v1654 = vpop.f32.mrf.mxu0
      %v1655 = vadd.f32 %v1438, %v1654
      %v1656 = vpop.f32.mrf.mxu0
      %1657 = vmatprep.mubr.bf16.mxu0 0
      %1658 = vmatmul.mubr.bf16.gmra.mxu0 %v1540
      %v1659 = vpop.f32.mrf.mxu0
      %v1660 = vadd.f32 %v1443, %v1659
      %v1661 = vpop.f32.mrf.mxu0
      %v1662 = vpop.f32.mrf.mxu0
      %v1663 = vadd.f32 %v1446, %v1662
      %v1664 = vpop.f32.mrf.mxu0
      %1665 = vmatprep.mubr.bf16.mxu0 0
      %1666 = vmatmul.mubr.bf16.gmra.mxu0 %v1543
      %v1667 = vpop.f32.mrf.mxu0
      %v1668 = vadd.f32 %v1451, %v1667
      %v1669 = vpop.f32.mrf.mxu0
      %v1670 = vpop.f32.mrf.mxu0
      %v1671 = vadd.f32 %v1454, %v1670
      %v1672 = vpop.f32.mrf.mxu0
      %1673 = vmatprep.mubr.bf16.mxu0 0
      %1674 = vmatmul.mubr.bf16.gmra.mxu0 %v1546
      %v1675 = vpop.f32.mrf.mxu0
      %v1676 = vadd.f32 %v1459, %v1675
      %v1677 = vpop.f32.mrf.mxu0
      %v1678 = vpop.f32.mrf.mxu0
      %v1679 = vadd.f32 %v1462, %v1678
      %v1680 = vpop.f32.mrf.mxu0
      %1681 = vmatprep.mubr.bf16.mxu0 0
      %1682 = vmatmul.mubr.bf16.gmra.mxu0 %v1549
      %v1683 = vpop.f32.mrf.mxu0
      %v1684 = vadd.f32 %v1467, %v1683
      %v1685 = vpop.f32.mrf.mxu0
      %v1686 = vpop.f32.mrf.mxu0
      %v1687 = vadd.f32 %v1470, %v1686
      %v1688 = vpop.f32.mrf.mxu0
      %1689 = vmatprep.mubr.bf16.mxu0 0
      %1690 = vmatmul.mubr.bf16.gmra.mxu0 %v1552
      %v1691 = vpop.f32.mrf.mxu0
      %v1692 = vadd.f32 %v1475, %v1691
      %v1693 = vpop.f32.mrf.mxu0
      %v1694 = vpop.f32.mrf.mxu0
      %v1695 = vadd.f32 %v1478, %v1694
      %v1696 = vpop.f32.mrf.mxu0
      %1697 = vmatprep.mubr.bf16.mxu0 0
      %1698 = vmatmul.mubr.bf16.gmra.mxu0 %v1555
      %v1699 = vpop.f32.mrf.mxu0
      %v1700 = vadd.f32 %v1483, %v1699
      %v1701 = vpop.f32.mrf.mxu0
      %v1702 = vpop.f32.mrf.mxu0
      %v1703 = vadd.f32 %v1486, %v1702
      %v1704 = vpop.f32.mrf.mxu0
      %1705 = vmatprep.mubr.bf16.mxu0 0
      %1706 = vmatmul.mubr.bf16.gmra.mxu0 %v1558
      %v1707 = vpop.f32.mrf.mxu0
      %v1708 = vadd.f32 %v1491, %v1707
      %v1709 = vpop.f32.mrf.mxu0
      %v1710 = vpop.f32.mrf.mxu0
      %v1711 = vadd.f32 %v1494, %v1710
      %v1712 = vpop.f32.mrf.mxu0
      %1713 = vmatprep.mubr.bf16.mxu0 0
      %1714 = vmatmul.mubr.bf16.gmra.mxu0 %v1561
      %v1715 = vpop.f32.mrf.mxu0
      %v1716 = vadd.f32 %v1499, %v1715
      %v1717 = vpop.f32.mrf.mxu0
      %v1718 = vpop.f32.mrf.mxu0
      %v1719 = vadd.f32 %v1502, %v1718
      %v1720 = vpop.f32.mrf.mxu0
      %1721 = vmatprep.mubr.bf16.mxu0 0
      %1722 = vmatmul.mubr.bf16.gmra.mxu0 %v1564
      %v1723 = vpop.f32.mrf.mxu0
      %v1724 = vadd.f32 %v1507, %v1723
      %v1725 = vpop.f32.mrf.mxu0
      %v1726 = vpop.f32.mrf.mxu0
      %v1727 = vadd.f32 %v1510, %v1726
      %v1728 = vpop.f32.mrf.mxu0
      %1729 = vdwg.mxu0
      %s1730 = scalar_lea.vmem [#allocation2], 64
      %v1731 = vld [vmem:[%s1730 + $0x7] sm:$0xff]
      %v1732 = vld [vmem:[%s1730 + $0xf] sm:$0xff]
      %v1733 = vld [vmem:[%s1730 + $0x27] sm:$0xff]
      %v1734 = vld [vmem:[%s1730 + $0x2f] sm:$0xff]
      %v1735 = vld [vmem:[%s1730 + $0x47] sm:$0xff]
      %v1736 = vld [vmem:[%s1730 + $0x4f] sm:$0xff]
      %v1737 = vld [vmem:[%s1730 + $0x67] sm:$0xff]
      %v1738 = vld [vmem:[%s1730 + $0x6f] sm:$0xff]
      %v1739 = vld [vmem:[%s1730 + $0x87] sm:$0xff]
      %v1740 = vld [vmem:[%s1730 + $0x8f] sm:$0xff]
      %v1741 = vld [vmem:[%s1730 + $0xa7] sm:$0xff]
      %v1742 = vld [vmem:[%s1730 + $0xaf] sm:$0xff]
      %v1743 = vld [vmem:[%s1730 + $0xc7] sm:$0xff]
      %v1744 = vld [vmem:[%s1730 + $0xcf] sm:$0xff]
      %v1745 = vld [vmem:[%s1730 + $0xe7] sm:$0xff]
      %v1746 = vld [vmem:[%s1730 + $0xef] sm:$0xff]
      %v1747 = vld [vmem:[%s1730 + $0x107] sm:$0xff]
      %v1748 = vld [vmem:[%s1730 + $0x10f] sm:$0xff]
      %v1749 = vld [vmem:[%s1730 + $0x127] sm:$0xff]
      %v1750 = vld [vmem:[%s1730 + $0x12f] sm:$0xff]
      %v1751 = vld [vmem:[%s1730 + $0x147] sm:$0xff]
      %v1752 = vld [vmem:[%s1730 + $0x14f] sm:$0xff]
      %v1753 = vld [vmem:[%s1730 + $0x167] sm:$0xff]
      %v1754 = vld [vmem:[%s1730 + $0x16f] sm:$0xff]
      %v1755 = vld [vmem:[%s1730 + $0x187] sm:$0xff]
      %v1756 = vld [vmem:[%s1730 + $0x18f] sm:$0xff]
      %v1757 = vld [vmem:[%s1730 + $0x1a7] sm:$0xff]
      %v1758 = vld [vmem:[%s1730 + $0x1af] sm:$0xff]
      %v1759 = vld [vmem:[%s1730 + $0x1c7] sm:$0xff]
      %v1760 = vld [vmem:[%s1730 + $0x1cf] sm:$0xff]
      %v1761 = vld [vmem:[%s1730 + $0x1e7] sm:$0xff]
      %v1762 = vld [vmem:[%s1730 + $0x1ef] sm:$0xff]
      %v1763 = vld [vmem:[%s1730 + $0x8] sm:$0xff]
      %v1764 = vld [vmem:[%s1730 + $0x10] sm:$0xff]
      %v1765 = vld [vmem:[%s1730 + $0x28] sm:$0xff]
      %v1766 = vld [vmem:[%s1730 + $0x30] sm:$0xff]
      %v1767 = vld [vmem:[%s1730 + $0x48] sm:$0xff]
      %v1768 = vld [vmem:[%s1730 + $0x50] sm:$0xff]
      %v1769 = vld [vmem:[%s1730 + $0x68] sm:$0xff]
      %v1770 = vld [vmem:[%s1730 + $0x70] sm:$0xff]
      %v1771 = vld [vmem:[%s1730 + $0x88] sm:$0xff]
      %v1772 = vld [vmem:[%s1730 + $0x90] sm:$0xff]
      %v1773 = vld [vmem:[%s1730 + $0xa8] sm:$0xff]
      %v1774 = vld [vmem:[%s1730 + $0xb0] sm:$0xff]
      %v1775 = vld [vmem:[%s1730 + $0xc8] sm:$0xff]
      %v1776 = vld [vmem:[%s1730 + $0xd0] sm:$0xff]
      %v1777 = vld [vmem:[%s1730 + $0xe8] sm:$0xff]
      %v1778 = vld [vmem:[%s1730 + $0xf0] sm:$0xff]
      %v1779 = vld [vmem:[%s1730 + $0x108] sm:$0xff]
      %v1780 = vld [vmem:[%s1730 + $0x110] sm:$0xff]
      %v1781 = vld [vmem:[%s1730 + $0x128] sm:$0xff]
      %v1782 = vld [vmem:[%s1730 + $0x130] sm:$0xff]
      %v1783 = vld [vmem:[%s1730 + $0x148] sm:$0xff]
      %v1784 = vld [vmem:[%s1730 + $0x150] sm:$0xff]
      %v1785 = vld [vmem:[%s1730 + $0x168] sm:$0xff]
      %v1786 = vld [vmem:[%s1730 + $0x170] sm:$0xff]
      %v1787 = vld [vmem:[%s1730 + $0x188] sm:$0xff]
      %v1788 = vld [vmem:[%s1730 + $0x190] sm:$0xff]
      %v1789 = vld [vmem:[%s1730 + $0x1a8] sm:$0xff]
      %v1790 = vld [vmem:[%s1730 + $0x1b0] sm:$0xff]
      %v1791 = vld [vmem:[%s1730 + $0x1c8] sm:$0xff]
      %v1792 = vld [vmem:[%s1730 + $0x1d0] sm:$0xff]
      %v1793 = vld [vmem:[%s1730 + $0x1e8] sm:$0xff]
      %v1794 = vld [vmem:[%s1730 + $0x1f0] sm:$0xff]
      %v1795 = vld [vmem:[%s1730 + $0x9] sm:$0xff]
      %v1796 = vld [vmem:[%s1730 + $0x11] sm:$0xff]
      %v1797 = vld [vmem:[%s1730 + $0x29] sm:$0xff]
      %v1798 = vld [vmem:[%s1730 + $0x31] sm:$0xff]
      %v1799 = vld [vmem:[%s1730 + $0x49] sm:$0xff]
      %v1800 = vld [vmem:[%s1730 + $0x51] sm:$0xff]
      %v1801 = vld [vmem:[%s1730 + $0x69] sm:$0xff]
      %v1802 = vld [vmem:[%s1730 + $0x71] sm:$0xff]
      %v1803 = vld [vmem:[%s1730 + $0x89] sm:$0xff]
      %v1804 = vld [vmem:[%s1730 + $0x91] sm:$0xff]
      %v1805 = vld [vmem:[%s1730 + $0xa9] sm:$0xff]
      %v1806 = vld [vmem:[%s1730 + $0xb1] sm:$0xff]
      %v1807 = vld [vmem:[%s1730 + $0xc9] sm:$0xff]
      %v1808 = vld [vmem:[%s1730 + $0xd1] sm:$0xff]
      %v1809 = vld [vmem:[%s1730 + $0xe9] sm:$0xff]
      %v1810 = vld [vmem:[%s1730 + $0xf1] sm:$0xff]
      %v1811 = vld [vmem:[%s1730 + $0x109] sm:$0xff]
      %v1812 = vld [vmem:[%s1730 + $0x111] sm:$0xff]
      %v1813 = vld [vmem:[%s1730 + $0x129] sm:$0xff]
      %v1814 = vld [vmem:[%s1730 + $0x131] sm:$0xff]
      %v1815 = vld [vmem:[%s1730 + $0x149] sm:$0xff]
      %v1816 = vld [vmem:[%s1730 + $0x151] sm:$0xff]
      %v1817 = vld [vmem:[%s1730 + $0x169] sm:$0xff]
      %v1818 = vld [vmem:[%s1730 + $0x171] sm:$0xff]
      %v1819 = vld [vmem:[%s1730 + $0x189] sm:$0xff]
      %v1820 = vld [vmem:[%s1730 + $0x191] sm:$0xff]
      %v1821 = vld [vmem:[%s1730 + $0x1a9] sm:$0xff]
      %v1822 = vld [vmem:[%s1730 + $0x1b1] sm:$0xff]
      %v1823 = vld [vmem:[%s1730 + $0x1c9] sm:$0xff]
      %v1824 = vld [vmem:[%s1730 + $0x1d1] sm:$0xff]
      %v1825 = vld [vmem:[%s1730 + $0x1e9] sm:$0xff]
      %v1826 = vld [vmem:[%s1730 + $0x1f1] sm:$0xff]
      %1859 = vrot.lane.b32.xlu0 %v1763, 4
      %v1860 = vpop.permute.xlu0 %1859
      %1861 = vrot.lane.b32.xlu0 %v1764, 4
      %v1862 = vpop.permute.xlu0 %1861
      %1863 = vrot.lane.b32.xlu0 %v1765, 4
      %v1864 = vpop.permute.xlu0 %1863
      %1865 = vrot.lane.b32.xlu0 %v1766, 4
      %v1866 = vpop.permute.xlu0 %1865
      %1867 = vrot.lane.b32.xlu0 %v1767, 4
      %v1868 = vpop.permute.xlu0 %1867
      %1869 = vrot.lane.b32.xlu0 %v1768, 4
      %v1870 = vpop.permute.xlu0 %1869
      %1871 = vrot.lane.b32.xlu0 %v1769, 4
      %v1872 = vpop.permute.xlu0 %1871
      %1873 = vrot.lane.b32.xlu0 %v1770, 4
      %v1874 = vpop.permute.xlu0 %1873
      %1875 = vrot.lane.b32.xlu0 %v1771, 4
      %v1876 = vpop.permute.xlu0 %1875
      %1877 = vrot.lane.b32.xlu0 %v1772, 4
      %v1878 = vpop.permute.xlu0 %1877
      %1879 = vrot.lane.b32.xlu0 %v1773, 4
      %v1880 = vpop.permute.xlu0 %1879
      %1881 = vrot.lane.b32.xlu0 %v1774, 4
      %v1882 = vpop.permute.xlu0 %1881
      %1883 = vrot.lane.b32.xlu0 %v1775, 4
      %v1884 = vpop.permute.xlu0 %1883
      %1885 = vrot.lane.b32.xlu0 %v1776, 4
      %v1886 = vpop.permute.xlu0 %1885
      %1887 = vrot.lane.b32.xlu0 %v1777, 4
      %v1888 = vpop.permute.xlu0 %1887
      %1889 = vrot.lane.b32.xlu0 %v1778, 4
      %v1890 = vpop.permute.xlu0 %1889
      %1891 = vrot.lane.b32.xlu0 %v1779, 4
      %v1892 = vpop.permute.xlu0 %1891
      %1893 = vrot.lane.b32.xlu0 %v1780, 4
      %v1894 = vpop.permute.xlu0 %1893
      %1895 = vrot.lane.b32.xlu0 %v1781, 4
      %v1896 = vpop.permute.xlu0 %1895
      %1897 = vrot.lane.b32.xlu0 %v1782, 4
      %v1898 = vpop.permute.xlu0 %1897
      %1899 = vrot.lane.b32.xlu0 %v1783, 4
      %v1900 = vpop.permute.xlu0 %1899
      %1901 = vrot.lane.b32.xlu0 %v1784, 4
      %v1902 = vpop.permute.xlu0 %1901
      %1903 = vrot.lane.b32.xlu0 %v1785, 4
      %v1904 = vpop.permute.xlu0 %1903
      %1905 = vrot.lane.b32.xlu0 %v1786, 4
      %v1906 = vpop.permute.xlu0 %1905
      %1907 = vrot.lane.b32.xlu0 %v1787, 4
      %v1908 = vpop.permute.xlu0 %1907
      %1909 = vrot.lane.b32.xlu0 %v1788, 4
      %v1910 = vpop.permute.xlu0 %1909
      %1911 = vrot.lane.b32.xlu0 %v1789, 4
      %v1912 = vpop.permute.xlu0 %1911
      %1913 = vrot.lane.b32.xlu0 %v1790, 4
      %v1914 = vpop.permute.xlu0 %1913
      %1915 = vrot.lane.b32.xlu0 %v1791, 4
      %v1916 = vpop.permute.xlu0 %1915
      %1917 = vrot.lane.b32.xlu0 %v1792, 4
      %v1918 = vpop.permute.xlu0 %1917
      %1919 = vrot.lane.b32.xlu0 %v1793, 4
      %v1920 = vpop.permute.xlu0 %1919
      %1921 = vrot.lane.b32.xlu0 %v1794, 4
      %v1922 = vpop.permute.xlu0 %1921
      %1987 = vrot.lane.b32.xlu0 %v1795, 8
      %v1988 = vpop.permute.xlu0 %1987
      %1989 = vrot.lane.b32.xlu0 %v1796, 8
      %v1990 = vpop.permute.xlu0 %1989
      %1991 = vrot.lane.b32.xlu0 %v1797, 8
      %v1992 = vpop.permute.xlu0 %1991
      %1993 = vrot.lane.b32.xlu0 %v1798, 8
      %v1994 = vpop.permute.xlu0 %1993
      %1995 = vrot.lane.b32.xlu0 %v1799, 8
      %v1996 = vpop.permute.xlu0 %1995
      %1997 = vrot.lane.b32.xlu0 %v1800, 8
      %v1998 = vpop.permute.xlu0 %1997
      %1999 = vrot.lane.b32.xlu0 %v1801, 8
      %v2000 = vpop.permute.xlu0 %1999
      %2001 = vrot.lane.b32.xlu0 %v1802, 8
      %v2002 = vpop.permute.xlu0 %2001
      %2003 = vrot.lane.b32.xlu0 %v1803, 8
      %v2004 = vpop.permute.xlu0 %2003
      %2005 = vrot.lane.b32.xlu0 %v1804, 8
      %v2006 = vpop.permute.xlu0 %2005
      %2007 = vrot.lane.b32.xlu0 %v1805, 8
      %v2008 = vpop.permute.xlu0 %2007
      %2009 = vrot.lane.b32.xlu0 %v1806, 8
      %v2010 = vpop.permute.xlu0 %2009
      %2011 = vrot.lane.b32.xlu0 %v1807, 8
      %v2012 = vpop.permute.xlu0 %2011
      %2013 = vrot.lane.b32.xlu0 %v1808, 8
      %v2014 = vpop.permute.xlu0 %2013
      %2015 = vrot.lane.b32.xlu0 %v1809, 8
      %v2016 = vpop.permute.xlu0 %2015
      %2017 = vrot.lane.b32.xlu0 %v1810, 8
      %v2018 = vpop.permute.xlu0 %2017
      %2019 = vrot.lane.b32.xlu0 %v1811, 8
      %v2020 = vpop.permute.xlu0 %2019
      %2021 = vrot.lane.b32.xlu0 %v1812, 8
      %v2022 = vpop.permute.xlu0 %2021
      %2023 = vrot.lane.b32.xlu0 %v1813, 8
      %v2024 = vpop.permute.xlu0 %2023
      %2025 = vrot.lane.b32.xlu0 %v1814, 8
      %v2026 = vpop.permute.xlu0 %2025
      %2027 = vrot.lane.b32.xlu0 %v1815, 8
      %v2028 = vpop.permute.xlu0 %2027
      %2029 = vrot.lane.b32.xlu0 %v1816, 8
      %v2030 = vpop.permute.xlu0 %2029
      %2031 = vrot.lane.b32.xlu0 %v1817, 8
      %v2032 = vpop.permute.xlu0 %2031
      %2033 = vrot.lane.b32.xlu0 %v1818, 8
      %v2034 = vpop.permute.xlu0 %2033
      %2035 = vrot.lane.b32.xlu0 %v1819, 8
      %v2036 = vpop.permute.xlu0 %2035
      %2037 = vrot.lane.b32.xlu0 %v1820, 8
      %v2038 = vpop.permute.xlu0 %2037
      %2039 = vrot.lane.b32.xlu0 %v1821, 8
      %v2040 = vpop.permute.xlu0 %2039
      %2041 = vrot.lane.b32.xlu0 %v1822, 8
      %v2042 = vpop.permute.xlu0 %2041
      %2043 = vrot.lane.b32.xlu0 %v1823, 8
      %v2044 = vpop.permute.xlu0 %2043
      %2045 = vrot.lane.b32.xlu0 %v1824, 8
      %v2046 = vpop.permute.xlu0 %2045
      %2047 = vrot.lane.b32.xlu0 %v1825, 8
      %v2048 = vpop.permute.xlu0 %2047
      %2049 = vrot.lane.b32.xlu0 %v1826, 8
      %v2050 = vpop.permute.xlu0 %2049
      %v2083 = vsel %vm313, %v1731, %v1860
      %v2084 = vsel %vm313, %v1732, %v1862
      %v2085 = vsel %vm313, %v1733, %v1864
      %v2086 = vsel %vm313, %v1734, %v1866
      %v2087 = vsel %vm313, %v1735, %v1868
      %v2088 = vsel %vm313, %v1736, %v1870
      %v2089 = vsel %vm313, %v1737, %v1872
      %v2090 = vsel %vm313, %v1738, %v1874
      %v2091 = vsel %vm313, %v1739, %v1876
      %v2092 = vsel %vm313, %v1740, %v1878
      %v2093 = vsel %vm313, %v1741, %v1880
      %v2094 = vsel %vm313, %v1742, %v1882
      %v2095 = vsel %vm313, %v1743, %v1884
      %v2096 = vsel %vm313, %v1744, %v1886
      %v2097 = vsel %vm313, %v1745, %v1888
      %v2098 = vsel %vm313, %v1746, %v1890
      %v2099 = vsel %vm313, %v1747, %v1892
      %v2100 = vsel %vm313, %v1748, %v1894
      %v2101 = vsel %vm313, %v1749, %v1896
      %v2102 = vsel %vm313, %v1750, %v1898
      %v2103 = vsel %vm313, %v1751, %v1900
      %v2104 = vsel %vm313, %v1752, %v1902
      %v2105 = vsel %vm313, %v1753, %v1904
      %v2106 = vsel %vm313, %v1754, %v1906
      %v2107 = vsel %vm313, %v1755, %v1908
      %v2108 = vsel %vm313, %v1756, %v1910
      %v2109 = vsel %vm313, %v1757, %v1912
      %v2110 = vsel %vm313, %v1758, %v1914
      %v2111 = vsel %vm313, %v1759, %v1916
      %v2112 = vsel %vm313, %v1760, %v1918
      %v2113 = vsel %vm313, %v1761, %v1920
      %v2114 = vsel %vm313, %v1762, %v1922
      %v2115 = vsel %vm808, %v2083, %v1988
      %v2116 = vsel %vm808, %v2084, %v1990
      %v2117 = vsel %vm808, %v2085, %v1992
      %v2118 = vsel %vm808, %v2086, %v1994
      %v2119 = vsel %vm808, %v2087, %v1996
      %v2120 = vsel %vm808, %v2088, %v1998
      %v2121 = vsel %vm808, %v2089, %v2000
      %v2122 = vsel %vm808, %v2090, %v2002
      %v2123 = vsel %vm808, %v2091, %v2004
      %v2124 = vsel %vm808, %v2092, %v2006
      %v2125 = vsel %vm808, %v2093, %v2008
      %v2126 = vsel %vm808, %v2094, %v2010
      %v2127 = vsel %vm808, %v2095, %v2012
      %v2128 = vsel %vm808, %v2096, %v2014
      %v2129 = vsel %vm808, %v2097, %v2016
      %v2130 = vsel %vm808, %v2098, %v2018
      %v2131 = vsel %vm808, %v2099, %v2020
      %v2132 = vsel %vm808, %v2100, %v2022
      %v2133 = vsel %vm808, %v2101, %v2024
      %v2134 = vsel %vm808, %v2102, %v2026
      %v2135 = vsel %vm808, %v2103, %v2028
      %v2136 = vsel %vm808, %v2104, %v2030
      %v2137 = vsel %vm808, %v2105, %v2032
      %v2138 = vsel %vm808, %v2106, %v2034
      %v2139 = vsel %vm808, %v2107, %v2036
      %v2140 = vsel %vm808, %v2108, %v2038
      %v2141 = vsel %vm808, %v2109, %v2040
      %v2142 = vsel %vm808, %v2110, %v2042
      %v2143 = vsel %vm808, %v2111, %v2044
      %v2144 = vsel %vm808, %v2112, %v2046
      %v2145 = vsel %vm808, %v2113, %v2048
      %v2146 = vsel %vm808, %v2114, %v2050
      %v2147 = vpack.c.bf16 %v2116, %v2115
      %v2148 = vpack.c.bf16 %v2118, %v2117
      %v2149 = vpack.c.bf16 %v2120, %v2119
      %v2150 = vpack.c.bf16 %v2122, %v2121
      %v2151 = vpack.c.bf16 %v2124, %v2123
      %v2152 = vpack.c.bf16 %v2126, %v2125
      %v2153 = vpack.c.bf16 %v2128, %v2127
      %v2154 = vpack.c.bf16 %v2130, %v2129
      %v2155 = vpack.c.bf16 %v2132, %v2131
      %v2156 = vpack.c.bf16 %v2134, %v2133
      %v2157 = vpack.c.bf16 %v2136, %v2135
      %v2158 = vpack.c.bf16 %v2138, %v2137
      %v2159 = vpack.c.bf16 %v2140, %v2139
      %v2160 = vpack.c.bf16 %v2142, %v2141
      %v2161 = vpack.c.bf16 %v2144, %v2143
      %v2162 = vpack.c.bf16 %v2146, %v2145
      %s2163 = scalar_lea.vmem %s1, 16
      %v2164 = vld [vmem:[%s2163] sm:$0xf]
      %v2165 = vld [vmem:[%s2163 + $0x4] sm:$0x3]
      %v2168 = vunpack.c.l.b16 %v2164
      %v2169 = vunpack.c.l.b16 %v2165
      %v2170 = vpack.c.b16 %v2169, %v2168
      %v2172 = vsel %vm1299, %v2147, 0
      %v2175 = vsel %vm1299, %v2148, 0
      %v2178 = vsel %vm1299, %v2149, 0
      %v2181 = vsel %vm1299, %v2150, 0
      %v2184 = vsel %vm1299, %v2151, 0
      %v2187 = vsel %vm1299, %v2152, 0
      %v2190 = vsel %vm1299, %v2153, 0
      %v2193 = vsel %vm1299, %v2154, 0
      %v2196 = vsel %vm1299, %v2155, 0
      %v2199 = vsel %vm1299, %v2156, 0
      %v2202 = vsel %vm1299, %v2157, 0
      %v2205 = vsel %vm1299, %v2158, 0
      %v2208 = vsel %vm1299, %v2159, 0
      %v2211 = vsel %vm1299, %v2160, 0
      %v2214 = vsel %vm1299, %v2161, 0
      %v2217 = vsel %vm1299, %v2162, 0
      %v2220 = vsel %vm1348, %v2170, 0
      %2222 = vmatprep.subr.bf16.mxu0 0
      %2223 = vmatpush1.bf16.msra.mxu0 0
      %2224 = vmatprep.subr.bf16.mxu0 0
      %2225 = vmatpush1.bf16.msra.mxu0 0
      %2226 = vmatprep.subr.bf16.mxu0 0
      %2227 = vmatpush1.bf16.msra.mxu0 0
      %2228 = vmatprep.subr.bf16.mxu0 0
      %2229 = vmatpush1.bf16.msra.mxu0 0
      %2230 = vmatprep.subr.bf16.mxu0 0
      %2231 = vmatpush1.bf16.msra.mxu0 0
      %2232 = vmatprep.subr.bf16.mxu0 0
      %2233 = vmatpush1.bf16.msra.mxu0 0
      %2234 = vmatprep.subr.bf16.mxu0 0
      %2235 = vmatpush1.bf16.msra.mxu0 0
      %2236 = vmatprep.subr.bf16.mxu0 0
      %2237 = vmatpush1.bf16.msra.mxu0 %v2220
      %2238 = vmatprep.subr.bf16.mxu0 0
      %2239 = vmatpush2.bf16.msra.mxu0 0
      %2240 = vmatprep.subr.bf16.mxu0 0
      %2241 = vmatpush2.bf16.msra.mxu0 0
      %2242 = vmatprep.subr.bf16.mxu0 0
      %2243 = vmatpush2.bf16.msra.mxu0 0
      %2244 = vmatprep.subr.bf16.mxu0 0
      %2245 = vmatpush2.bf16.msra.mxu0 0
      %2246 = vmatprep.subr.bf16.mxu0 0
      %2247 = vmatpush2.bf16.msra.mxu0 0
      %2248 = vmatprep.subr.bf16.mxu0 0
      %2249 = vmatpush2.bf16.msra.mxu0 0
      %2250 = vmatprep.subr.bf16.mxu0 0
      %2251 = vmatpush2.bf16.msra.mxu0 0
      %2252 = vmatprep.subr.bf16.mxu0 0
      %2253 = vmatpush2.bf16.msra.mxu0 0
      %2254 = vmatprep.mubr.bf16.mxu0 0
      %2255 = vmatmul.mubr.bf16.gmra.mxu0 %v2172
      %v2256 = vpop.f32.mrf.mxu0
      %v2257 = vadd.f32 0.0, %v2256
      %v2258 = vpop.f32.mrf.mxu0
      %v2259 = vpop.f32.mrf.mxu0
      %v2260 = vadd.f32 0.0, %v2259
      %v2261 = vpop.f32.mrf.mxu0
      %2262 = vmatprep.mubr.bf16.mxu0 0
      %2263 = vmatmul.mubr.bf16.gmra.mxu0 %v2175
      %v2264 = vpop.f32.mrf.mxu0
      %v2265 = vadd.f32 0.0, %v2264
      %v2266 = vpop.f32.mrf.mxu0
      %v2267 = vpop.f32.mrf.mxu0
      %v2268 = vadd.f32 0.0, %v2267
      %v2269 = vpop.f32.mrf.mxu0
      %2270 = vmatprep.mubr.bf16.mxu0 0
      %2271 = vmatmul.mubr.bf16.gmra.mxu0 %v2178
      %v2272 = vpop.f32.mrf.mxu0
      %v2273 = vadd.f32 0.0, %v2272
      %v2274 = vpop.f32.mrf.mxu0
      %v2275 = vpop.f32.mrf.mxu0
      %v2276 = vadd.f32 0.0, %v2275
      %v2277 = vpop.f32.mrf.mxu0
      %2278 = vmatprep.mubr.bf16.mxu0 0
      %2279 = vmatmul.mubr.bf16.gmra.mxu0 %v2181
      %v2280 = vpop.f32.mrf.mxu0
      %v2281 = vadd.f32 0.0, %v2280
      %v2282 = vpop.f32.mrf.mxu0
      %v2283 = vpop.f32.mrf.mxu0
      %v2284 = vadd.f32 0.0, %v2283
      %v2285 = vpop.f32.mrf.mxu0
      %2286 = vmatprep.mubr.bf16.mxu0 0
      %2287 = vmatmul.mubr.bf16.gmra.mxu0 %v2184
      %v2288 = vpop.f32.mrf.mxu0
      %v2289 = vadd.f32 0.0, %v2288
      %v2290 = vpop.f32.mrf.mxu0
      %v2291 = vpop.f32.mrf.mxu0
      %v2292 = vadd.f32 0.0, %v2291
      %v2293 = vpop.f32.mrf.mxu0
      %2294 = vmatprep.mubr.bf16.mxu0 0
      %2295 = vmatmul.mubr.bf16.gmra.mxu0 %v2187
      %v2296 = vpop.f32.mrf.mxu0
      %v2297 = vadd.f32 0.0, %v2296
      %v2298 = vpop.f32.mrf.mxu0
      %v2299 = vpop.f32.mrf.mxu0
      %v2300 = vadd.f32 0.0, %v2299
      %v2301 = vpop.f32.mrf.mxu0
      %2302 = vmatprep.mubr.bf16.mxu0 0
      %2303 = vmatmul.mubr.bf16.gmra.mxu0 %v2190
      %v2304 = vpop.f32.mrf.mxu0
      %v2305 = vadd.f32 0.0, %v2304
      %v2306 = vpop.f32.mrf.mxu0
      %v2307 = vpop.f32.mrf.mxu0
      %v2308 = vadd.f32 0.0, %v2307
      %v2309 = vpop.f32.mrf.mxu0
      %2310 = vmatprep.mubr.bf16.mxu0 0
      %2311 = vmatmul.mubr.bf16.gmra.mxu0 %v2193
      %v2312 = vpop.f32.mrf.mxu0
      %v2313 = vadd.f32 0.0, %v2312
      %v2314 = vpop.f32.mrf.mxu0
      %v2315 = vpop.f32.mrf.mxu0
      %v2316 = vadd.f32 0.0, %v2315
      %v2317 = vpop.f32.mrf.mxu0
      %2318 = vmatprep.mubr.bf16.mxu0 0
      %2319 = vmatmul.mubr.bf16.gmra.mxu0 %v2196
      %v2320 = vpop.f32.mrf.mxu0
      %v2321 = vadd.f32 0.0, %v2320
      %v2322 = vpop.f32.mrf.mxu0
      %v2323 = vpop.f32.mrf.mxu0
      %v2324 = vadd.f32 0.0, %v2323
      %v2325 = vpop.f32.mrf.mxu0
      %2326 = vmatprep.mubr.bf16.mxu0 0
      %2327 = vmatmul.mubr.bf16.gmra.mxu0 %v2199
      %v2328 = vpop.f32.mrf.mxu0
      %v2329 = vadd.f32 0.0, %v2328
      %v2330 = vpop.f32.mrf.mxu0
      %v2331 = vpop.f32.mrf.mxu0
      %v2332 = vadd.f32 0.0, %v2331
      %v2333 = vpop.f32.mrf.mxu0
      %2334 = vmatprep.mubr.bf16.mxu0 0
      %2335 = vmatmul.mubr.bf16.gmra.mxu0 %v2202
      %v2336 = vpop.f32.mrf.mxu0
      %v2337 = vadd.f32 0.0, %v2336
      %v2338 = vpop.f32.mrf.mxu0
      %v2339 = vpop.f32.mrf.mxu0
      %v2340 = vadd.f32 0.0, %v2339
      %v2341 = vpop.f32.mrf.mxu0
      %2342 = vmatprep.mubr.bf16.mxu0 0
      %2343 = vmatmul.mubr.bf16.gmra.mxu0 %v2205
      %v2344 = vpop.f32.mrf.mxu0
      %v2345 = vadd.f32 0.0, %v2344
      %v2346 = vpop.f32.mrf.mxu0
      %v2347 = vpop.f32.mrf.mxu0
      %v2348 = vadd.f32 0.0, %v2347
      %v2349 = vpop.f32.mrf.mxu0
      %2350 = vmatprep.mubr.bf16.mxu0 0
      %2351 = vmatmul.mubr.bf16.gmra.mxu0 %v2208
      %v2352 = vpop.f32.mrf.mxu0
      %v2353 = vadd.f32 0.0, %v2352
      %v2354 = vpop.f32.mrf.mxu0
      %v2355 = vpop.f32.mrf.mxu0
      %v2356 = vadd.f32 0.0, %v2355
      %v2357 = vpop.f32.mrf.mxu0
      %2358 = vmatprep.mubr.bf16.mxu0 0
      %2359 = vmatmul.mubr.bf16.gmra.mxu0 %v2211
      %v2360 = vpop.f32.mrf.mxu0
      %v2361 = vadd.f32 0.0, %v2360
      %v2362 = vpop.f32.mrf.mxu0
      %v2363 = vpop.f32.mrf.mxu0
      %v2364 = vadd.f32 0.0, %v2363
      %v2365 = vpop.f32.mrf.mxu0
      %2366 = vmatprep.mubr.bf16.mxu0 0
      %2367 = vmatmul.mubr.bf16.gmra.mxu0 %v2214
      %v2368 = vpop.f32.mrf.mxu0
      %v2369 = vadd.f32 0.0, %v2368
      %v2370 = vpop.f32.mrf.mxu0
      %v2371 = vpop.f32.mrf.mxu0
      %v2372 = vadd.f32 0.0, %v2371
      %v2373 = vpop.f32.mrf.mxu0
      %2374 = vmatprep.mubr.bf16.mxu0 0
      %2375 = vmatmul.mubr.bf16.gmra.mxu0 %v2217
      %v2376 = vpop.f32.mrf.mxu0
      %v2377 = vadd.f32 0.0, %v2376
      %v2378 = vpop.f32.mrf.mxu0
      %v2379 = vpop.f32.mrf.mxu0
      %v2380 = vadd.f32 0.0, %v2379
      %v2381 = vpop.f32.mrf.mxu0
      %2382 = vdwg.mxu0
      %v2383 = vadd.f32 %v1604, %v2257
      %v2384 = vadd.f32 %v1607, %v2260
      %v2385 = vadd.f32 %v1612, %v2265
      %v2386 = vadd.f32 %v1615, %v2268
      %v2387 = vadd.f32 %v1620, %v2273
      %v2388 = vadd.f32 %v1623, %v2276
      %v2389 = vadd.f32 %v1628, %v2281
      %v2390 = vadd.f32 %v1631, %v2284
      %v2391 = vadd.f32 %v1636, %v2289
      %v2392 = vadd.f32 %v1639, %v2292
      %v2393 = vadd.f32 %v1644, %v2297
      %v2394 = vadd.f32 %v1647, %v2300
      %v2395 = vadd.f32 %v1652, %v2305
      %v2396 = vadd.f32 %v1655, %v2308
      %v2397 = vadd.f32 %v1660, %v2313
      %v2398 = vadd.f32 %v1663, %v2316
      %v2399 = vadd.f32 %v1668, %v2321
      %v2400 = vadd.f32 %v1671, %v2324
      %v2401 = vadd.f32 %v1676, %v2329
      %v2402 = vadd.f32 %v1679, %v2332
      %v2403 = vadd.f32 %v1684, %v2337
      %v2404 = vadd.f32 %v1687, %v2340
      %v2405 = vadd.f32 %v1692, %v2345
      %v2406 = vadd.f32 %v1695, %v2348
      %v2407 = vadd.f32 %v1700, %v2353
      %v2408 = vadd.f32 %v1703, %v2356
      %v2409 = vadd.f32 %v1708, %v2361
      %v2410 = vadd.f32 %v1711, %v2364
      %v2411 = vadd.f32 %v1716, %v2369
      %v2412 = vadd.f32 %v1719, %v2372
      %v2413 = vadd.f32 %v1724, %v2377
      %v2414 = vadd.f32 %v1727, %v2380
      %v2415 = vsel %vm313, %v2383, 0.0
      %v2416 = vsel %vm313, %v2384, 0.0
      %v2417 = vadd.f32 %v2415, %v2416
      %v2418 = vsel %vm313, %v2385, 0.0
      %v2419 = vadd.f32 %v2417, %v2418
      %v2420 = vsel %vm313, %v2386, 0.0
      %v2421 = vadd.f32 %v2419, %v2420
      %v2422 = vsel %vm313, %v2387, 0.0
      %v2423 = vadd.f32 %v2421, %v2422
      %v2424 = vsel %vm313, %v2388, 0.0
      %v2425 = vadd.f32 %v2423, %v2424
      %v2426 = vsel %vm313, %v2389, 0.0
      %v2427 = vadd.f32 %v2425, %v2426
      %v2428 = vsel %vm313, %v2390, 0.0
      %v2429 = vadd.f32 %v2427, %v2428
      %v2430 = vsel %vm313, %v2391, 0.0
      %v2431 = vadd.f32 %v2429, %v2430
      %v2432 = vsel %vm313, %v2392, 0.0
      %v2433 = vadd.f32 %v2431, %v2432
      %v2434 = vsel %vm313, %v2393, 0.0
      %v2435 = vadd.f32 %v2433, %v2434
      %v2436 = vsel %vm313, %v2394, 0.0
      %v2437 = vadd.f32 %v2435, %v2436
      %v2438 = vsel %vm313, %v2395, 0.0
      %v2439 = vadd.f32 %v2437, %v2438
      %v2440 = vsel %vm313, %v2396, 0.0
      %v2441 = vadd.f32 %v2439, %v2440
      %v2442 = vsel %vm313, %v2397, 0.0
      %v2443 = vadd.f32 %v2441, %v2442
      %v2444 = vsel %vm313, %v2398, 0.0
      %v2445 = vadd.f32 %v2443, %v2444
      %v2446 = vsel %vm313, %v2399, 0.0
      %v2447 = vadd.f32 %v2445, %v2446
      %v2448 = vsel %vm313, %v2400, 0.0
      %v2449 = vadd.f32 %v2447, %v2448
      %v2450 = vsel %vm313, %v2401, 0.0
      %v2451 = vadd.f32 %v2449, %v2450
      %v2452 = vsel %vm313, %v2402, 0.0
      %v2453 = vadd.f32 %v2451, %v2452
      %v2454 = vsel %vm313, %v2403, 0.0
      %v2455 = vadd.f32 %v2453, %v2454
      %v2456 = vsel %vm313, %v2404, 0.0
      %v2457 = vadd.f32 %v2455, %v2456
      %v2458 = vsel %vm313, %v2405, 0.0
      %v2459 = vadd.f32 %v2457, %v2458
      %v2460 = vsel %vm313, %v2406, 0.0
      %v2461 = vadd.f32 %v2459, %v2460
      %v2462 = vsel %vm313, %v2407, 0.0
      %v2463 = vadd.f32 %v2461, %v2462
      %v2464 = vsel %vm313, %v2408, 0.0
      %v2465 = vadd.f32 %v2463, %v2464
      %v2466 = vsel %vm313, %v2409, 0.0
      %v2467 = vadd.f32 %v2465, %v2466
      %v2468 = vsel %vm313, %v2410, 0.0
      %v2469 = vadd.f32 %v2467, %v2468
      %v2470 = vsel %vm313, %v2411, 0.0
      %v2471 = vadd.f32 %v2469, %v2470
      %v2472 = vsel %vm313, %v2412, 0.0
      %v2473 = vadd.f32 %v2471, %v2472
      %v2474 = vsel %vm313, %v2413, 0.0
      %v2475 = vadd.f32 %v2473, %v2474
      %v2476 = vsel %vm313, %v2414, 0.0
      %v2477 = vadd.f32 %v2475, %v2476
      %v2478 = vrot.slane %v2477, 4
      %v2479 = vadd.f32 %v2477, %v2478
      %v2480 = vrot.slane %v2479, 2
      %v2481 = vadd.f32 %v2479, %v2480
      %v2482 = vrot.slane %v2481, 1
      %v2483 = vadd.f32 %v2481, %v2482
      %v2484 = vrcp.pop 256.0
      %v2485 = vmul.f32 %v2483, %v2484
      %v2486 = vmul.f32 %v2383, %v2383
      %v2487 = vmul.f32 %v2384, %v2384
      %v2488 = vmul.f32 %v2385, %v2385
      %v2489 = vmul.f32 %v2386, %v2386
      %v2490 = vmul.f32 %v2387, %v2387
      %v2491 = vmul.f32 %v2388, %v2388
      %v2492 = vmul.f32 %v2389, %v2389
      %v2493 = vmul.f32 %v2390, %v2390
      %v2494 = vmul.f32 %v2391, %v2391
      %v2495 = vmul.f32 %v2392, %v2392
      %v2496 = vmul.f32 %v2393, %v2393
      %v2497 = vmul.f32 %v2394, %v2394
      %v2498 = vmul.f32 %v2395, %v2395
      %v2499 = vmul.f32 %v2396, %v2396
      %v2500 = vmul.f32 %v2397, %v2397
      %v2501 = vmul.f32 %v2398, %v2398
      %v2502 = vmul.f32 %v2399, %v2399
      %v2503 = vmul.f32 %v2400, %v2400
      %v2504 = vmul.f32 %v2401, %v2401
      %v2505 = vmul.f32 %v2402, %v2402
      %v2506 = vmul.f32 %v2403, %v2403
      %v2507 = vmul.f32 %v2404, %v2404
      %v2508 = vmul.f32 %v2405, %v2405
      %v2509 = vmul.f32 %v2406, %v2406
      %v2510 = vmul.f32 %v2407, %v2407
      %v2511 = vmul.f32 %v2408, %v2408
      %v2512 = vmul.f32 %v2409, %v2409
      %v2513 = vmul.f32 %v2410, %v2410
      %v2514 = vmul.f32 %v2411, %v2411
      %v2515 = vmul.f32 %v2412, %v2412
      %v2516 = vmul.f32 %v2413, %v2413
      %v2517 = vmul.f32 %v2414, %v2414
      %v2518 = vsel %vm313, %v2486, 0.0
      %v2519 = vsel %vm313, %v2487, 0.0
      %v2520 = vadd.f32 %v2518, %v2519
      %v2521 = vsel %vm313, %v2488, 0.0
      %v2522 = vadd.f32 %v2520, %v2521
      %v2523 = vsel %vm313, %v2489, 0.0
      %v2524 = vadd.f32 %v2522, %v2523
      %v2525 = vsel %vm313, %v2490, 0.0
      %v2526 = vadd.f32 %v2524, %v2525
      %v2527 = vsel %vm313, %v2491, 0.0
      %v2528 = vadd.f32 %v2526, %v2527
      %v2529 = vsel %vm313, %v2492, 0.0
      %v2530 = vadd.f32 %v2528, %v2529
      %v2531 = vsel %vm313, %v2493, 0.0
      %v2532 = vadd.f32 %v2530, %v2531
      %v2533 = vsel %vm313, %v2494, 0.0
      %v2534 = vadd.f32 %v2532, %v2533
      %v2535 = vsel %vm313, %v2495, 0.0
      %v2536 = vadd.f32 %v2534, %v2535
      %v2537 = vsel %vm313, %v2496, 0.0
      %v2538 = vadd.f32 %v2536, %v2537
      %v2539 = vsel %vm313, %v2497, 0.0
      %v2540 = vadd.f32 %v2538, %v2539
      %v2541 = vsel %vm313, %v2498, 0.0
      %v2542 = vadd.f32 %v2540, %v2541
      %v2543 = vsel %vm313, %v2499, 0.0
      %v2544 = vadd.f32 %v2542, %v2543
      %v2545 = vsel %vm313, %v2500, 0.0
      %v2546 = vadd.f32 %v2544, %v2545
      %v2547 = vsel %vm313, %v2501, 0.0
      %v2548 = vadd.f32 %v2546, %v2547
      %v2549 = vsel %vm313, %v2502, 0.0
      %v2550 = vadd.f32 %v2548, %v2549
      %v2551 = vsel %vm313, %v2503, 0.0
      %v2552 = vadd.f32 %v2550, %v2551
      %v2553 = vsel %vm313, %v2504, 0.0
      %v2554 = vadd.f32 %v2552, %v2553
      %v2555 = vsel %vm313, %v2505, 0.0
      %v2556 = vadd.f32 %v2554, %v2555
      %v2557 = vsel %vm313, %v2506, 0.0
      %v2558 = vadd.f32 %v2556, %v2557
      %v2559 = vsel %vm313, %v2507, 0.0
      %v2560 = vadd.f32 %v2558, %v2559
      %v2561 = vsel %vm313, %v2508, 0.0
      %v2562 = vadd.f32 %v2560, %v2561
      %v2563 = vsel %vm313, %v2509, 0.0
      %v2564 = vadd.f32 %v2562, %v2563
      %v2565 = vsel %vm313, %v2510, 0.0
      %v2566 = vadd.f32 %v2564, %v2565
      %v2567 = vsel %vm313, %v2511, 0.0
      %v2568 = vadd.f32 %v2566, %v2567
      %v2569 = vsel %vm313, %v2512, 0.0
      %v2570 = vadd.f32 %v2568, %v2569
      %v2571 = vsel %vm313, %v2513, 0.0
      %v2572 = vadd.f32 %v2570, %v2571
      %v2573 = vsel %vm313, %v2514, 0.0
      %v2574 = vadd.f32 %v2572, %v2573
      %v2575 = vsel %vm313, %v2515, 0.0
      %v2576 = vadd.f32 %v2574, %v2575
      %v2577 = vsel %vm313, %v2516, 0.0
      %v2578 = vadd.f32 %v2576, %v2577
      %v2579 = vsel %vm313, %v2517, 0.0
      %v2580 = vadd.f32 %v2578, %v2579
      %v2581 = vrot.slane %v2580, 4
      %v2582 = vadd.f32 %v2580, %v2581
      %v2583 = vrot.slane %v2582, 2
      %v2584 = vadd.f32 %v2582, %v2583
      %v2585 = vrot.slane %v2584, 1
      %v2586 = vadd.f32 %v2584, %v2585
      %v2587 = vmul.f32 %v2586, %v2484
      %v2588 = vmul.f32 %v2485, %v2485
      %v2589 = vsub.f32 %v2587, %v2588
      %v2590 = vld [vmem:[%s2] sm:$0x1]
      %v2591 = vadd.f32 %v2589, 1e-05
      %v2592 = vrsqrt.pop %v2591
      %v2593 = vmul.f32 %v2590, %v2592
      %v2594 = vld [vmem:[%s3] sm:$0x1]
      %v2595 = vmul.f32 %v2485, %v2593
      %v2596 = vsub.f32 %v2594, %v2595
      %v2598 = vlaneseq
      %v2599 = vshrl.u32 %v2598, 7
      %v2600 = vsub.s32 0, %v2599
      %v2601 = vrot.slane %v2593, %v2600
      %v2603 = vmul.f32 %v2383, %v2601
      %v2604 = vmul.f32 %v2384, %v2601
      %v2605 = vmul.f32 %v2385, %v2601
      %v2606 = vmul.f32 %v2386, %v2601
      %v2607 = vmul.f32 %v2387, %v2601
      %v2608 = vmul.f32 %v2388, %v2601
      %v2609 = vmul.f32 %v2389, %v2601
      %v2610 = vmul.f32 %v2390, %v2601
      %v2611 = vmul.f32 %v2391, %v2601
      %v2612 = vmul.f32 %v2392, %v2601
      %v2613 = vmul.f32 %v2393, %v2601
      %v2614 = vmul.f32 %v2394, %v2601
      %v2615 = vmul.f32 %v2395, %v2601
      %v2616 = vmul.f32 %v2396, %v2601
      %v2617 = vmul.f32 %v2397, %v2601
      %v2618 = vmul.f32 %v2398, %v2601
      %v2619 = vmul.f32 %v2399, %v2601
      %v2620 = vmul.f32 %v2400, %v2601
      %v2621 = vmul.f32 %v2401, %v2601
      %v2622 = vmul.f32 %v2402, %v2601
      %v2623 = vmul.f32 %v2403, %v2601
      %v2624 = vmul.f32 %v2404, %v2601
      %v2625 = vmul.f32 %v2405, %v2601
      %v2626 = vmul.f32 %v2406, %v2601
      %v2627 = vmul.f32 %v2407, %v2601
      %v2628 = vmul.f32 %v2408, %v2601
      %v2629 = vmul.f32 %v2409, %v2601
      %v2630 = vmul.f32 %v2410, %v2601
      %v2631 = vmul.f32 %v2411, %v2601
      %v2632 = vmul.f32 %v2412, %v2601
      %v2633 = vmul.f32 %v2413, %v2601
      %v2634 = vmul.f32 %v2414, %v2601
      %v2636 = vlaneseq
      %v2637 = vshrl.u32 %v2636, 7
      %v2638 = vsub.s32 0, %v2637
      %v2639 = vrot.slane %v2596, %v2638
      %v2641 = vadd.f32 %v2603, %v2639
      %v2642 = vadd.f32 %v2604, %v2639
      %v2643 = vadd.f32 %v2605, %v2639
      %v2644 = vadd.f32 %v2606, %v2639
      %v2645 = vadd.f32 %v2607, %v2639
      %v2646 = vadd.f32 %v2608, %v2639
      %v2647 = vadd.f32 %v2609, %v2639
      %v2648 = vadd.f32 %v2610, %v2639
      %v2649 = vadd.f32 %v2611, %v2639
      %v2650 = vadd.f32 %v2612, %v2639
      %v2651 = vadd.f32 %v2613, %v2639
      %v2652 = vadd.f32 %v2614, %v2639
      %v2653 = vadd.f32 %v2615, %v2639
      %v2654 = vadd.f32 %v2616, %v2639
      %v2655 = vadd.f32 %v2617, %v2639
      %v2656 = vadd.f32 %v2618, %v2639
      %v2657 = vadd.f32 %v2619, %v2639
      %v2658 = vadd.f32 %v2620, %v2639
      %v2659 = vadd.f32 %v2621, %v2639
      %v2660 = vadd.f32 %v2622, %v2639
      %v2661 = vadd.f32 %v2623, %v2639
      %v2662 = vadd.f32 %v2624, %v2639
      %v2663 = vadd.f32 %v2625, %v2639
      %v2664 = vadd.f32 %v2626, %v2639
      %v2665 = vadd.f32 %v2627, %v2639
      %v2666 = vadd.f32 %v2628, %v2639
      %v2667 = vadd.f32 %v2629, %v2639
      %v2668 = vadd.f32 %v2630, %v2639
      %v2669 = vadd.f32 %v2631, %v2639
      %v2670 = vadd.f32 %v2632, %v2639
      %v2671 = vadd.f32 %v2633, %v2639
      %v2672 = vadd.f32 %v2634, %v2639
      %v2673 = vmax.f32 %v2641, 0.0
      %v2674 = vmax.f32 %v2642, 0.0
      %v2675 = vmax.f32 %v2643, 0.0
      %v2676 = vmax.f32 %v2644, 0.0
      %v2677 = vmax.f32 %v2645, 0.0
      %v2678 = vmax.f32 %v2646, 0.0
      %v2679 = vmax.f32 %v2647, 0.0
      %v2680 = vmax.f32 %v2648, 0.0
      %v2681 = vmax.f32 %v2649, 0.0
      %v2682 = vmax.f32 %v2650, 0.0
      %v2683 = vmax.f32 %v2651, 0.0
      %v2684 = vmax.f32 %v2652, 0.0
      %v2685 = vmax.f32 %v2653, 0.0
      %v2686 = vmax.f32 %v2654, 0.0
      %v2687 = vmax.f32 %v2655, 0.0
      %v2688 = vmax.f32 %v2656, 0.0
      %v2689 = vmax.f32 %v2657, 0.0
      %v2690 = vmax.f32 %v2658, 0.0
      %v2691 = vmax.f32 %v2659, 0.0
      %v2692 = vmax.f32 %v2660, 0.0
      %v2693 = vmax.f32 %v2661, 0.0
      %v2694 = vmax.f32 %v2662, 0.0
      %v2695 = vmax.f32 %v2663, 0.0
      %v2696 = vmax.f32 %v2664, 0.0
      %v2697 = vmax.f32 %v2665, 0.0
      %v2698 = vmax.f32 %v2666, 0.0
      %v2699 = vmax.f32 %v2667, 0.0
      %v2700 = vmax.f32 %v2668, 0.0
      %v2701 = vmax.f32 %v2669, 0.0
      %v2702 = vmax.f32 %v2670, 0.0
      %v2703 = vmax.f32 %v2671, 0.0
      %v2704 = vmax.f32 %v2672, 0.0
      %2705 = vst.msk [vmem:[%s312 + $0x8] sm:$0xff] %vm313, %v2673
      %2706 = vst.msk [vmem:[%s312 + $0x10] sm:$0xff] %vm313, %v2674
      %2707 = vst.msk [vmem:[%s312 + $0x28] sm:$0xff] %vm313, %v2675
      %2708 = vst.msk [vmem:[%s312 + $0x30] sm:$0xff] %vm313, %v2676
      %2709 = vst.msk [vmem:[%s312 + $0x48] sm:$0xff] %vm313, %v2677
      %2710 = vst.msk [vmem:[%s312 + $0x50] sm:$0xff] %vm313, %v2678
      %2711 = vst.msk [vmem:[%s312 + $0x68] sm:$0xff] %vm313, %v2679
      %2712 = vst.msk [vmem:[%s312 + $0x70] sm:$0xff] %vm313, %v2680
      %2713 = vst.msk [vmem:[%s312 + $0x88] sm:$0xff] %vm313, %v2681
      %2714 = vst.msk [vmem:[%s312 + $0x90] sm:$0xff] %vm313, %v2682
      %2715 = vst.msk [vmem:[%s312 + $0xa8] sm:$0xff] %vm313, %v2683
      %2716 = vst.msk [vmem:[%s312 + $0xb0] sm:$0xff] %vm313, %v2684
      %2717 = vst.msk [vmem:[%s312 + $0xc8] sm:$0xff] %vm313, %v2685
      %2718 = vst.msk [vmem:[%s312 + $0xd0] sm:$0xff] %vm313, %v2686
      %2719 = vst.msk [vmem:[%s312 + $0xe8] sm:$0xff] %vm313, %v2687
      %2720 = vst.msk [vmem:[%s312 + $0xf0] sm:$0xff] %vm313, %v2688
      %2721 = vst.msk [vmem:[%s312 + $0x108] sm:$0xff] %vm313, %v2689
      %2722 = vst.msk [vmem:[%s312 + $0x110] sm:$0xff] %vm313, %v2690
      %2723 = vst.msk [vmem:[%s312 + $0x128] sm:$0xff] %vm313, %v2691
      %2724 = vst.msk [vmem:[%s312 + $0x130] sm:$0xff] %vm313, %v2692
      %2725 = vst.msk [vmem:[%s312 + $0x148] sm:$0xff] %vm313, %v2693
      %2726 = vst.msk [vmem:[%s312 + $0x150] sm:$0xff] %vm313, %v2694
      %2727 = vst.msk [vmem:[%s312 + $0x168] sm:$0xff] %vm313, %v2695
      %2728 = vst.msk [vmem:[%s312 + $0x170] sm:$0xff] %vm313, %v2696
      %2729 = vst.msk [vmem:[%s312 + $0x188] sm:$0xff] %vm313, %v2697
      %2730 = vst.msk [vmem:[%s312 + $0x190] sm:$0xff] %vm313, %v2698
      %2731 = vst.msk [vmem:[%s312 + $0x1a8] sm:$0xff] %vm313, %v2699
      %2732 = vst.msk [vmem:[%s312 + $0x1b0] sm:$0xff] %vm313, %v2700
      %2733 = vst.msk [vmem:[%s312 + $0x1c8] sm:$0xff] %vm313, %v2701
      %2734 = vst.msk [vmem:[%s312 + $0x1d0] sm:$0xff] %vm313, %v2702
      %2735 = vst.msk [vmem:[%s312 + $0x1e8] sm:$0xff] %vm313, %v2703
      %2736 = vst.msk [vmem:[%s312 + $0x1f0] sm:$0xff] %vm313, %v2704
      %2737 = vst.msk [vmem:[#allocation2 + $0x8] sm:$0xff] %vm313, %v2675
      %2738 = vst.msk [vmem:[#allocation2 + $0x10] sm:$0xff] %vm313, %v2676
      %2739 = vst.msk [vmem:[%s348 + $0x8] sm:$0xff] %vm313, %v2701
      %2740 = vst.msk [vmem:[%s348 + $0x10] sm:$0xff] %vm313, %v2702
      %v2741 = vld [vmem:[#allocation2 + $0x9] sm:$0x1]
      %v2742 = vld [vmem:[#allocation2 + $0x29] sm:$0x1]
      %v2743 = vld [vmem:[#allocation2 + $0x49] sm:$0x1]
      %v2744 = vld [vmem:[#allocation2 + $0x69] sm:$0x1]
      %v2745 = vld [vmem:[#allocation2 + $0x89] sm:$0x1]
      %v2746 = vld [vmem:[#allocation2 + $0xa9] sm:$0x1]
      %v2747 = vld [vmem:[#allocation2 + $0xc9] sm:$0x1]
      %v2748 = vld [vmem:[#allocation2 + $0xe9] sm:$0x1]
      %v2749 = vld [vmem:[#allocation2 + $0x109] sm:$0x1]
      %v2750 = vld [vmem:[#allocation2 + $0x129] sm:$0x1]
      %v2751 = vld [vmem:[#allocation2 + $0x149] sm:$0x1]
      %v2752 = vld [vmem:[#allocation2 + $0x169] sm:$0x1]
      %v2753 = vld [vmem:[#allocation2 + $0x189] sm:$0x1]
      %v2754 = vld [vmem:[#allocation2 + $0x1a9] sm:$0x1]
      %v2755 = vld [vmem:[#allocation2 + $0x1c9] sm:$0x1]
      %v2756 = vld [vmem:[#allocation2 + $0x1e9] sm:$0x1]
      %v2757 = vld [vmem:[#allocation2 + $0x209] sm:$0x1]
      %v2758 = vld [vmem:[#allocation2 + $0x229] sm:$0x1]
      %2759 = vst.msk [vmem:[#allocation2 + $0x7] sm:$0x1] %vm369, %v2741
      %2760 = vst.msk [vmem:[#allocation2 + $0x27] sm:$0x1] %vm369, %v2742
      %2761 = vst.msk [vmem:[#allocation2 + $0x47] sm:$0x1] %vm369, %v2743
      %2762 = vst.msk [vmem:[#allocation2 + $0x67] sm:$0x1] %vm369, %v2744
      %2763 = vst.msk [vmem:[#allocation2 + $0x87] sm:$0x1] %vm369, %v2745
      %2764 = vst.msk [vmem:[#allocation2 + $0xa7] sm:$0x1] %vm369, %v2746
      %2765 = vst.msk [vmem:[#allocation2 + $0xc7] sm:$0x1] %vm369, %v2747
      %2766 = vst.msk [vmem:[#allocation2 + $0xe7] sm:$0x1] %vm369, %v2748
      %2767 = vst.msk [vmem:[#allocation2 + $0x107] sm:$0x1] %vm369, %v2749
      %2768 = vst.msk [vmem:[#allocation2 + $0x127] sm:$0x1] %vm369, %v2750
      %2769 = vst.msk [vmem:[#allocation2 + $0x147] sm:$0x1] %vm369, %v2751
      %2770 = vst.msk [vmem:[#allocation2 + $0x167] sm:$0x1] %vm369, %v2752
      %2771 = vst.msk [vmem:[#allocation2 + $0x187] sm:$0x1] %vm369, %v2753
      %2772 = vst.msk [vmem:[#allocation2 + $0x1a7] sm:$0x1] %vm369, %v2754
      %2773 = vst.msk [vmem:[#allocation2 + $0x1c7] sm:$0x1] %vm369, %v2755
      %2774 = vst.msk [vmem:[#allocation2 + $0x1e7] sm:$0x1] %vm369, %v2756
      %2775 = vst.msk [vmem:[#allocation2 + $0x207] sm:$0x1] %vm369, %v2757
      %2776 = vst.msk [vmem:[#allocation2 + $0x227] sm:$0x1] %vm369, %v2758
      %v2777 = vld [vmem:[#allocation2 + $0x16] sm:$0x1]
      %v2778 = vld [vmem:[#allocation2 + $0x36] sm:$0x1]
      %v2779 = vld [vmem:[#allocation2 + $0x56] sm:$0x1]
      %v2780 = vld [vmem:[#allocation2 + $0x76] sm:$0x1]
      %v2781 = vld [vmem:[#allocation2 + $0x96] sm:$0x1]
      %v2782 = vld [vmem:[#allocation2 + $0xb6] sm:$0x1]
      %v2783 = vld [vmem:[#allocation2 + $0xd6] sm:$0x1]
      %v2784 = vld [vmem:[#allocation2 + $0xf6] sm:$0x1]
      %v2785 = vld [vmem:[#allocation2 + $0x116] sm:$0x1]
      %v2786 = vld [vmem:[#allocation2 + $0x136] sm:$0x1]
      %v2787 = vld [vmem:[#allocation2 + $0x156] sm:$0x1]
      %v2788 = vld [vmem:[#allocation2 + $0x176] sm:$0x1]
      %v2789 = vld [vmem:[#allocation2 + $0x196] sm:$0x1]
      %v2790 = vld [vmem:[#allocation2 + $0x1b6] sm:$0x1]
      %v2791 = vld [vmem:[#allocation2 + $0x1d6] sm:$0x1]
      %v2792 = vld [vmem:[#allocation2 + $0x1f6] sm:$0x1]
      %v2793 = vld [vmem:[#allocation2 + $0x216] sm:$0x1]
      %v2794 = vld [vmem:[#allocation2 + $0x236] sm:$0x1]
      %2795 = vst.msk [vmem:[#allocation2 + $0x18] sm:$0x1] %vm369, %v2777
      %2796 = vst.msk [vmem:[#allocation2 + $0x38] sm:$0x1] %vm369, %v2778
      %2797 = vst.msk [vmem:[#allocation2 + $0x58] sm:$0x1] %vm369, %v2779
      %2798 = vst.msk [vmem:[#allocation2 + $0x78] sm:$0x1] %vm369, %v2780
      %2799 = vst.msk [vmem:[#allocation2 + $0x98] sm:$0x1] %vm369, %v2781
      %2800 = vst.msk [vmem:[#allocation2 + $0xb8] sm:$0x1] %vm369, %v2782
      %2801 = vst.msk [vmem:[#allocation2 + $0xd8] sm:$0x1] %vm369, %v2783
      %2802 = vst.msk [vmem:[#allocation2 + $0xf8] sm:$0x1] %vm369, %v2784
      %2803 = vst.msk [vmem:[#allocation2 + $0x118] sm:$0x1] %vm369, %v2785
      %2804 = vst.msk [vmem:[#allocation2 + $0x138] sm:$0x1] %vm369, %v2786
      %2805 = vst.msk [vmem:[#allocation2 + $0x158] sm:$0x1] %vm369, %v2787
      %2806 = vst.msk [vmem:[#allocation2 + $0x178] sm:$0x1] %vm369, %v2788
      %2807 = vst.msk [vmem:[#allocation2 + $0x198] sm:$0x1] %vm369, %v2789
      %2808 = vst.msk [vmem:[#allocation2 + $0x1b8] sm:$0x1] %vm369, %v2790
      %2809 = vst.msk [vmem:[#allocation2 + $0x1d8] sm:$0x1] %vm369, %v2791
      %2810 = vst.msk [vmem:[#allocation2 + $0x1f8] sm:$0x1] %vm369, %v2792
      %2811 = vst.msk [vmem:[#allocation2 + $0x218] sm:$0x1] %vm369, %v2793
      %2812 = vst.msk [vmem:[#allocation2 + $0x238] sm:$0x1] %vm369, %v2794
      %v2813 = vld [vmem:[#allocation2 + $0x7] sm:$0xff]
      %v2814 = vld [vmem:[#allocation2 + $0xf] sm:$0xff]
      %v2815 = vld [vmem:[#allocation2 + $0x27] sm:$0xff]
      %v2816 = vld [vmem:[#allocation2 + $0x2f] sm:$0xff]
      %v2817 = vld [vmem:[#allocation2 + $0x47] sm:$0xff]
      %v2818 = vld [vmem:[#allocation2 + $0x4f] sm:$0xff]
      %v2819 = vld [vmem:[#allocation2 + $0x67] sm:$0xff]
      %v2820 = vld [vmem:[#allocation2 + $0x6f] sm:$0xff]
      %v2821 = vld [vmem:[#allocation2 + $0x87] sm:$0xff]
      %v2822 = vld [vmem:[#allocation2 + $0x8f] sm:$0xff]
      %v2823 = vld [vmem:[#allocation2 + $0xa7] sm:$0xff]
      %v2824 = vld [vmem:[#allocation2 + $0xaf] sm:$0xff]
      %v2825 = vld [vmem:[#allocation2 + $0xc7] sm:$0xff]
      %v2826 = vld [vmem:[#allocation2 + $0xcf] sm:$0xff]
      %v2827 = vld [vmem:[#allocation2 + $0xe7] sm:$0xff]
      %v2828 = vld [vmem:[#allocation2 + $0xef] sm:$0xff]
      %v2829 = vld [vmem:[#allocation2 + $0x107] sm:$0xff]
      %v2830 = vld [vmem:[#allocation2 + $0x10f] sm:$0xff]
      %v2831 = vld [vmem:[#allocation2 + $0x127] sm:$0xff]
      %v2832 = vld [vmem:[#allocation2 + $0x12f] sm:$0xff]
      %v2833 = vld [vmem:[#allocation2 + $0x147] sm:$0xff]
      %v2834 = vld [vmem:[#allocation2 + $0x14f] sm:$0xff]
      %v2835 = vld [vmem:[#allocation2 + $0x167] sm:$0xff]
      %v2836 = vld [vmem:[#allocation2 + $0x16f] sm:$0xff]
      %v2837 = vld [vmem:[#allocation2 + $0x187] sm:$0xff]
      %v2838 = vld [vmem:[#allocation2 + $0x18f] sm:$0xff]
      %v2839 = vld [vmem:[#allocation2 + $0x1a7] sm:$0xff]
      %v2840 = vld [vmem:[#allocation2 + $0x1af] sm:$0xff]
      %v2841 = vld [vmem:[#allocation2 + $0x1c7] sm:$0xff]
      %v2842 = vld [vmem:[#allocation2 + $0x1cf] sm:$0xff]
      %v2843 = vld [vmem:[#allocation2 + $0x1e7] sm:$0xff]
      %v2844 = vld [vmem:[#allocation2 + $0x1ef] sm:$0xff]
      %v2845 = vld [vmem:[#allocation2 + $0x8] sm:$0xff]
      %v2846 = vld [vmem:[#allocation2 + $0x10] sm:$0xff]
      %v2847 = vld [vmem:[#allocation2 + $0x28] sm:$0xff]
      %v2848 = vld [vmem:[#allocation2 + $0x30] sm:$0xff]
      %v2849 = vld [vmem:[#allocation2 + $0x48] sm:$0xff]
      %v2850 = vld [vmem:[#allocation2 + $0x50] sm:$0xff]
      %v2851 = vld [vmem:[#allocation2 + $0x68] sm:$0xff]
      %v2852 = vld [vmem:[#allocation2 + $0x70] sm:$0xff]
      %v2853 = vld [vmem:[#allocation2 + $0x88] sm:$0xff]
      %v2854 = vld [vmem:[#allocation2 + $0x90] sm:$0xff]
      %v2855 = vld [vmem:[#allocation2 + $0xa8] sm:$0xff]
      %v2856 = vld [vmem:[#allocation2 + $0xb0] sm:$0xff]
      %v2857 = vld [vmem:[#allocation2 + $0xc8] sm:$0xff]
      %v2858 = vld [vmem:[#allocation2 + $0xd0] sm:$0xff]
      %v2859 = vld [vmem:[#allocation2 + $0xe8] sm:$0xff]
      %v2860 = vld [vmem:[#allocation2 + $0xf0] sm:$0xff]
      %v2861 = vld [vmem:[#allocation2 + $0x108] sm:$0xff]
      %v2862 = vld [vmem:[#allocation2 + $0x110] sm:$0xff]
      %v2863 = vld [vmem:[#allocation2 + $0x128] sm:$0xff]
      %v2864 = vld [vmem:[#allocation2 + $0x130] sm:$0xff]
      %v2865 = vld [vmem:[#allocation2 + $0x148] sm:$0xff]
      %v2866 = vld [vmem:[#allocation2 + $0x150] sm:$0xff]
      %v2867 = vld [vmem:[#allocation2 + $0x168] sm:$0xff]
      %v2868 = vld [vmem:[#allocation2 + $0x170] sm:$0xff]
      %v2869 = vld [vmem:[#allocation2 + $0x188] sm:$0xff]
      %v2870 = vld [vmem:[#allocation2 + $0x190] sm:$0xff]
      %v2871 = vld [vmem:[#allocation2 + $0x1a8] sm:$0xff]
      %v2872 = vld [vmem:[#allocation2 + $0x1b0] sm:$0xff]
      %v2873 = vld [vmem:[#allocation2 + $0x1c8] sm:$0xff]
      %v2874 = vld [vmem:[#allocation2 + $0x1d0] sm:$0xff]
      %v2875 = vld [vmem:[#allocation2 + $0x1e8] sm:$0xff]
      %v2876 = vld [vmem:[#allocation2 + $0x1f0] sm:$0xff]
      %v2877 = vld [vmem:[#allocation2 + $0x9] sm:$0xff]
      %v2878 = vld [vmem:[#allocation2 + $0x11] sm:$0xff]
      %v2879 = vld [vmem:[#allocation2 + $0x29] sm:$0xff]
      %v2880 = vld [vmem:[#allocation2 + $0x31] sm:$0xff]
      %v2881 = vld [vmem:[#allocation2 + $0x49] sm:$0xff]
      %v2882 = vld [vmem:[#allocation2 + $0x51] sm:$0xff]
      %v2883 = vld [vmem:[#allocation2 + $0x69] sm:$0xff]
      %v2884 = vld [vmem:[#allocation2 + $0x71] sm:$0xff]
      %v2885 = vld [vmem:[#allocation2 + $0x89] sm:$0xff]
      %v2886 = vld [vmem:[#allocation2 + $0x91] sm:$0xff]
      %v2887 = vld [vmem:[#allocation2 + $0xa9] sm:$0xff]
      %v2888 = vld [vmem:[#allocation2 + $0xb1] sm:$0xff]
      %v2889 = vld [vmem:[#allocation2 + $0xc9] sm:$0xff]
      %v2890 = vld [vmem:[#allocation2 + $0xd1] sm:$0xff]
      %v2891 = vld [vmem:[#allocation2 + $0xe9] sm:$0xff]
      %v2892 = vld [vmem:[#allocation2 + $0xf1] sm:$0xff]
      %v2893 = vld [vmem:[#allocation2 + $0x109] sm:$0xff]
      %v2894 = vld [vmem:[#allocation2 + $0x111] sm:$0xff]
      %v2895 = vld [vmem:[#allocation2 + $0x129] sm:$0xff]
      %v2896 = vld [vmem:[#allocation2 + $0x131] sm:$0xff]
      %v2897 = vld [vmem:[#allocation2 + $0x149] sm:$0xff]
      %v2898 = vld [vmem:[#allocation2 + $0x151] sm:$0xff]
      %v2899 = vld [vmem:[#allocation2 + $0x169] sm:$0xff]
      %v2900 = vld [vmem:[#allocation2 + $0x171] sm:$0xff]
      %v2901 = vld [vmem:[#allocation2 + $0x189] sm:$0xff]
      %v2902 = vld [vmem:[#allocation2 + $0x191] sm:$0xff]
      %v2903 = vld [vmem:[#allocation2 + $0x1a9] sm:$0xff]
      %v2904 = vld [vmem:[#allocation2 + $0x1b1] sm:$0xff]
      %v2905 = vld [vmem:[#allocation2 + $0x1c9] sm:$0xff]
      %v2906 = vld [vmem:[#allocation2 + $0x1d1] sm:$0xff]
      %v2907 = vld [vmem:[#allocation2 + $0x1e9] sm:$0xff]
      %v2908 = vld [vmem:[#allocation2 + $0x1f1] sm:$0xff]
      %2941 = vrot.lane.b32.xlu0 %v2845, 4
      %v2942 = vpop.permute.xlu0 %2941
      %2943 = vrot.lane.b32.xlu0 %v2846, 4
      %v2944 = vpop.permute.xlu0 %2943
      %2945 = vrot.lane.b32.xlu0 %v2847, 4
      %v2946 = vpop.permute.xlu0 %2945
      %2947 = vrot.lane.b32.xlu0 %v2848, 4
      %v2948 = vpop.permute.xlu0 %2947
      %2949 = vrot.lane.b32.xlu0 %v2849, 4
      %v2950 = vpop.permute.xlu0 %2949
      %2951 = vrot.lane.b32.xlu0 %v2850, 4
      %v2952 = vpop.permute.xlu0 %2951
      %2953 = vrot.lane.b32.xlu0 %v2851, 4
      %v2954 = vpop.permute.xlu0 %2953
      %2955 = vrot.lane.b32.xlu0 %v2852, 4
      %v2956 = vpop.permute.xlu0 %2955
      %2957 = vrot.lane.b32.xlu0 %v2853, 4
      %v2958 = vpop.permute.xlu0 %2957
      %2959 = vrot.lane.b32.xlu0 %v2854, 4
      %v2960 = vpop.permute.xlu0 %2959
      %2961 = vrot.lane.b32.xlu0 %v2855, 4
      %v2962 = vpop.permute.xlu0 %2961
      %2963 = vrot.lane.b32.xlu0 %v2856, 4
      %v2964 = vpop.permute.xlu0 %2963
      %2965 = vrot.lane.b32.xlu0 %v2857, 4
      %v2966 = vpop.permute.xlu0 %2965
      %2967 = vrot.lane.b32.xlu0 %v2858, 4
      %v2968 = vpop.permute.xlu0 %2967
      %2969 = vrot.lane.b32.xlu0 %v2859, 4
      %v2970 = vpop.permute.xlu0 %2969
      %2971 = vrot.lane.b32.xlu0 %v2860, 4
      %v2972 = vpop.permute.xlu0 %2971
      %2973 = vrot.lane.b32.xlu0 %v2861, 4
      %v2974 = vpop.permute.xlu0 %2973
      %2975 = vrot.lane.b32.xlu0 %v2862, 4
      %v2976 = vpop.permute.xlu0 %2975
      %2977 = vrot.lane.b32.xlu0 %v2863, 4
      %v2978 = vpop.permute.xlu0 %2977
      %2979 = vrot.lane.b32.xlu0 %v2864, 4
      %v2980 = vpop.permute.xlu0 %2979
      %2981 = vrot.lane.b32.xlu0 %v2865, 4
      %v2982 = vpop.permute.xlu0 %2981
      %2983 = vrot.lane.b32.xlu0 %v2866, 4
      %v2984 = vpop.permute.xlu0 %2983
      %2985 = vrot.lane.b32.xlu0 %v2867, 4
      %v2986 = vpop.permute.xlu0 %2985
      %2987 = vrot.lane.b32.xlu0 %v2868, 4
      %v2988 = vpop.permute.xlu0 %2987
      %2989 = vrot.lane.b32.xlu0 %v2869, 4
      %v2990 = vpop.permute.xlu0 %2989
      %2991 = vrot.lane.b32.xlu0 %v2870, 4
      %v2992 = vpop.permute.xlu0 %2991
      %2993 = vrot.lane.b32.xlu0 %v2871, 4
      %v2994 = vpop.permute.xlu0 %2993
      %2995 = vrot.lane.b32.xlu0 %v2872, 4
      %v2996 = vpop.permute.xlu0 %2995
      %2997 = vrot.lane.b32.xlu0 %v2873, 4
      %v2998 = vpop.permute.xlu0 %2997
      %2999 = vrot.lane.b32.xlu0 %v2874, 4
      %v3000 = vpop.permute.xlu0 %2999
      %3001 = vrot.lane.b32.xlu0 %v2875, 4
      %v3002 = vpop.permute.xlu0 %3001
      %3003 = vrot.lane.b32.xlu0 %v2876, 4
      %v3004 = vpop.permute.xlu0 %3003
      %3069 = vrot.lane.b32.xlu0 %v2877, 8
      %v3070 = vpop.permute.xlu0 %3069
      %3071 = vrot.lane.b32.xlu0 %v2878, 8
      %v3072 = vpop.permute.xlu0 %3071
      %3073 = vrot.lane.b32.xlu0 %v2879, 8
      %v3074 = vpop.permute.xlu0 %3073
      %3075 = vrot.lane.b32.xlu0 %v2880, 8
      %v3076 = vpop.permute.xlu0 %3075
      %3077 = vrot.lane.b32.xlu0 %v2881, 8
      %v3078 = vpop.permute.xlu0 %3077
      %3079 = vrot.lane.b32.xlu0 %v2882, 8
      %v3080 = vpop.permute.xlu0 %3079
      %3081 = vrot.lane.b32.xlu0 %v2883, 8
      %v3082 = vpop.permute.xlu0 %3081
      %3083 = vrot.lane.b32.xlu0 %v2884, 8
      %v3084 = vpop.permute.xlu0 %3083
      %3085 = vrot.lane.b32.xlu0 %v2885, 8
      %v3086 = vpop.permute.xlu0 %3085
      %3087 = vrot.lane.b32.xlu0 %v2886, 8
      %v3088 = vpop.permute.xlu0 %3087
      %3089 = vrot.lane.b32.xlu0 %v2887, 8
      %v3090 = vpop.permute.xlu0 %3089
      %3091 = vrot.lane.b32.xlu0 %v2888, 8
      %v3092 = vpop.permute.xlu0 %3091
      %3093 = vrot.lane.b32.xlu0 %v2889, 8
      %v3094 = vpop.permute.xlu0 %3093
      %3095 = vrot.lane.b32.xlu0 %v2890, 8
      %v3096 = vpop.permute.xlu0 %3095
      %3097 = vrot.lane.b32.xlu0 %v2891, 8
      %v3098 = vpop.permute.xlu0 %3097
      %3099 = vrot.lane.b32.xlu0 %v2892, 8
      %v3100 = vpop.permute.xlu0 %3099
      %3101 = vrot.lane.b32.xlu0 %v2893, 8
      %v3102 = vpop.permute.xlu0 %3101
      %3103 = vrot.lane.b32.xlu0 %v2894, 8
      %v3104 = vpop.permute.xlu0 %3103
      %3105 = vrot.lane.b32.xlu0 %v2895, 8
      %v3106 = vpop.permute.xlu0 %3105
      %3107 = vrot.lane.b32.xlu0 %v2896, 8
      %v3108 = vpop.permute.xlu0 %3107
      %3109 = vrot.lane.b32.xlu0 %v2897, 8
      %v3110 = vpop.permute.xlu0 %3109
      %3111 = vrot.lane.b32.xlu0 %v2898, 8
      %v3112 = vpop.permute.xlu0 %3111
      %3113 = vrot.lane.b32.xlu0 %v2899, 8
      %v3114 = vpop.permute.xlu0 %3113
      %3115 = vrot.lane.b32.xlu0 %v2900, 8
      %v3116 = vpop.permute.xlu0 %3115
      %3117 = vrot.lane.b32.xlu0 %v2901, 8
      %v3118 = vpop.permute.xlu0 %3117
      %3119 = vrot.lane.b32.xlu0 %v2902, 8
      %v3120 = vpop.permute.xlu0 %3119
      %3121 = vrot.lane.b32.xlu0 %v2903, 8
      %v3122 = vpop.permute.xlu0 %3121
      %3123 = vrot.lane.b32.xlu0 %v2904, 8
      %v3124 = vpop.permute.xlu0 %3123
      %3125 = vrot.lane.b32.xlu0 %v2905, 8
      %v3126 = vpop.permute.xlu0 %3125
      %3127 = vrot.lane.b32.xlu0 %v2906, 8
      %v3128 = vpop.permute.xlu0 %3127
      %3129 = vrot.lane.b32.xlu0 %v2907, 8
      %v3130 = vpop.permute.xlu0 %3129
      %3131 = vrot.lane.b32.xlu0 %v2908, 8
      %v3132 = vpop.permute.xlu0 %3131
      %v3165 = vsel %vm313, %v2813, %v2942
      %v3166 = vsel %vm313, %v2814, %v2944
      %v3167 = vsel %vm313, %v2815, %v2946
      %v3168 = vsel %vm313, %v2816, %v2948
      %v3169 = vsel %vm313, %v2817, %v2950
      %v3170 = vsel %vm313, %v2818, %v2952
      %v3171 = vsel %vm313, %v2819, %v2954
      %v3172 = vsel %vm313, %v2820, %v2956
      %v3173 = vsel %vm313, %v2821, %v2958
      %v3174 = vsel %vm313, %v2822, %v2960
      %v3175 = vsel %vm313, %v2823, %v2962
      %v3176 = vsel %vm313, %v2824, %v2964
      %v3177 = vsel %vm313, %v2825, %v2966
      %v3178 = vsel %vm313, %v2826, %v2968
      %v3179 = vsel %vm313, %v2827, %v2970
      %v3180 = vsel %vm313, %v2828, %v2972
      %v3181 = vsel %vm313, %v2829, %v2974
      %v3182 = vsel %vm313, %v2830, %v2976
      %v3183 = vsel %vm313, %v2831, %v2978
      %v3184 = vsel %vm313, %v2832, %v2980
      %v3185 = vsel %vm313, %v2833, %v2982
      %v3186 = vsel %vm313, %v2834, %v2984
      %v3187 = vsel %vm313, %v2835, %v2986
      %v3188 = vsel %vm313, %v2836, %v2988
      %v3189 = vsel %vm313, %v2837, %v2990
      %v3190 = vsel %vm313, %v2838, %v2992
      %v3191 = vsel %vm313, %v2839, %v2994
      %v3192 = vsel %vm313, %v2840, %v2996
      %v3193 = vsel %vm313, %v2841, %v2998
      %v3194 = vsel %vm313, %v2842, %v3000
      %v3195 = vsel %vm313, %v2843, %v3002
      %v3196 = vsel %vm313, %v2844, %v3004
      %v3197 = vsel %vm808, %v3165, %v3070
      %v3198 = vsel %vm808, %v3166, %v3072
      %v3199 = vsel %vm808, %v3167, %v3074
      %v3200 = vsel %vm808, %v3168, %v3076
      %v3201 = vsel %vm808, %v3169, %v3078
      %v3202 = vsel %vm808, %v3170, %v3080
      %v3203 = vsel %vm808, %v3171, %v3082
      %v3204 = vsel %vm808, %v3172, %v3084
      %v3205 = vsel %vm808, %v3173, %v3086
      %v3206 = vsel %vm808, %v3174, %v3088
      %v3207 = vsel %vm808, %v3175, %v3090
      %v3208 = vsel %vm808, %v3176, %v3092
      %v3209 = vsel %vm808, %v3177, %v3094
      %v3210 = vsel %vm808, %v3178, %v3096
      %v3211 = vsel %vm808, %v3179, %v3098
      %v3212 = vsel %vm808, %v3180, %v3100
      %v3213 = vsel %vm808, %v3181, %v3102
      %v3214 = vsel %vm808, %v3182, %v3104
      %v3215 = vsel %vm808, %v3183, %v3106
      %v3216 = vsel %vm808, %v3184, %v3108
      %v3217 = vsel %vm808, %v3185, %v3110
      %v3218 = vsel %vm808, %v3186, %v3112
      %v3219 = vsel %vm808, %v3187, %v3114
      %v3220 = vsel %vm808, %v3188, %v3116
      %v3221 = vsel %vm808, %v3189, %v3118
      %v3222 = vsel %vm808, %v3190, %v3120
      %v3223 = vsel %vm808, %v3191, %v3122
      %v3224 = vsel %vm808, %v3192, %v3124
      %v3225 = vsel %vm808, %v3193, %v3126
      %v3226 = vsel %vm808, %v3194, %v3128
      %v3227 = vsel %vm808, %v3195, %v3130
      %v3228 = vsel %vm808, %v3196, %v3132
      %v3229 = vpack.c.bf16 %v3198, %v3197
      %v3230 = vpack.c.bf16 %v3200, %v3199
      %v3231 = vpack.c.bf16 %v3202, %v3201
      %v3232 = vpack.c.bf16 %v3204, %v3203
      %v3233 = vpack.c.bf16 %v3206, %v3205
      %v3234 = vpack.c.bf16 %v3208, %v3207
      %v3235 = vpack.c.bf16 %v3210, %v3209
      %v3236 = vpack.c.bf16 %v3212, %v3211
      %v3237 = vpack.c.bf16 %v3214, %v3213
      %v3238 = vpack.c.bf16 %v3216, %v3215
      %v3239 = vpack.c.bf16 %v3218, %v3217
      %v3240 = vpack.c.bf16 %v3220, %v3219
      %v3241 = vpack.c.bf16 %v3222, %v3221
      %v3242 = vpack.c.bf16 %v3224, %v3223
      %v3243 = vpack.c.bf16 %v3226, %v3225
      %v3244 = vpack.c.bf16 %v3228, %v3227
      %v3245 = vld [vmem:[%s4] sm:$0xf]
      %v3246 = vld [vmem:[%s4 + $0x4] sm:$0x3]
      %v3247 = vld [vmem:[%s312 + $0x7] sm:$0xff]
      %v3248 = vld [vmem:[%s312 + $0xf] sm:$0xff]
      %v3249 = vld [vmem:[%s312 + $0x27] sm:$0xff]
      %v3250 = vld [vmem:[%s312 + $0x2f] sm:$0xff]
      %v3251 = vld [vmem:[%s312 + $0x47] sm:$0xff]
      %v3252 = vld [vmem:[%s312 + $0x4f] sm:$0xff]
      %v3253 = vld [vmem:[%s312 + $0x67] sm:$0xff]
      %v3254 = vld [vmem:[%s312 + $0x6f] sm:$0xff]
      %v3255 = vld [vmem:[%s312 + $0x87] sm:$0xff]
      %v3256 = vld [vmem:[%s312 + $0x8f] sm:$0xff]
      %v3257 = vld [vmem:[%s312 + $0xa7] sm:$0xff]
      %v3258 = vld [vmem:[%s312 + $0xaf] sm:$0xff]
      %v3259 = vld [vmem:[%s312 + $0xc7] sm:$0xff]
      %v3260 = vld [vmem:[%s312 + $0xcf] sm:$0xff]
      %v3261 = vld [vmem:[%s312 + $0xe7] sm:$0xff]
      %v3262 = vld [vmem:[%s312 + $0xef] sm:$0xff]
      %v3263 = vld [vmem:[%s312 + $0x107] sm:$0xff]
      %v3264 = vld [vmem:[%s312 + $0x10f] sm:$0xff]
      %v3265 = vld [vmem:[%s312 + $0x127] sm:$0xff]
      %v3266 = vld [vmem:[%s312 + $0x12f] sm:$0xff]
      %v3267 = vld [vmem:[%s312 + $0x147] sm:$0xff]
      %v3268 = vld [vmem:[%s312 + $0x14f] sm:$0xff]
      %v3269 = vld [vmem:[%s312 + $0x167] sm:$0xff]
      %v3270 = vld [vmem:[%s312 + $0x16f] sm:$0xff]
      %v3271 = vld [vmem:[%s312 + $0x187] sm:$0xff]
      %v3272 = vld [vmem:[%s312 + $0x18f] sm:$0xff]
      %v3273 = vld [vmem:[%s312 + $0x1a7] sm:$0xff]
      %v3274 = vld [vmem:[%s312 + $0x1af] sm:$0xff]
      %v3275 = vld [vmem:[%s312 + $0x1c7] sm:$0xff]
      %v3276 = vld [vmem:[%s312 + $0x1cf] sm:$0xff]
      %v3277 = vld [vmem:[%s312 + $0x1e7] sm:$0xff]
      %v3278 = vld [vmem:[%s312 + $0x1ef] sm:$0xff]
      %v3279 = vld [vmem:[%s312 + $0x8] sm:$0xff]
      %v3280 = vld [vmem:[%s312 + $0x10] sm:$0xff]
      %v3281 = vld [vmem:[%s312 + $0x28] sm:$0xff]
      %v3282 = vld [vmem:[%s312 + $0x30] sm:$0xff]
      %v3283 = vld [vmem:[%s312 + $0x48] sm:$0xff]
      %v3284 = vld [vmem:[%s312 + $0x50] sm:$0xff]
      %v3285 = vld [vmem:[%s312 + $0x68] sm:$0xff]
      %v3286 = vld [vmem:[%s312 + $0x70] sm:$0xff]
      %v3287 = vld [vmem:[%s312 + $0x88] sm:$0xff]
      %v3288 = vld [vmem:[%s312 + $0x90] sm:$0xff]
      %v3289 = vld [vmem:[%s312 + $0xa8] sm:$0xff]
      %v3290 = vld [vmem:[%s312 + $0xb0] sm:$0xff]
      %v3291 = vld [vmem:[%s312 + $0xc8] sm:$0xff]
      %v3292 = vld [vmem:[%s312 + $0xd0] sm:$0xff]
      %v3293 = vld [vmem:[%s312 + $0xe8] sm:$0xff]
      %v3294 = vld [vmem:[%s312 + $0xf0] sm:$0xff]
      %v3295 = vld [vmem:[%s312 + $0x108] sm:$0xff]
      %v3296 = vld [vmem:[%s312 + $0x110] sm:$0xff]
      %v3297 = vld [vmem:[%s312 + $0x128] sm:$0xff]
      %v3298 = vld [vmem:[%s312 + $0x130] sm:$0xff]
      %v3299 = vld [vmem:[%s312 + $0x148] sm:$0xff]
      %v3300 = vld [vmem:[%s312 + $0x150] sm:$0xff]
      %v3301 = vld [vmem:[%s312 + $0x168] sm:$0xff]
      %v3302 = vld [vmem:[%s312 + $0x170] sm:$0xff]
      %v3303 = vld [vmem:[%s312 + $0x188] sm:$0xff]
      %v3304 = vld [vmem:[%s312 + $0x190] sm:$0xff]
      %v3305 = vld [vmem:[%s312 + $0x1a8] sm:$0xff]
      %v3306 = vld [vmem:[%s312 + $0x1b0] sm:$0xff]
      %v3307 = vld [vmem:[%s312 + $0x1c8] sm:$0xff]
      %v3308 = vld [vmem:[%s312 + $0x1d0] sm:$0xff]
      %v3309 = vld [vmem:[%s312 + $0x1e8] sm:$0xff]
      %v3310 = vld [vmem:[%s312 + $0x1f0] sm:$0xff]
      %v3311 = vld [vmem:[%s312 + $0x9] sm:$0xff]
      %v3312 = vld [vmem:[%s312 + $0x11] sm:$0xff]
      %v3313 = vld [vmem:[%s312 + $0x29] sm:$0xff]
      %v3314 = vld [vmem:[%s312 + $0x31] sm:$0xff]
      %v3315 = vld [vmem:[%s312 + $0x49] sm:$0xff]
      %v3316 = vld [vmem:[%s312 + $0x51] sm:$0xff]
      %v3317 = vld [vmem:[%s312 + $0x69] sm:$0xff]
      %v3318 = vld [vmem:[%s312 + $0x71] sm:$0xff]
      %v3319 = vld [vmem:[%s312 + $0x89] sm:$0xff]
      %v3320 = vld [vmem:[%s312 + $0x91] sm:$0xff]
      %v3321 = vld [vmem:[%s312 + $0xa9] sm:$0xff]
      %v3322 = vld [vmem:[%s312 + $0xb1] sm:$0xff]
      %v3323 = vld [vmem:[%s312 + $0xc9] sm:$0xff]
      %v3324 = vld [vmem:[%s312 + $0xd1] sm:$0xff]
      %v3325 = vld [vmem:[%s312 + $0xe9] sm:$0xff]
      %v3326 = vld [vmem:[%s312 + $0xf1] sm:$0xff]
      %v3327 = vld [vmem:[%s312 + $0x109] sm:$0xff]
      %v3328 = vld [vmem:[%s312 + $0x111] sm:$0xff]
      %v3329 = vld [vmem:[%s312 + $0x129] sm:$0xff]
      %v3330 = vld [vmem:[%s312 + $0x131] sm:$0xff]
      %v3331 = vld [vmem:[%s312 + $0x149] sm:$0xff]
      %v3332 = vld [vmem:[%s312 + $0x151] sm:$0xff]
      %v3333 = vld [vmem:[%s312 + $0x169] sm:$0xff]
      %v3334 = vld [vmem:[%s312 + $0x171] sm:$0xff]
      %v3335 = vld [vmem:[%s312 + $0x189] sm:$0xff]
      %v3336 = vld [vmem:[%s312 + $0x191] sm:$0xff]
      %v3337 = vld [vmem:[%s312 + $0x1a9] sm:$0xff]
      %v3338 = vld [vmem:[%s312 + $0x1b1] sm:$0xff]
      %v3339 = vld [vmem:[%s312 + $0x1c9] sm:$0xff]
      %v3340 = vld [vmem:[%s312 + $0x1d1] sm:$0xff]
      %v3341 = vld [vmem:[%s312 + $0x1e9] sm:$0xff]
      %v3342 = vld [vmem:[%s312 + $0x1f1] sm:$0xff]
      %3375 = vrot.lane.b32.xlu0 %v3279, 4
      %v3376 = vpop.permute.xlu0 %3375
      %3377 = vrot.lane.b32.xlu0 %v3280, 4
      %v3378 = vpop.permute.xlu0 %3377
      %3379 = vrot.lane.b32.xlu0 %v3281, 4
      %v3380 = vpop.permute.xlu0 %3379
      %3381 = vrot.lane.b32.xlu0 %v3282, 4
      %v3382 = vpop.permute.xlu0 %3381
      %3383 = vrot.lane.b32.xlu0 %v3283, 4
      %v3384 = vpop.permute.xlu0 %3383
      %3385 = vrot.lane.b32.xlu0 %v3284, 4
      %v3386 = vpop.permute.xlu0 %3385
      %3387 = vrot.lane.b32.xlu0 %v3285, 4
      %v3388 = vpop.permute.xlu0 %3387
      %3389 = vrot.lane.b32.xlu0 %v3286, 4
      %v3390 = vpop.permute.xlu0 %3389
      %3391 = vrot.lane.b32.xlu0 %v3287, 4
      %v3392 = vpop.permute.xlu0 %3391
      %3393 = vrot.lane.b32.xlu0 %v3288, 4
      %v3394 = vpop.permute.xlu0 %3393
      %3395 = vrot.lane.b32.xlu0 %v3289, 4
      %v3396 = vpop.permute.xlu0 %3395
      %3397 = vrot.lane.b32.xlu0 %v3290, 4
      %v3398 = vpop.permute.xlu0 %3397
      %3399 = vrot.lane.b32.xlu0 %v3291, 4
      %v3400 = vpop.permute.xlu0 %3399
      %3401 = vrot.lane.b32.xlu0 %v3292, 4
      %v3402 = vpop.permute.xlu0 %3401
      %3403 = vrot.lane.b32.xlu0 %v3293, 4
      %v3404 = vpop.permute.xlu0 %3403
      %3405 = vrot.lane.b32.xlu0 %v3294, 4
      %v3406 = vpop.permute.xlu0 %3405
      %3407 = vrot.lane.b32.xlu0 %v3295, 4
      %v3408 = vpop.permute.xlu0 %3407
      %3409 = vrot.lane.b32.xlu0 %v3296, 4
      %v3410 = vpop.permute.xlu0 %3409
      %3411 = vrot.lane.b32.xlu0 %v3297, 4
      %v3412 = vpop.permute.xlu0 %3411
      %3413 = vrot.lane.b32.xlu0 %v3298, 4
      %v3414 = vpop.permute.xlu0 %3413
      %3415 = vrot.lane.b32.xlu0 %v3299, 4
      %v3416 = vpop.permute.xlu0 %3415
      %3417 = vrot.lane.b32.xlu0 %v3300, 4
      %v3418 = vpop.permute.xlu0 %3417
      %3419 = vrot.lane.b32.xlu0 %v3301, 4
      %v3420 = vpop.permute.xlu0 %3419
      %3421 = vrot.lane.b32.xlu0 %v3302, 4
      %v3422 = vpop.permute.xlu0 %3421
      %3423 = vrot.lane.b32.xlu0 %v3303, 4
      %v3424 = vpop.permute.xlu0 %3423
      %3425 = vrot.lane.b32.xlu0 %v3304, 4
      %v3426 = vpop.permute.xlu0 %3425
      %3427 = vrot.lane.b32.xlu0 %v3305, 4
      %v3428 = vpop.permute.xlu0 %3427
      %3429 = vrot.lane.b32.xlu0 %v3306, 4
      %v3430 = vpop.permute.xlu0 %3429
      %3431 = vrot.lane.b32.xlu0 %v3307, 4
      %v3432 = vpop.permute.xlu0 %3431
      %3433 = vrot.lane.b32.xlu0 %v3308, 4
      %v3434 = vpop.permute.xlu0 %3433
      %3435 = vrot.lane.b32.xlu0 %v3309, 4
      %v3436 = vpop.permute.xlu0 %3435
      %3437 = vrot.lane.b32.xlu0 %v3310, 4
      %v3438 = vpop.permute.xlu0 %3437
      %3503 = vrot.lane.b32.xlu0 %v3311, 8
      %v3504 = vpop.permute.xlu0 %3503
      %3505 = vrot.lane.b32.xlu0 %v3312, 8
      %v3506 = vpop.permute.xlu0 %3505
      %3507 = vrot.lane.b32.xlu0 %v3313, 8
      %v3508 = vpop.permute.xlu0 %3507
      %3509 = vrot.lane.b32.xlu0 %v3314, 8
      %v3510 = vpop.permute.xlu0 %3509
      %3511 = vrot.lane.b32.xlu0 %v3315, 8
      %v3512 = vpop.permute.xlu0 %3511
      %3513 = vrot.lane.b32.xlu0 %v3316, 8
      %v3514 = vpop.permute.xlu0 %3513
      %3515 = vrot.lane.b32.xlu0 %v3317, 8
      %v3516 = vpop.permute.xlu0 %3515
      %3517 = vrot.lane.b32.xlu0 %v3318, 8
      %v3518 = vpop.permute.xlu0 %3517
      %3519 = vrot.lane.b32.xlu0 %v3319, 8
      %v3520 = vpop.permute.xlu0 %3519
      %3521 = vrot.lane.b32.xlu0 %v3320, 8
      %v3522 = vpop.permute.xlu0 %3521
      %3523 = vrot.lane.b32.xlu0 %v3321, 8
      %v3524 = vpop.permute.xlu0 %3523
      %3525 = vrot.lane.b32.xlu0 %v3322, 8
      %v3526 = vpop.permute.xlu0 %3525
      %3527 = vrot.lane.b32.xlu0 %v3323, 8
      %v3528 = vpop.permute.xlu0 %3527
      %3529 = vrot.lane.b32.xlu0 %v3324, 8
      %v3530 = vpop.permute.xlu0 %3529
      %3531 = vrot.lane.b32.xlu0 %v3325, 8
      %v3532 = vpop.permute.xlu0 %3531
      %3533 = vrot.lane.b32.xlu0 %v3326, 8
      %v3534 = vpop.permute.xlu0 %3533
      %3535 = vrot.lane.b32.xlu0 %v3327, 8
      %v3536 = vpop.permute.xlu0 %3535
      %3537 = vrot.lane.b32.xlu0 %v3328, 8
      %v3538 = vpop.permute.xlu0 %3537
      %3539 = vrot.lane.b32.xlu0 %v3329, 8
      %v3540 = vpop.permute.xlu0 %3539
      %3541 = vrot.lane.b32.xlu0 %v3330, 8
      %v3542 = vpop.permute.xlu0 %3541
      %3543 = vrot.lane.b32.xlu0 %v3331, 8
      %v3544 = vpop.permute.xlu0 %3543
      %3545 = vrot.lane.b32.xlu0 %v3332, 8
      %v3546 = vpop.permute.xlu0 %3545
      %3547 = vrot.lane.b32.xlu0 %v3333, 8
      %v3548 = vpop.permute.xlu0 %3547
      %3549 = vrot.lane.b32.xlu0 %v3334, 8
      %v3550 = vpop.permute.xlu0 %3549
      %3551 = vrot.lane.b32.xlu0 %v3335, 8
      %v3552 = vpop.permute.xlu0 %3551
      %3553 = vrot.lane.b32.xlu0 %v3336, 8
      %v3554 = vpop.permute.xlu0 %3553
      %3555 = vrot.lane.b32.xlu0 %v3337, 8
      %v3556 = vpop.permute.xlu0 %3555
      %3557 = vrot.lane.b32.xlu0 %v3338, 8
      %v3558 = vpop.permute.xlu0 %3557
      %3559 = vrot.lane.b32.xlu0 %v3339, 8
      %v3560 = vpop.permute.xlu0 %3559
      %3561 = vrot.lane.b32.xlu0 %v3340, 8
      %v3562 = vpop.permute.xlu0 %3561
      %3563 = vrot.lane.b32.xlu0 %v3341, 8
      %v3564 = vpop.permute.xlu0 %3563
      %3565 = vrot.lane.b32.xlu0 %v3342, 8
      %v3566 = vpop.permute.xlu0 %3565
      %v3599 = vsel %vm313, %v3247, %v3376
      %v3600 = vsel %vm313, %v3248, %v3378
      %v3601 = vsel %vm313, %v3249, %v3380
      %v3602 = vsel %vm313, %v3250, %v3382
      %v3603 = vsel %vm313, %v3251, %v3384
      %v3604 = vsel %vm313, %v3252, %v3386
      %v3605 = vsel %vm313, %v3253, %v3388
      %v3606 = vsel %vm313, %v3254, %v3390
      %v3607 = vsel %vm313, %v3255, %v3392
      %v3608 = vsel %vm313, %v3256, %v3394
      %v3609 = vsel %vm313, %v3257, %v3396
      %v3610 = vsel %vm313, %v3258, %v3398
      %v3611 = vsel %vm313, %v3259, %v3400
      %v3612 = vsel %vm313, %v3260, %v3402
      %v3613 = vsel %vm313, %v3261, %v3404
      %v3614 = vsel %vm313, %v3262, %v3406
      %v3615 = vsel %vm313, %v3263, %v3408
      %v3616 = vsel %vm313, %v3264, %v3410
      %v3617 = vsel %vm313, %v3265, %v3412
      %v3618 = vsel %vm313, %v3266, %v3414
      %v3619 = vsel %vm313, %v3267, %v3416
      %v3620 = vsel %vm313, %v3268, %v3418
      %v3621 = vsel %vm313, %v3269, %v3420
      %v3622 = vsel %vm313, %v3270, %v3422
      %v3623 = vsel %vm313, %v3271, %v3424
      %v3624 = vsel %vm313, %v3272, %v3426
      %v3625 = vsel %vm313, %v3273, %v3428
      %v3626 = vsel %vm313, %v3274, %v3430
      %v3627 = vsel %vm313, %v3275, %v3432
      %v3628 = vsel %vm313, %v3276, %v3434
      %v3629 = vsel %vm313, %v3277, %v3436
      %v3630 = vsel %vm313, %v3278, %v3438
      %v3631 = vsel %vm808, %v3599, %v3504
      %v3632 = vsel %vm808, %v3600, %v3506
      %v3633 = vsel %vm808, %v3601, %v3508
      %v3634 = vsel %vm808, %v3602, %v3510
      %v3635 = vsel %vm808, %v3603, %v3512
      %v3636 = vsel %vm808, %v3604, %v3514
      %v3637 = vsel %vm808, %v3605, %v3516
      %v3638 = vsel %vm808, %v3606, %v3518
      %v3639 = vsel %vm808, %v3607, %v3520
      %v3640 = vsel %vm808, %v3608, %v3522
      %v3641 = vsel %vm808, %v3609, %v3524
      %v3642 = vsel %vm808, %v3610, %v3526
      %v3643 = vsel %vm808, %v3611, %v3528
      %v3644 = vsel %vm808, %v3612, %v3530
      %v3645 = vsel %vm808, %v3613, %v3532
      %v3646 = vsel %vm808, %v3614, %v3534
      %v3647 = vsel %vm808, %v3615, %v3536
      %v3648 = vsel %vm808, %v3616, %v3538
      %v3649 = vsel %vm808, %v3617, %v3540
      %v3650 = vsel %vm808, %v3618, %v3542
      %v3651 = vsel %vm808, %v3619, %v3544
      %v3652 = vsel %vm808, %v3620, %v3546
      %v3653 = vsel %vm808, %v3621, %v3548
      %v3654 = vsel %vm808, %v3622, %v3550
      %v3655 = vsel %vm808, %v3623, %v3552
      %v3656 = vsel %vm808, %v3624, %v3554
      %v3657 = vsel %vm808, %v3625, %v3556
      %v3658 = vsel %vm808, %v3626, %v3558
      %v3659 = vsel %vm808, %v3627, %v3560
      %v3660 = vsel %vm808, %v3628, %v3562
      %v3661 = vsel %vm808, %v3629, %v3564
      %v3662 = vsel %vm808, %v3630, %v3566
      %v3663 = vpack.c.bf16 %v3632, %v3631
      %v3664 = vpack.c.bf16 %v3634, %v3633
      %v3665 = vpack.c.bf16 %v3636, %v3635
      %v3666 = vpack.c.bf16 %v3638, %v3637
      %v3667 = vpack.c.bf16 %v3640, %v3639
      %v3668 = vpack.c.bf16 %v3642, %v3641
      %v3669 = vpack.c.bf16 %v3644, %v3643
      %v3670 = vpack.c.bf16 %v3646, %v3645
      %v3671 = vpack.c.bf16 %v3648, %v3647
      %v3672 = vpack.c.bf16 %v3650, %v3649
      %v3673 = vpack.c.bf16 %v3652, %v3651
      %v3674 = vpack.c.bf16 %v3654, %v3653
      %v3675 = vpack.c.bf16 %v3656, %v3655
      %v3676 = vpack.c.bf16 %v3658, %v3657
      %v3677 = vpack.c.bf16 %v3660, %v3659
      %v3678 = vpack.c.bf16 %v3662, %v3661
      %s3679 = scalar_lea.vmem %s4, 8
      %v3680 = vld [vmem:[%s3679] sm:$0xf]
      %v3681 = vld [vmem:[%s3679 + $0x4] sm:$0x3]
      %v3684 = vunpack.c.l.b16 %v3680
      %v3685 = vunpack.c.l.b16 %v3681
      %v3686 = vpack.c.b16 %v3685, %v3684
      %v3688 = vsel %vm1299, %v3663, 0
      %v3691 = vsel %vm1299, %v3664, 0
      %v3694 = vsel %vm1299, %v3665, 0
      %v3697 = vsel %vm1299, %v3666, 0
      %v3700 = vsel %vm1299, %v3667, 0
      %v3703 = vsel %vm1299, %v3668, 0
      %v3706 = vsel %vm1299, %v3669, 0
      %v3709 = vsel %vm1299, %v3670, 0
      %v3712 = vsel %vm1299, %v3671, 0
      %v3715 = vsel %vm1299, %v3672, 0
      %v3718 = vsel %vm1299, %v3673, 0
      %v3721 = vsel %vm1299, %v3674, 0
      %v3724 = vsel %vm1299, %v3675, 0
      %v3727 = vsel %vm1299, %v3676, 0
      %v3730 = vsel %vm1299, %v3677, 0
      %v3733 = vsel %vm1299, %v3678, 0
      %v3736 = vsel %vm1348, %v3686, 0
      %3738 = vmatprep.subr.bf16.mxu0 0
      %3739 = vmatpush1.bf16.msra.mxu0 0
      %3740 = vmatprep.subr.bf16.mxu0 0
      %3741 = vmatpush1.bf16.msra.mxu0 0
      %3742 = vmatprep.subr.bf16.mxu0 0
      %3743 = vmatpush1.bf16.msra.mxu0 0
      %3744 = vmatprep.subr.bf16.mxu0 0
      %3745 = vmatpush1.bf16.msra.mxu0 0
      %3746 = vmatprep.subr.bf16.mxu0 0
      %3747 = vmatpush1.bf16.msra.mxu0 0
      %3748 = vmatprep.subr.bf16.mxu0 0
      %3749 = vmatpush1.bf16.msra.mxu0 0
      %3750 = vmatprep.subr.bf16.mxu0 0
      %3751 = vmatpush1.bf16.msra.mxu0 0
      %3752 = vmatprep.subr.bf16.mxu0 0
      %3753 = vmatpush1.bf16.msra.mxu0 %v3736
      %3754 = vmatprep.subr.bf16.mxu0 0
      %3755 = vmatpush2.bf16.msra.mxu0 0
      %3756 = vmatprep.subr.bf16.mxu0 0
      %3757 = vmatpush2.bf16.msra.mxu0 0
      %3758 = vmatprep.subr.bf16.mxu0 0
      %3759 = vmatpush2.bf16.msra.mxu0 0
      %3760 = vmatprep.subr.bf16.mxu0 0
      %3761 = vmatpush2.bf16.msra.mxu0 0
      %3762 = vmatprep.subr.bf16.mxu0 0
      %3763 = vmatpush2.bf16.msra.mxu0 0
      %3764 = vmatprep.subr.bf16.mxu0 0
      %3765 = vmatpush2.bf16.msra.mxu0 0
      %3766 = vmatprep.subr.bf16.mxu0 0
      %3767 = vmatpush2.bf16.msra.mxu0 0
      %3768 = vmatprep.subr.bf16.mxu0 0
      %3769 = vmatpush2.bf16.msra.mxu0 0
      %3770 = vmatprep.mubr.bf16.mxu0 0
      %3771 = vmatmul.mubr.bf16.gmra.mxu0 %v3688
      %v3772 = vpop.f32.mrf.mxu0
      %v3773 = vadd.f32 0.0, %v3772
      %v3774 = vpop.f32.mrf.mxu0
      %v3775 = vpop.f32.mrf.mxu0
      %v3776 = vadd.f32 0.0, %v3775
      %v3777 = vpop.f32.mrf.mxu0
      %3778 = vmatprep.mubr.bf16.mxu0 0
      %3779 = vmatmul.mubr.bf16.gmra.mxu0 %v3691
      %v3780 = vpop.f32.mrf.mxu0
      %v3781 = vadd.f32 0.0, %v3780
      %v3782 = vpop.f32.mrf.mxu0
      %v3783 = vpop.f32.mrf.mxu0
      %v3784 = vadd.f32 0.0, %v3783
      %v3785 = vpop.f32.mrf.mxu0
      %3786 = vmatprep.mubr.bf16.mxu0 0
      %3787 = vmatmul.mubr.bf16.gmra.mxu0 %v3694
      %v3788 = vpop.f32.mrf.mxu0
      %v3789 = vadd.f32 0.0, %v3788
      %v3790 = vpop.f32.mrf.mxu0
      %v3791 = vpop.f32.mrf.mxu0
      %v3792 = vadd.f32 0.0, %v3791
      %v3793 = vpop.f32.mrf.mxu0
      %3794 = vmatprep.mubr.bf16.mxu0 0
      %3795 = vmatmul.mubr.bf16.gmra.mxu0 %v3697
      %v3796 = vpop.f32.mrf.mxu0
      %v3797 = vadd.f32 0.0, %v3796
      %v3798 = vpop.f32.mrf.mxu0
      %v3799 = vpop.f32.mrf.mxu0
      %v3800 = vadd.f32 0.0, %v3799
      %v3801 = vpop.f32.mrf.mxu0
      %3802 = vmatprep.mubr.bf16.mxu0 0
      %3803 = vmatmul.mubr.bf16.gmra.mxu0 %v3700
      %v3804 = vpop.f32.mrf.mxu0
      %v3805 = vadd.f32 0.0, %v3804
      %v3806 = vpop.f32.mrf.mxu0
      %v3807 = vpop.f32.mrf.mxu0
      %v3808 = vadd.f32 0.0, %v3807
      %v3809 = vpop.f32.mrf.mxu0
      %3810 = vmatprep.mubr.bf16.mxu0 0
      %3811 = vmatmul.mubr.bf16.gmra.mxu0 %v3703
      %v3812 = vpop.f32.mrf.mxu0
      %v3813 = vadd.f32 0.0, %v3812
      %v3814 = vpop.f32.mrf.mxu0
      %v3815 = vpop.f32.mrf.mxu0
      %v3816 = vadd.f32 0.0, %v3815
      %v3817 = vpop.f32.mrf.mxu0
      %3818 = vmatprep.mubr.bf16.mxu0 0
      %3819 = vmatmul.mubr.bf16.gmra.mxu0 %v3706
      %v3820 = vpop.f32.mrf.mxu0
      %v3821 = vadd.f32 0.0, %v3820
      %v3822 = vpop.f32.mrf.mxu0
      %v3823 = vpop.f32.mrf.mxu0
      %v3824 = vadd.f32 0.0, %v3823
      %v3825 = vpop.f32.mrf.mxu0
      %3826 = vmatprep.mubr.bf16.mxu0 0
      %3827 = vmatmul.mubr.bf16.gmra.mxu0 %v3709
      %v3828 = vpop.f32.mrf.mxu0
      %v3829 = vadd.f32 0.0, %v3828
      %v3830 = vpop.f32.mrf.mxu0
      %v3831 = vpop.f32.mrf.mxu0
      %v3832 = vadd.f32 0.0, %v3831
      %v3833 = vpop.f32.mrf.mxu0
      %3834 = vmatprep.mubr.bf16.mxu0 0
      %3835 = vmatmul.mubr.bf16.gmra.mxu0 %v3712
      %v3836 = vpop.f32.mrf.mxu0
      %v3837 = vadd.f32 0.0, %v3836
      %v3838 = vpop.f32.mrf.mxu0
      %v3839 = vpop.f32.mrf.mxu0
      %v3840 = vadd.f32 0.0, %v3839
      %v3841 = vpop.f32.mrf.mxu0
      %3842 = vmatprep.mubr.bf16.mxu0 0
      %3843 = vmatmul.mubr.bf16.gmra.mxu0 %v3715
      %v3844 = vpop.f32.mrf.mxu0
      %v3845 = vadd.f32 0.0, %v3844
      %v3846 = vpop.f32.mrf.mxu0
      %v3847 = vpop.f32.mrf.mxu0
      %v3848 = vadd.f32 0.0, %v3847
      %v3849 = vpop.f32.mrf.mxu0
      %3850 = vmatprep.mubr.bf16.mxu0 0
      %3851 = vmatmul.mubr.bf16.gmra.mxu0 %v3718
      %v3852 = vpop.f32.mrf.mxu0
      %v3853 = vadd.f32 0.0, %v3852
      %v3854 = vpop.f32.mrf.mxu0
      %v3855 = vpop.f32.mrf.mxu0
      %v3856 = vadd.f32 0.0, %v3855
      %v3857 = vpop.f32.mrf.mxu0
      %3858 = vmatprep.mubr.bf16.mxu0 0
      %3859 = vmatmul.mubr.bf16.gmra.mxu0 %v3721
      %v3860 = vpop.f32.mrf.mxu0
      %v3861 = vadd.f32 0.0, %v3860
      %v3862 = vpop.f32.mrf.mxu0
      %v3863 = vpop.f32.mrf.mxu0
      %v3864 = vadd.f32 0.0, %v3863
      %v3865 = vpop.f32.mrf.mxu0
      %3866 = vmatprep.mubr.bf16.mxu0 0
      %3867 = vmatmul.mubr.bf16.gmra.mxu0 %v3724
      %v3868 = vpop.f32.mrf.mxu0
      %v3869 = vadd.f32 0.0, %v3868
      %v3870 = vpop.f32.mrf.mxu0
      %v3871 = vpop.f32.mrf.mxu0
      %v3872 = vadd.f32 0.0, %v3871
      %v3873 = vpop.f32.mrf.mxu0
      %3874 = vmatprep.mubr.bf16.mxu0 0
      %3875 = vmatmul.mubr.bf16.gmra.mxu0 %v3727
      %v3876 = vpop.f32.mrf.mxu0
      %v3877 = vadd.f32 0.0, %v3876
      %v3878 = vpop.f32.mrf.mxu0
      %v3879 = vpop.f32.mrf.mxu0
      %v3880 = vadd.f32 0.0, %v3879
      %v3881 = vpop.f32.mrf.mxu0
      %3882 = vmatprep.mubr.bf16.mxu0 0
      %3883 = vmatmul.mubr.bf16.gmra.mxu0 %v3730
      %v3884 = vpop.f32.mrf.mxu0
      %v3885 = vadd.f32 0.0, %v3884
      %v3886 = vpop.f32.mrf.mxu0
      %v3887 = vpop.f32.mrf.mxu0
      %v3888 = vadd.f32 0.0, %v3887
      %v3889 = vpop.f32.mrf.mxu0
      %3890 = vmatprep.mubr.bf16.mxu0 0
      %3891 = vmatmul.mubr.bf16.gmra.mxu0 %v3733
      %v3892 = vpop.f32.mrf.mxu0
      %v3893 = vadd.f32 0.0, %v3892
      %v3894 = vpop.f32.mrf.mxu0
      %v3895 = vpop.f32.mrf.mxu0
      %v3896 = vadd.f32 0.0, %v3895
      %v3897 = vpop.f32.mrf.mxu0
      %3898 = vdwg.mxu0
      %v3901 = vunpack.c.l.b16 %v3245
      %v3902 = vunpack.c.l.b16 %v3246
      %v3903 = vpack.c.b16 %v3902, %v3901
      %v3905 = vsel %vm1299, %v3229, 0
      %v3908 = vsel %vm1299, %v3230, 0
      %v3911 = vsel %vm1299, %v3231, 0
      %v3914 = vsel %vm1299, %v3232, 0
      %v3917 = vsel %vm1299, %v3233, 0
      %v3920 = vsel %vm1299, %v3234, 0
      %v3923 = vsel %vm1299, %v3235, 0
      %v3926 = vsel %vm1299, %v3236, 0
      %v3929 = vsel %vm1299, %v3237, 0
      %v3932 = vsel %vm1299, %v3238, 0
      %v3935 = vsel %vm1299, %v3239, 0
      %v3938 = vsel %vm1299, %v3240, 0
      %v3941 = vsel %vm1299, %v3241, 0
      %v3944 = vsel %vm1299, %v3242, 0
      %v3947 = vsel %vm1299, %v3243, 0
      %v3950 = vsel %vm1299, %v3244, 0
      %v3953 = vsel %vm1348, %v3903, 0
      %3955 = vmatprep.subr.bf16.mxu0 0
      %3956 = vmatpush1.bf16.msra.mxu0 0
      %3957 = vmatprep.subr.bf16.mxu0 0
      %3958 = vmatpush1.bf16.msra.mxu0 0
      %3959 = vmatprep.subr.bf16.mxu0 0
      %3960 = vmatpush1.bf16.msra.mxu0 0
      %3961 = vmatprep.subr.bf16.mxu0 0
      %3962 = vmatpush1.bf16.msra.mxu0 0
      %3963 = vmatprep.subr.bf16.mxu0 0
      %3964 = vmatpush1.bf16.msra.mxu0 0
      %3965 = vmatprep.subr.bf16.mxu0 0
      %3966 = vmatpush1.bf16.msra.mxu0 0
      %3967 = vmatprep.subr.bf16.mxu0 0
      %3968 = vmatpush1.bf16.msra.mxu0 0
      %3969 = vmatprep.subr.bf16.mxu0 0
      %3970 = vmatpush1.bf16.msra.mxu0 %v3953
      %3971 = vmatprep.subr.bf16.mxu0 0
      %3972 = vmatpush2.bf16.msra.mxu0 0
      %3973 = vmatprep.subr.bf16.mxu0 0
      %3974 = vmatpush2.bf16.msra.mxu0 0
      %3975 = vmatprep.subr.bf16.mxu0 0
      %3976 = vmatpush2.bf16.msra.mxu0 0
      %3977 = vmatprep.subr.bf16.mxu0 0
      %3978 = vmatpush2.bf16.msra.mxu0 0
      %3979 = vmatprep.subr.bf16.mxu0 0
      %3980 = vmatpush2.bf16.msra.mxu0 0
      %3981 = vmatprep.subr.bf16.mxu0 0
      %3982 = vmatpush2.bf16.msra.mxu0 0
      %3983 = vmatprep.subr.bf16.mxu0 0
      %3984 = vmatpush2.bf16.msra.mxu0 0
      %3985 = vmatprep.subr.bf16.mxu0 0
      %3986 = vmatpush2.bf16.msra.mxu0 0
      %3987 = vmatprep.mubr.bf16.mxu0 0
      %3988 = vmatmul.mubr.bf16.gmra.mxu0 %v3905
      %v3989 = vpop.f32.mrf.mxu0
      %v3990 = vadd.f32 %v3773, %v3989
      %v3991 = vpop.f32.mrf.mxu0
      %v3992 = vpop.f32.mrf.mxu0
      %v3993 = vadd.f32 %v3776, %v3992
      %v3994 = vpop.f32.mrf.mxu0
      %3995 = vmatprep.mubr.bf16.mxu0 0
      %3996 = vmatmul.mubr.bf16.gmra.mxu0 %v3908
      %v3997 = vpop.f32.mrf.mxu0
      %v3998 = vadd.f32 %v3781, %v3997
      %v3999 = vpop.f32.mrf.mxu0
      %v4000 = vpop.f32.mrf.mxu0
      %v4001 = vadd.f32 %v3784, %v4000
      %v4002 = vpop.f32.mrf.mxu0
      %4003 = vmatprep.mubr.bf16.mxu0 0
      %4004 = vmatmul.mubr.bf16.gmra.mxu0 %v3911
      %v4005 = vpop.f32.mrf.mxu0
      %v4006 = vadd.f32 %v3789, %v4005
      %v4007 = vpop.f32.mrf.mxu0
      %v4008 = vpop.f32.mrf.mxu0
      %v4009 = vadd.f32 %v3792, %v4008
      %v4010 = vpop.f32.mrf.mxu0
      %4011 = vmatprep.mubr.bf16.mxu0 0
      %4012 = vmatmul.mubr.bf16.gmra.mxu0 %v3914
      %v4013 = vpop.f32.mrf.mxu0
      %v4014 = vadd.f32 %v3797, %v4013
      %v4015 = vpop.f32.mrf.mxu0
      %v4016 = vpop.f32.mrf.mxu0
      %v4017 = vadd.f32 %v3800, %v4016
      %v4018 = vpop.f32.mrf.mxu0
      %4019 = vmatprep.mubr.bf16.mxu0 0
      %4020 = vmatmul.mubr.bf16.gmra.mxu0 %v3917
      %v4021 = vpop.f32.mrf.mxu0
      %v4022 = vadd.f32 %v3805, %v4021
      %v4023 = vpop.f32.mrf.mxu0
      %v4024 = vpop.f32.mrf.mxu0
      %v4025 = vadd.f32 %v3808, %v4024
      %v4026 = vpop.f32.mrf.mxu0
      %4027 = vmatprep.mubr.bf16.mxu0 0
      %4028 = vmatmul.mubr.bf16.gmra.mxu0 %v3920
      %v4029 = vpop.f32.mrf.mxu0
      %v4030 = vadd.f32 %v3813, %v4029
      %v4031 = vpop.f32.mrf.mxu0
      %v4032 = vpop.f32.mrf.mxu0
      %v4033 = vadd.f32 %v3816, %v4032
      %v4034 = vpop.f32.mrf.mxu0
      %4035 = vmatprep.mubr.bf16.mxu0 0
      %4036 = vmatmul.mubr.bf16.gmra.mxu0 %v3923
      %v4037 = vpop.f32.mrf.mxu0
      %v4038 = vadd.f32 %v3821, %v4037
      %v4039 = vpop.f32.mrf.mxu0
      %v4040 = vpop.f32.mrf.mxu0
      %v4041 = vadd.f32 %v3824, %v4040
      %v4042 = vpop.f32.mrf.mxu0
      %4043 = vmatprep.mubr.bf16.mxu0 0
      %4044 = vmatmul.mubr.bf16.gmra.mxu0 %v3926
      %v4045 = vpop.f32.mrf.mxu0
      %v4046 = vadd.f32 %v3829, %v4045
      %v4047 = vpop.f32.mrf.mxu0
      %v4048 = vpop.f32.mrf.mxu0
      %v4049 = vadd.f32 %v3832, %v4048
      %v4050 = vpop.f32.mrf.mxu0
      %4051 = vmatprep.mubr.bf16.mxu0 0
      %4052 = vmatmul.mubr.bf16.gmra.mxu0 %v3929
      %v4053 = vpop.f32.mrf.mxu0
      %v4054 = vadd.f32 %v3837, %v4053
      %v4055 = vpop.f32.mrf.mxu0
      %v4056 = vpop.f32.mrf.mxu0
      %v4057 = vadd.f32 %v3840, %v4056
      %v4058 = vpop.f32.mrf.mxu0
      %4059 = vmatprep.mubr.bf16.mxu0 0
      %4060 = vmatmul.mubr.bf16.gmra.mxu0 %v3932
      %v4061 = vpop.f32.mrf.mxu0
      %v4062 = vadd.f32 %v3845, %v4061
      %v4063 = vpop.f32.mrf.mxu0
      %v4064 = vpop.f32.mrf.mxu0
      %v4065 = vadd.f32 %v3848, %v4064
      %v4066 = vpop.f32.mrf.mxu0
      %4067 = vmatprep.mubr.bf16.mxu0 0
      %4068 = vmatmul.mubr.bf16.gmra.mxu0 %v3935
      %v4069 = vpop.f32.mrf.mxu0
      %v4070 = vadd.f32 %v3853, %v4069
      %v4071 = vpop.f32.mrf.mxu0
      %v4072 = vpop.f32.mrf.mxu0
      %v4073 = vadd.f32 %v3856, %v4072
      %v4074 = vpop.f32.mrf.mxu0
      %4075 = vmatprep.mubr.bf16.mxu0 0
      %4076 = vmatmul.mubr.bf16.gmra.mxu0 %v3938
      %v4077 = vpop.f32.mrf.mxu0
      %v4078 = vadd.f32 %v3861, %v4077
      %v4079 = vpop.f32.mrf.mxu0
      %v4080 = vpop.f32.mrf.mxu0
      %v4081 = vadd.f32 %v3864, %v4080
      %v4082 = vpop.f32.mrf.mxu0
      %4083 = vmatprep.mubr.bf16.mxu0 0
      %4084 = vmatmul.mubr.bf16.gmra.mxu0 %v3941
      %v4085 = vpop.f32.mrf.mxu0
      %v4086 = vadd.f32 %v3869, %v4085
      %v4087 = vpop.f32.mrf.mxu0
      %v4088 = vpop.f32.mrf.mxu0
      %v4089 = vadd.f32 %v3872, %v4088
      %v4090 = vpop.f32.mrf.mxu0
      %4091 = vmatprep.mubr.bf16.mxu0 0
      %4092 = vmatmul.mubr.bf16.gmra.mxu0 %v3944
      %v4093 = vpop.f32.mrf.mxu0
      %v4094 = vadd.f32 %v3877, %v4093
      %v4095 = vpop.f32.mrf.mxu0
      %v4096 = vpop.f32.mrf.mxu0
      %v4097 = vadd.f32 %v3880, %v4096
      %v4098 = vpop.f32.mrf.mxu0
      %4099 = vmatprep.mubr.bf16.mxu0 0
      %4100 = vmatmul.mubr.bf16.gmra.mxu0 %v3947
      %v4101 = vpop.f32.mrf.mxu0
      %v4102 = vadd.f32 %v3885, %v4101
      %v4103 = vpop.f32.mrf.mxu0
      %v4104 = vpop.f32.mrf.mxu0
      %v4105 = vadd.f32 %v3888, %v4104
      %v4106 = vpop.f32.mrf.mxu0
      %4107 = vmatprep.mubr.bf16.mxu0 0
      %4108 = vmatmul.mubr.bf16.gmra.mxu0 %v3950
      %v4109 = vpop.f32.mrf.mxu0
      %v4110 = vadd.f32 %v3893, %v4109
      %v4111 = vpop.f32.mrf.mxu0
      %v4112 = vpop.f32.mrf.mxu0
      %v4113 = vadd.f32 %v3896, %v4112
      %v4114 = vpop.f32.mrf.mxu0
      %4115 = vdwg.mxu0
      %v4116 = vld [vmem:[%s1730 + $0x7] sm:$0xff]
      %v4117 = vld [vmem:[%s1730 + $0xf] sm:$0xff]
      %v4118 = vld [vmem:[%s1730 + $0x27] sm:$0xff]
      %v4119 = vld [vmem:[%s1730 + $0x2f] sm:$0xff]
      %v4120 = vld [vmem:[%s1730 + $0x47] sm:$0xff]
      %v4121 = vld [vmem:[%s1730 + $0x4f] sm:$0xff]
      %v4122 = vld [vmem:[%s1730 + $0x67] sm:$0xff]
      %v4123 = vld [vmem:[%s1730 + $0x6f] sm:$0xff]
      %v4124 = vld [vmem:[%s1730 + $0x87] sm:$0xff]
      %v4125 = vld [vmem:[%s1730 + $0x8f] sm:$0xff]
      %v4126 = vld [vmem:[%s1730 + $0xa7] sm:$0xff]
      %v4127 = vld [vmem:[%s1730 + $0xaf] sm:$0xff]
      %v4128 = vld [vmem:[%s1730 + $0xc7] sm:$0xff]
      %v4129 = vld [vmem:[%s1730 + $0xcf] sm:$0xff]
      %v4130 = vld [vmem:[%s1730 + $0xe7] sm:$0xff]
      %v4131 = vld [vmem:[%s1730 + $0xef] sm:$0xff]
      %v4132 = vld [vmem:[%s1730 + $0x107] sm:$0xff]
      %v4133 = vld [vmem:[%s1730 + $0x10f] sm:$0xff]
      %v4134 = vld [vmem:[%s1730 + $0x127] sm:$0xff]
      %v4135 = vld [vmem:[%s1730 + $0x12f] sm:$0xff]
      %v4136 = vld [vmem:[%s1730 + $0x147] sm:$0xff]
      %v4137 = vld [vmem:[%s1730 + $0x14f] sm:$0xff]
      %v4138 = vld [vmem:[%s1730 + $0x167] sm:$0xff]
      %v4139 = vld [vmem:[%s1730 + $0x16f] sm:$0xff]
      %v4140 = vld [vmem:[%s1730 + $0x187] sm:$0xff]
      %v4141 = vld [vmem:[%s1730 + $0x18f] sm:$0xff]
      %v4142 = vld [vmem:[%s1730 + $0x1a7] sm:$0xff]
      %v4143 = vld [vmem:[%s1730 + $0x1af] sm:$0xff]
      %v4144 = vld [vmem:[%s1730 + $0x1c7] sm:$0xff]
      %v4145 = vld [vmem:[%s1730 + $0x1cf] sm:$0xff]
      %v4146 = vld [vmem:[%s1730 + $0x1e7] sm:$0xff]
      %v4147 = vld [vmem:[%s1730 + $0x1ef] sm:$0xff]
      %v4148 = vld [vmem:[%s1730 + $0x8] sm:$0xff]
      %v4149 = vld [vmem:[%s1730 + $0x10] sm:$0xff]
      %v4150 = vld [vmem:[%s1730 + $0x28] sm:$0xff]
      %v4151 = vld [vmem:[%s1730 + $0x30] sm:$0xff]
      %v4152 = vld [vmem:[%s1730 + $0x48] sm:$0xff]
      %v4153 = vld [vmem:[%s1730 + $0x50] sm:$0xff]
      %v4154 = vld [vmem:[%s1730 + $0x68] sm:$0xff]
      %v4155 = vld [vmem:[%s1730 + $0x70] sm:$0xff]
      %v4156 = vld [vmem:[%s1730 + $0x88] sm:$0xff]
      %v4157 = vld [vmem:[%s1730 + $0x90] sm:$0xff]
      %v4158 = vld [vmem:[%s1730 + $0xa8] sm:$0xff]
      %v4159 = vld [vmem:[%s1730 + $0xb0] sm:$0xff]
      %v4160 = vld [vmem:[%s1730 + $0xc8] sm:$0xff]
      %v4161 = vld [vmem:[%s1730 + $0xd0] sm:$0xff]
      %v4162 = vld [vmem:[%s1730 + $0xe8] sm:$0xff]
      %v4163 = vld [vmem:[%s1730 + $0xf0] sm:$0xff]
      %v4164 = vld [vmem:[%s1730 + $0x108] sm:$0xff]
      %v4165 = vld [vmem:[%s1730 + $0x110] sm:$0xff]
      %v4166 = vld [vmem:[%s1730 + $0x128] sm:$0xff]
      %v4167 = vld [vmem:[%s1730 + $0x130] sm:$0xff]
      %v4168 = vld [vmem:[%s1730 + $0x148] sm:$0xff]
      %v4169 = vld [vmem:[%s1730 + $0x150] sm:$0xff]
      %v4170 = vld [vmem:[%s1730 + $0x168] sm:$0xff]
      %v4171 = vld [vmem:[%s1730 + $0x170] sm:$0xff]
      %v4172 = vld [vmem:[%s1730 + $0x188] sm:$0xff]
      %v4173 = vld [vmem:[%s1730 + $0x190] sm:$0xff]
      %v4174 = vld [vmem:[%s1730 + $0x1a8] sm:$0xff]
      %v4175 = vld [vmem:[%s1730 + $0x1b0] sm:$0xff]
      %v4176 = vld [vmem:[%s1730 + $0x1c8] sm:$0xff]
      %v4177 = vld [vmem:[%s1730 + $0x1d0] sm:$0xff]
      %v4178 = vld [vmem:[%s1730 + $0x1e8] sm:$0xff]
      %v4179 = vld [vmem:[%s1730 + $0x1f0] sm:$0xff]
      %v4180 = vld [vmem:[%s1730 + $0x9] sm:$0xff]
      %v4181 = vld [vmem:[%s1730 + $0x11] sm:$0xff]
      %v4182 = vld [vmem:[%s1730 + $0x29] sm:$0xff]
      %v4183 = vld [vmem:[%s1730 + $0x31] sm:$0xff]
      %v4184 = vld [vmem:[%s1730 + $0x49] sm:$0xff]
      %v4185 = vld [vmem:[%s1730 + $0x51] sm:$0xff]
      %v4186 = vld [vmem:[%s1730 + $0x69] sm:$0xff]
      %v4187 = vld [vmem:[%s1730 + $0x71] sm:$0xff]
      %v4188 = vld [vmem:[%s1730 + $0x89] sm:$0xff]
      %v4189 = vld [vmem:[%s1730 + $0x91] sm:$0xff]
      %v4190 = vld [vmem:[%s1730 + $0xa9] sm:$0xff]
      %v4191 = vld [vmem:[%s1730 + $0xb1] sm:$0xff]
      %v4192 = vld [vmem:[%s1730 + $0xc9] sm:$0xff]
      %v4193 = vld [vmem:[%s1730 + $0xd1] sm:$0xff]
      %v4194 = vld [vmem:[%s1730 + $0xe9] sm:$0xff]
      %v4195 = vld [vmem:[%s1730 + $0xf1] sm:$0xff]
      %v4196 = vld [vmem:[%s1730 + $0x109] sm:$0xff]
      %v4197 = vld [vmem:[%s1730 + $0x111] sm:$0xff]
      %v4198 = vld [vmem:[%s1730 + $0x129] sm:$0xff]
      %v4199 = vld [vmem:[%s1730 + $0x131] sm:$0xff]
      %v4200 = vld [vmem:[%s1730 + $0x149] sm:$0xff]
      %v4201 = vld [vmem:[%s1730 + $0x151] sm:$0xff]
      %v4202 = vld [vmem:[%s1730 + $0x169] sm:$0xff]
      %v4203 = vld [vmem:[%s1730 + $0x171] sm:$0xff]
      %v4204 = vld [vmem:[%s1730 + $0x189] sm:$0xff]
      %v4205 = vld [vmem:[%s1730 + $0x191] sm:$0xff]
      %v4206 = vld [vmem:[%s1730 + $0x1a9] sm:$0xff]
      %v4207 = vld [vmem:[%s1730 + $0x1b1] sm:$0xff]
      %v4208 = vld [vmem:[%s1730 + $0x1c9] sm:$0xff]
      %v4209 = vld [vmem:[%s1730 + $0x1d1] sm:$0xff]
      %v4210 = vld [vmem:[%s1730 + $0x1e9] sm:$0xff]
      %v4211 = vld [vmem:[%s1730 + $0x1f1] sm:$0xff]
      %4244 = vrot.lane.b32.xlu0 %v4148, 4
      %v4245 = vpop.permute.xlu0 %4244
      %4246 = vrot.lane.b32.xlu0 %v4149, 4
      %v4247 = vpop.permute.xlu0 %4246
      %4248 = vrot.lane.b32.xlu0 %v4150, 4
      %v4249 = vpop.permute.xlu0 %4248
      %4250 = vrot.lane.b32.xlu0 %v4151, 4
      %v4251 = vpop.permute.xlu0 %4250
      %4252 = vrot.lane.b32.xlu0 %v4152, 4
      %v4253 = vpop.permute.xlu0 %4252
      %4254 = vrot.lane.b32.xlu0 %v4153, 4
      %v4255 = vpop.permute.xlu0 %4254
      %4256 = vrot.lane.b32.xlu0 %v4154, 4
      %v4257 = vpop.permute.xlu0 %4256
      %4258 = vrot.lane.b32.xlu0 %v4155, 4
      %v4259 = vpop.permute.xlu0 %4258
      %4260 = vrot.lane.b32.xlu0 %v4156, 4
      %v4261 = vpop.permute.xlu0 %4260
      %4262 = vrot.lane.b32.xlu0 %v4157, 4
      %v4263 = vpop.permute.xlu0 %4262
      %4264 = vrot.lane.b32.xlu0 %v4158, 4
      %v4265 = vpop.permute.xlu0 %4264
      %4266 = vrot.lane.b32.xlu0 %v4159, 4
      %v4267 = vpop.permute.xlu0 %4266
      %4268 = vrot.lane.b32.xlu0 %v4160, 4
      %v4269 = vpop.permute.xlu0 %4268
      %4270 = vrot.lane.b32.xlu0 %v4161, 4
      %v4271 = vpop.permute.xlu0 %4270
      %4272 = vrot.lane.b32.xlu0 %v4162, 4
      %v4273 = vpop.permute.xlu0 %4272
      %4274 = vrot.lane.b32.xlu0 %v4163, 4
      %v4275 = vpop.permute.xlu0 %4274
      %4276 = vrot.lane.b32.xlu0 %v4164, 4
      %v4277 = vpop.permute.xlu0 %4276
      %4278 = vrot.lane.b32.xlu0 %v4165, 4
      %v4279 = vpop.permute.xlu0 %4278
      %4280 = vrot.lane.b32.xlu0 %v4166, 4
      %v4281 = vpop.permute.xlu0 %4280
      %4282 = vrot.lane.b32.xlu0 %v4167, 4
      %v4283 = vpop.permute.xlu0 %4282
      %4284 = vrot.lane.b32.xlu0 %v4168, 4
      %v4285 = vpop.permute.xlu0 %4284
      %4286 = vrot.lane.b32.xlu0 %v4169, 4
      %v4287 = vpop.permute.xlu0 %4286
      %4288 = vrot.lane.b32.xlu0 %v4170, 4
      %v4289 = vpop.permute.xlu0 %4288
      %4290 = vrot.lane.b32.xlu0 %v4171, 4
      %v4291 = vpop.permute.xlu0 %4290
      %4292 = vrot.lane.b32.xlu0 %v4172, 4
      %v4293 = vpop.permute.xlu0 %4292
      %4294 = vrot.lane.b32.xlu0 %v4173, 4
      %v4295 = vpop.permute.xlu0 %4294
      %4296 = vrot.lane.b32.xlu0 %v4174, 4
      %v4297 = vpop.permute.xlu0 %4296
      %4298 = vrot.lane.b32.xlu0 %v4175, 4
      %v4299 = vpop.permute.xlu0 %4298
      %4300 = vrot.lane.b32.xlu0 %v4176, 4
      %v4301 = vpop.permute.xlu0 %4300
      %4302 = vrot.lane.b32.xlu0 %v4177, 4
      %v4303 = vpop.permute.xlu0 %4302
      %4304 = vrot.lane.b32.xlu0 %v4178, 4
      %v4305 = vpop.permute.xlu0 %4304
      %4306 = vrot.lane.b32.xlu0 %v4179, 4
      %v4307 = vpop.permute.xlu0 %4306
      %4372 = vrot.lane.b32.xlu0 %v4180, 8
      %v4373 = vpop.permute.xlu0 %4372
      %4374 = vrot.lane.b32.xlu0 %v4181, 8
      %v4375 = vpop.permute.xlu0 %4374
      %4376 = vrot.lane.b32.xlu0 %v4182, 8
      %v4377 = vpop.permute.xlu0 %4376
      %4378 = vrot.lane.b32.xlu0 %v4183, 8
      %v4379 = vpop.permute.xlu0 %4378
      %4380 = vrot.lane.b32.xlu0 %v4184, 8
      %v4381 = vpop.permute.xlu0 %4380
      %4382 = vrot.lane.b32.xlu0 %v4185, 8
      %v4383 = vpop.permute.xlu0 %4382
      %4384 = vrot.lane.b32.xlu0 %v4186, 8
      %v4385 = vpop.permute.xlu0 %4384
      %4386 = vrot.lane.b32.xlu0 %v4187, 8
      %v4387 = vpop.permute.xlu0 %4386
      %4388 = vrot.lane.b32.xlu0 %v4188, 8
      %v4389 = vpop.permute.xlu0 %4388
      %4390 = vrot.lane.b32.xlu0 %v4189, 8
      %v4391 = vpop.permute.xlu0 %4390
      %4392 = vrot.lane.b32.xlu0 %v4190, 8
      %v4393 = vpop.permute.xlu0 %4392
      %4394 = vrot.lane.b32.xlu0 %v4191, 8
      %v4395 = vpop.permute.xlu0 %4394
      %4396 = vrot.lane.b32.xlu0 %v4192, 8
      %v4397 = vpop.permute.xlu0 %4396
      %4398 = vrot.lane.b32.xlu0 %v4193, 8
      %v4399 = vpop.permute.xlu0 %4398
      %4400 = vrot.lane.b32.xlu0 %v4194, 8
      %v4401 = vpop.permute.xlu0 %4400
      %4402 = vrot.lane.b32.xlu0 %v4195, 8
      %v4403 = vpop.permute.xlu0 %4402
      %4404 = vrot.lane.b32.xlu0 %v4196, 8
      %v4405 = vpop.permute.xlu0 %4404
      %4406 = vrot.lane.b32.xlu0 %v4197, 8
      %v4407 = vpop.permute.xlu0 %4406
      %4408 = vrot.lane.b32.xlu0 %v4198, 8
      %v4409 = vpop.permute.xlu0 %4408
      %4410 = vrot.lane.b32.xlu0 %v4199, 8
      %v4411 = vpop.permute.xlu0 %4410
      %4412 = vrot.lane.b32.xlu0 %v4200, 8
      %v4413 = vpop.permute.xlu0 %4412
      %4414 = vrot.lane.b32.xlu0 %v4201, 8
      %v4415 = vpop.permute.xlu0 %4414
      %4416 = vrot.lane.b32.xlu0 %v4202, 8
      %v4417 = vpop.permute.xlu0 %4416
      %4418 = vrot.lane.b32.xlu0 %v4203, 8
      %v4419 = vpop.permute.xlu0 %4418
      %4420 = vrot.lane.b32.xlu0 %v4204, 8
      %v4421 = vpop.permute.xlu0 %4420
      %4422 = vrot.lane.b32.xlu0 %v4205, 8
      %v4423 = vpop.permute.xlu0 %4422
      %4424 = vrot.lane.b32.xlu0 %v4206, 8
      %v4425 = vpop.permute.xlu0 %4424
      %4426 = vrot.lane.b32.xlu0 %v4207, 8
      %v4427 = vpop.permute.xlu0 %4426
      %4428 = vrot.lane.b32.xlu0 %v4208, 8
      %v4429 = vpop.permute.xlu0 %4428
      %4430 = vrot.lane.b32.xlu0 %v4209, 8
      %v4431 = vpop.permute.xlu0 %4430
      %4432 = vrot.lane.b32.xlu0 %v4210, 8
      %v4433 = vpop.permute.xlu0 %4432
      %4434 = vrot.lane.b32.xlu0 %v4211, 8
      %v4435 = vpop.permute.xlu0 %4434
      %v4468 = vsel %vm313, %v4116, %v4245
      %v4469 = vsel %vm313, %v4117, %v4247
      %v4470 = vsel %vm313, %v4118, %v4249
      %v4471 = vsel %vm313, %v4119, %v4251
      %v4472 = vsel %vm313, %v4120, %v4253
      %v4473 = vsel %vm313, %v4121, %v4255
      %v4474 = vsel %vm313, %v4122, %v4257
      %v4475 = vsel %vm313, %v4123, %v4259
      %v4476 = vsel %vm313, %v4124, %v4261
      %v4477 = vsel %vm313, %v4125, %v4263
      %v4478 = vsel %vm313, %v4126, %v4265
      %v4479 = vsel %vm313, %v4127, %v4267
      %v4480 = vsel %vm313, %v4128, %v4269
      %v4481 = vsel %vm313, %v4129, %v4271
      %v4482 = vsel %vm313, %v4130, %v4273
      %v4483 = vsel %vm313, %v4131, %v4275
      %v4484 = vsel %vm313, %v4132, %v4277
      %v4485 = vsel %vm313, %v4133, %v4279
      %v4486 = vsel %vm313, %v4134, %v4281
      %v4487 = vsel %vm313, %v4135, %v4283
      %v4488 = vsel %vm313, %v4136, %v4285
      %v4489 = vsel %vm313, %v4137, %v4287
      %v4490 = vsel %vm313, %v4138, %v4289
      %v4491 = vsel %vm313, %v4139, %v4291
      %v4492 = vsel %vm313, %v4140, %v4293
      %v4493 = vsel %vm313, %v4141, %v4295
      %v4494 = vsel %vm313, %v4142, %v4297
      %v4495 = vsel %vm313, %v4143, %v4299
      %v4496 = vsel %vm313, %v4144, %v4301
      %v4497 = vsel %vm313, %v4145, %v4303
      %v4498 = vsel %vm313, %v4146, %v4305
      %v4499 = vsel %vm313, %v4147, %v4307
      %v4500 = vsel %vm808, %v4468, %v4373
      %v4501 = vsel %vm808, %v4469, %v4375
      %v4502 = vsel %vm808, %v4470, %v4377
      %v4503 = vsel %vm808, %v4471, %v4379
      %v4504 = vsel %vm808, %v4472, %v4381
      %v4505 = vsel %vm808, %v4473, %v4383
      %v4506 = vsel %vm808, %v4474, %v4385
      %v4507 = vsel %vm808, %v4475, %v4387
      %v4508 = vsel %vm808, %v4476, %v4389
      %v4509 = vsel %vm808, %v4477, %v4391
      %v4510 = vsel %vm808, %v4478, %v4393
      %v4511 = vsel %vm808, %v4479, %v4395
      %v4512 = vsel %vm808, %v4480, %v4397
      %v4513 = vsel %vm808, %v4481, %v4399
      %v4514 = vsel %vm808, %v4482, %v4401
      %v4515 = vsel %vm808, %v4483, %v4403
      %v4516 = vsel %vm808, %v4484, %v4405
      %v4517 = vsel %vm808, %v4485, %v4407
      %v4518 = vsel %vm808, %v4486, %v4409
      %v4519 = vsel %vm808, %v4487, %v4411
      %v4520 = vsel %vm808, %v4488, %v4413
      %v4521 = vsel %vm808, %v4489, %v4415
      %v4522 = vsel %vm808, %v4490, %v4417
      %v4523 = vsel %vm808, %v4491, %v4419
      %v4524 = vsel %vm808, %v4492, %v4421
      %v4525 = vsel %vm808, %v4493, %v4423
      %v4526 = vsel %vm808, %v4494, %v4425
      %v4527 = vsel %vm808, %v4495, %v4427
      %v4528 = vsel %vm808, %v4496, %v4429
      %v4529 = vsel %vm808, %v4497, %v4431
      %v4530 = vsel %vm808, %v4498, %v4433
      %v4531 = vsel %vm808, %v4499, %v4435
      %v4532 = vpack.c.bf16 %v4501, %v4500
      %v4533 = vpack.c.bf16 %v4503, %v4502
      %v4534 = vpack.c.bf16 %v4505, %v4504
      %v4535 = vpack.c.bf16 %v4507, %v4506
      %v4536 = vpack.c.bf16 %v4509, %v4508
      %v4537 = vpack.c.bf16 %v4511, %v4510
      %v4538 = vpack.c.bf16 %v4513, %v4512
      %v4539 = vpack.c.bf16 %v4515, %v4514
      %v4540 = vpack.c.bf16 %v4517, %v4516
      %v4541 = vpack.c.bf16 %v4519, %v4518
      %v4542 = vpack.c.bf16 %v4521, %v4520
      %v4543 = vpack.c.bf16 %v4523, %v4522
      %v4544 = vpack.c.bf16 %v4525, %v4524
      %v4545 = vpack.c.bf16 %v4527, %v4526
      %v4546 = vpack.c.bf16 %v4529, %v4528
      %v4547 = vpack.c.bf16 %v4531, %v4530
      %s4548 = scalar_lea.vmem %s4, 16
      %v4549 = vld [vmem:[%s4548] sm:$0xf]
      %v4550 = vld [vmem:[%s4548 + $0x4] sm:$0x3]
      %v4553 = vunpack.c.l.b16 %v4549
      %v4554 = vunpack.c.l.b16 %v4550
      %v4555 = vpack.c.b16 %v4554, %v4553
      %v4557 = vsel %vm1299, %v4532, 0
      %v4560 = vsel %vm1299, %v4533, 0
      %v4563 = vsel %vm1299, %v4534, 0
      %v4566 = vsel %vm1299, %v4535, 0
      %v4569 = vsel %vm1299, %v4536, 0
      %v4572 = vsel %vm1299, %v4537, 0
      %v4575 = vsel %vm1299, %v4538, 0
      %v4578 = vsel %vm1299, %v4539, 0
      %v4581 = vsel %vm1299, %v4540, 0
      %v4584 = vsel %vm1299, %v4541, 0
      %v4587 = vsel %vm1299, %v4542, 0
      %v4590 = vsel %vm1299, %v4543, 0
      %v4593 = vsel %vm1299, %v4544, 0
      %v4596 = vsel %vm1299, %v4545, 0
      %v4599 = vsel %vm1299, %v4546, 0
      %v4602 = vsel %vm1299, %v4547, 0
      %v4605 = vsel %vm1348, %v4555, 0
      %4607 = vmatprep.subr.bf16.mxu0 0
      %4608 = vmatpush1.bf16.msra.mxu0 0
      %4609 = vmatprep.subr.bf16.mxu0 0
      %4610 = vmatpush1.bf16.msra.mxu0 0
      %4611 = vmatprep.subr.bf16.mxu0 0
      %4612 = vmatpush1.bf16.msra.mxu0 0
      %4613 = vmatprep.subr.bf16.mxu0 0
      %4614 = vmatpush1.bf16.msra.mxu0 0
      %4615 = vmatprep.subr.bf16.mxu0 0
      %4616 = vmatpush1.bf16.msra.mxu0 0
      %4617 = vmatprep.subr.bf16.mxu0 0
      %4618 = vmatpush1.bf16.msra.mxu0 0
      %4619 = vmatprep.subr.bf16.mxu0 0
      %4620 = vmatpush1.bf16.msra.mxu0 0
      %4621 = vmatprep.subr.bf16.mxu0 0
      %4622 = vmatpush1.bf16.msra.mxu0 %v4605
      %4623 = vmatprep.subr.bf16.mxu0 0
      %4624 = vmatpush2.bf16.msra.mxu0 0
      %4625 = vmatprep.subr.bf16.mxu0 0
      %4626 = vmatpush2.bf16.msra.mxu0 0
      %4627 = vmatprep.subr.bf16.mxu0 0
      %4628 = vmatpush2.bf16.msra.mxu0 0
      %4629 = vmatprep.subr.bf16.mxu0 0
      %4630 = vmatpush2.bf16.msra.mxu0 0
      %4631 = vmatprep.subr.bf16.mxu0 0
      %4632 = vmatpush2.bf16.msra.mxu0 0
      %4633 = vmatprep.subr.bf16.mxu0 0
      %4634 = vmatpush2.bf16.msra.mxu0 0
      %4635 = vmatprep.subr.bf16.mxu0 0
      %4636 = vmatpush2.bf16.msra.mxu0 0
      %4637 = vmatprep.subr.bf16.mxu0 0
      %4638 = vmatpush2.bf16.msra.mxu0 0
      %4639 = vmatprep.mubr.bf16.mxu0 0
      %4640 = vmatmul.mubr.bf16.gmra.mxu0 %v4557
      %v4641 = vpop.f32.mrf.mxu0
      %v4642 = vadd.f32 0.0, %v4641
      %v4643 = vpop.f32.mrf.mxu0
      %v4644 = vpop.f32.mrf.mxu0
      %v4645 = vadd.f32 0.0, %v4644
      %v4646 = vpop.f32.mrf.mxu0
      %4647 = vmatprep.mubr.bf16.mxu0 0
      %4648 = vmatmul.mubr.bf16.gmra.mxu0 %v4560
      %v4649 = vpop.f32.mrf.mxu0
      %v4650 = vadd.f32 0.0, %v4649
      %v4651 = vpop.f32.mrf.mxu0
      %v4652 = vpop.f32.mrf.mxu0
      %v4653 = vadd.f32 0.0, %v4652
      %v4654 = vpop.f32.mrf.mxu0
      %4655 = vmatprep.mubr.bf16.mxu0 0
      %4656 = vmatmul.mubr.bf16.gmra.mxu0 %v4563
      %v4657 = vpop.f32.mrf.mxu0
      %v4658 = vadd.f32 0.0, %v4657
      %v4659 = vpop.f32.mrf.mxu0
      %v4660 = vpop.f32.mrf.mxu0
      %v4661 = vadd.f32 0.0, %v4660
      %v4662 = vpop.f32.mrf.mxu0
      %4663 = vmatprep.mubr.bf16.mxu0 0
      %4664 = vmatmul.mubr.bf16.gmra.mxu0 %v4566
      %v4665 = vpop.f32.mrf.mxu0
      %v4666 = vadd.f32 0.0, %v4665
      %v4667 = vpop.f32.mrf.mxu0
      %v4668 = vpop.f32.mrf.mxu0
      %v4669 = vadd.f32 0.0, %v4668
      %v4670 = vpop.f32.mrf.mxu0
      %4671 = vmatprep.mubr.bf16.mxu0 0
      %4672 = vmatmul.mubr.bf16.gmra.mxu0 %v4569
      %v4673 = vpop.f32.mrf.mxu0
      %v4674 = vadd.f32 0.0, %v4673
      %v4675 = vpop.f32.mrf.mxu0
      %v4676 = vpop.f32.mrf.mxu0
      %v4677 = vadd.f32 0.0, %v4676
      %v4678 = vpop.f32.mrf.mxu0
      %4679 = vmatprep.mubr.bf16.mxu0 0
      %4680 = vmatmul.mubr.bf16.gmra.mxu0 %v4572
      %v4681 = vpop.f32.mrf.mxu0
      %v4682 = vadd.f32 0.0, %v4681
      %v4683 = vpop.f32.mrf.mxu0
      %v4684 = vpop.f32.mrf.mxu0
      %v4685 = vadd.f32 0.0, %v4684
      %v4686 = vpop.f32.mrf.mxu0
      %4687 = vmatprep.mubr.bf16.mxu0 0
      %4688 = vmatmul.mubr.bf16.gmra.mxu0 %v4575
      %v4689 = vpop.f32.mrf.mxu0
      %v4690 = vadd.f32 0.0, %v4689
      %v4691 = vpop.f32.mrf.mxu0
      %v4692 = vpop.f32.mrf.mxu0
      %v4693 = vadd.f32 0.0, %v4692
      %v4694 = vpop.f32.mrf.mxu0
      %4695 = vmatprep.mubr.bf16.mxu0 0
      %4696 = vmatmul.mubr.bf16.gmra.mxu0 %v4578
      %v4697 = vpop.f32.mrf.mxu0
      %v4698 = vadd.f32 0.0, %v4697
      %v4699 = vpop.f32.mrf.mxu0
      %v4700 = vpop.f32.mrf.mxu0
      %v4701 = vadd.f32 0.0, %v4700
      %v4702 = vpop.f32.mrf.mxu0
      %4703 = vmatprep.mubr.bf16.mxu0 0
      %4704 = vmatmul.mubr.bf16.gmra.mxu0 %v4581
      %v4705 = vpop.f32.mrf.mxu0
      %v4706 = vadd.f32 0.0, %v4705
      %v4707 = vpop.f32.mrf.mxu0
      %v4708 = vpop.f32.mrf.mxu0
      %v4709 = vadd.f32 0.0, %v4708
      %v4710 = vpop.f32.mrf.mxu0
      %4711 = vmatprep.mubr.bf16.mxu0 0
      %4712 = vmatmul.mubr.bf16.gmra.mxu0 %v4584
      %v4713 = vpop.f32.mrf.mxu0
      %v4714 = vadd.f32 0.0, %v4713
      %v4715 = vpop.f32.mrf.mxu0
      %v4716 = vpop.f32.mrf.mxu0
      %v4717 = vadd.f32 0.0, %v4716
      %v4718 = vpop.f32.mrf.mxu0
      %4719 = vmatprep.mubr.bf16.mxu0 0
      %4720 = vmatmul.mubr.bf16.gmra.mxu0 %v4587
      %v4721 = vpop.f32.mrf.mxu0
      %v4722 = vadd.f32 0.0, %v4721
      %v4723 = vpop.f32.mrf.mxu0
      %v4724 = vpop.f32.mrf.mxu0
      %v4725 = vadd.f32 0.0, %v4724
      %v4726 = vpop.f32.mrf.mxu0
      %4727 = vmatprep.mubr.bf16.mxu0 0
      %4728 = vmatmul.mubr.bf16.gmra.mxu0 %v4590
      %v4729 = vpop.f32.mrf.mxu0
      %v4730 = vadd.f32 0.0, %v4729
      %v4731 = vpop.f32.mrf.mxu0
      %v4732 = vpop.f32.mrf.mxu0
      %v4733 = vadd.f32 0.0, %v4732
      %v4734 = vpop.f32.mrf.mxu0
      %4735 = vmatprep.mubr.bf16.mxu0 0
      %4736 = vmatmul.mubr.bf16.gmra.mxu0 %v4593
      %v4737 = vpop.f32.mrf.mxu0
      %v4738 = vadd.f32 0.0, %v4737
      %v4739 = vpop.f32.mrf.mxu0
      %v4740 = vpop.f32.mrf.mxu0
      %v4741 = vadd.f32 0.0, %v4740
      %v4742 = vpop.f32.mrf.mxu0
      %4743 = vmatprep.mubr.bf16.mxu0 0
      %4744 = vmatmul.mubr.bf16.gmra.mxu0 %v4596
      %v4745 = vpop.f32.mrf.mxu0
      %v4746 = vadd.f32 0.0, %v4745
      %v4747 = vpop.f32.mrf.mxu0
      %v4748 = vpop.f32.mrf.mxu0
      %v4749 = vadd.f32 0.0, %v4748
      %v4750 = vpop.f32.mrf.mxu0
      %4751 = vmatprep.mubr.bf16.mxu0 0
      %4752 = vmatmul.mubr.bf16.gmra.mxu0 %v4599
      %v4753 = vpop.f32.mrf.mxu0
      %v4754 = vadd.f32 0.0, %v4753
      %v4755 = vpop.f32.mrf.mxu0
      %v4756 = vpop.f32.mrf.mxu0
      %v4757 = vadd.f32 0.0, %v4756
      %v4758 = vpop.f32.mrf.mxu0
      %4759 = vmatprep.mubr.bf16.mxu0 0
      %4760 = vmatmul.mubr.bf16.gmra.mxu0 %v4602
      %v4761 = vpop.f32.mrf.mxu0
      %v4762 = vadd.f32 0.0, %v4761
      %v4763 = vpop.f32.mrf.mxu0
      %v4764 = vpop.f32.mrf.mxu0
      %v4765 = vadd.f32 0.0, %v4764
      %v4766 = vpop.f32.mrf.mxu0
      %4767 = vdwg.mxu0
      %v4768 = vadd.f32 %v3990, %v4642
      %v4769 = vadd.f32 %v3993, %v4645
      %v4770 = vadd.f32 %v3998, %v4650
      %v4771 = vadd.f32 %v4001, %v4653
      %v4772 = vadd.f32 %v4006, %v4658
      %v4773 = vadd.f32 %v4009, %v4661
      %v4774 = vadd.f32 %v4014, %v4666
      %v4775 = vadd.f32 %v4017, %v4669
      %v4776 = vadd.f32 %v4022, %v4674
      %v4777 = vadd.f32 %v4025, %v4677
      %v4778 = vadd.f32 %v4030, %v4682
      %v4779 = vadd.f32 %v4033, %v4685
      %v4780 = vadd.f32 %v4038, %v4690
      %v4781 = vadd.f32 %v4041, %v4693
      %v4782 = vadd.f32 %v4046, %v4698
      %v4783 = vadd.f32 %v4049, %v4701
      %v4784 = vadd.f32 %v4054, %v4706
      %v4785 = vadd.f32 %v4057, %v4709
      %v4786 = vadd.f32 %v4062, %v4714
      %v4787 = vadd.f32 %v4065, %v4717
      %v4788 = vadd.f32 %v4070, %v4722
      %v4789 = vadd.f32 %v4073, %v4725
      %v4790 = vadd.f32 %v4078, %v4730
      %v4791 = vadd.f32 %v4081, %v4733
      %v4792 = vadd.f32 %v4086, %v4738
      %v4793 = vadd.f32 %v4089, %v4741
      %v4794 = vadd.f32 %v4094, %v4746
      %v4795 = vadd.f32 %v4097, %v4749
      %v4796 = vadd.f32 %v4102, %v4754
      %v4797 = vadd.f32 %v4105, %v4757
      %v4798 = vadd.f32 %v4110, %v4762
      %v4799 = vadd.f32 %v4113, %v4765
      %v4800 = vsel %vm313, %v4768, 0.0
      %v4801 = vsel %vm313, %v4769, 0.0
      %v4802 = vadd.f32 %v4800, %v4801
      %v4803 = vsel %vm313, %v4770, 0.0
      %v4804 = vadd.f32 %v4802, %v4803
      %v4805 = vsel %vm313, %v4771, 0.0
      %v4806 = vadd.f32 %v4804, %v4805
      %v4807 = vsel %vm313, %v4772, 0.0
      %v4808 = vadd.f32 %v4806, %v4807
      %v4809 = vsel %vm313, %v4773, 0.0
      %v4810 = vadd.f32 %v4808, %v4809
      %v4811 = vsel %vm313, %v4774, 0.0
      %v4812 = vadd.f32 %v4810, %v4811
      %v4813 = vsel %vm313, %v4775, 0.0
      %v4814 = vadd.f32 %v4812, %v4813
      %v4815 = vsel %vm313, %v4776, 0.0
      %v4816 = vadd.f32 %v4814, %v4815
      %v4817 = vsel %vm313, %v4777, 0.0
      %v4818 = vadd.f32 %v4816, %v4817
      %v4819 = vsel %vm313, %v4778, 0.0
      %v4820 = vadd.f32 %v4818, %v4819
      %v4821 = vsel %vm313, %v4779, 0.0
      %v4822 = vadd.f32 %v4820, %v4821
      %v4823 = vsel %vm313, %v4780, 0.0
      %v4824 = vadd.f32 %v4822, %v4823
      %v4825 = vsel %vm313, %v4781, 0.0
      %v4826 = vadd.f32 %v4824, %v4825
      %v4827 = vsel %vm313, %v4782, 0.0
      %v4828 = vadd.f32 %v4826, %v4827
      %v4829 = vsel %vm313, %v4783, 0.0
      %v4830 = vadd.f32 %v4828, %v4829
      %v4831 = vsel %vm313, %v4784, 0.0
      %v4832 = vadd.f32 %v4830, %v4831
      %v4833 = vsel %vm313, %v4785, 0.0
      %v4834 = vadd.f32 %v4832, %v4833
      %v4835 = vsel %vm313, %v4786, 0.0
      %v4836 = vadd.f32 %v4834, %v4835
      %v4837 = vsel %vm313, %v4787, 0.0
      %v4838 = vadd.f32 %v4836, %v4837
      %v4839 = vsel %vm313, %v4788, 0.0
      %v4840 = vadd.f32 %v4838, %v4839
      %v4841 = vsel %vm313, %v4789, 0.0
      %v4842 = vadd.f32 %v4840, %v4841
      %v4843 = vsel %vm313, %v4790, 0.0
      %v4844 = vadd.f32 %v4842, %v4843
      %v4845 = vsel %vm313, %v4791, 0.0
      %v4846 = vadd.f32 %v4844, %v4845
      %v4847 = vsel %vm313, %v4792, 0.0
      %v4848 = vadd.f32 %v4846, %v4847
      %v4849 = vsel %vm313, %v4793, 0.0
      %v4850 = vadd.f32 %v4848, %v4849
      %v4851 = vsel %vm313, %v4794, 0.0
      %v4852 = vadd.f32 %v4850, %v4851
      %v4853 = vsel %vm313, %v4795, 0.0
      %v4854 = vadd.f32 %v4852, %v4853
      %v4855 = vsel %vm313, %v4796, 0.0
      %v4856 = vadd.f32 %v4854, %v4855
      %v4857 = vsel %vm313, %v4797, 0.0
      %v4858 = vadd.f32 %v4856, %v4857
      %v4859 = vsel %vm313, %v4798, 0.0
      %v4860 = vadd.f32 %v4858, %v4859
      %v4861 = vsel %vm313, %v4799, 0.0
      %v4862 = vadd.f32 %v4860, %v4861
      %v4863 = vrot.slane %v4862, 4
      %v4864 = vadd.f32 %v4862, %v4863
      %v4865 = vrot.slane %v4864, 2
      %v4866 = vadd.f32 %v4864, %v4865
      %v4867 = vrot.slane %v4866, 1
      %v4868 = vadd.f32 %v4866, %v4867
      %v4869 = vmul.f32 %v4868, %v2484
      %v4870 = vmul.f32 %v4768, %v4768
      %v4871 = vmul.f32 %v4769, %v4769
      %v4872 = vmul.f32 %v4770, %v4770
      %v4873 = vmul.f32 %v4771, %v4771
      %v4874 = vmul.f32 %v4772, %v4772
      %v4875 = vmul.f32 %v4773, %v4773
      %v4876 = vmul.f32 %v4774, %v4774
      %v4877 = vmul.f32 %v4775, %v4775
      %v4878 = vmul.f32 %v4776, %v4776
      %v4879 = vmul.f32 %v4777, %v4777
      %v4880 = vmul.f32 %v4778, %v4778
      %v4881 = vmul.f32 %v4779, %v4779
      %v4882 = vmul.f32 %v4780, %v4780
      %v4883 = vmul.f32 %v4781, %v4781
      %v4884 = vmul.f32 %v4782, %v4782
      %v4885 = vmul.f32 %v4783, %v4783
      %v4886 = vmul.f32 %v4784, %v4784
      %v4887 = vmul.f32 %v4785, %v4785
      %v4888 = vmul.f32 %v4786, %v4786
      %v4889 = vmul.f32 %v4787, %v4787
      %v4890 = vmul.f32 %v4788, %v4788
      %v4891 = vmul.f32 %v4789, %v4789
      %v4892 = vmul.f32 %v4790, %v4790
      %v4893 = vmul.f32 %v4791, %v4791
      %v4894 = vmul.f32 %v4792, %v4792
      %v4895 = vmul.f32 %v4793, %v4793
      %v4896 = vmul.f32 %v4794, %v4794
      %v4897 = vmul.f32 %v4795, %v4795
      %v4898 = vmul.f32 %v4796, %v4796
      %v4899 = vmul.f32 %v4797, %v4797
      %v4900 = vmul.f32 %v4798, %v4798
      %v4901 = vmul.f32 %v4799, %v4799
      %v4902 = vsel %vm313, %v4870, 0.0
      %v4903 = vsel %vm313, %v4871, 0.0
      %v4904 = vadd.f32 %v4902, %v4903
      %v4905 = vsel %vm313, %v4872, 0.0
      %v4906 = vadd.f32 %v4904, %v4905
      %v4907 = vsel %vm313, %v4873, 0.0
      %v4908 = vadd.f32 %v4906, %v4907
      %v4909 = vsel %vm313, %v4874, 0.0
      %v4910 = vadd.f32 %v4908, %v4909
      %v4911 = vsel %vm313, %v4875, 0.0
      %v4912 = vadd.f32 %v4910, %v4911
      %v4913 = vsel %vm313, %v4876, 0.0
      %v4914 = vadd.f32 %v4912, %v4913
      %v4915 = vsel %vm313, %v4877, 0.0
      %v4916 = vadd.f32 %v4914, %v4915
      %v4917 = vsel %vm313, %v4878, 0.0
      %v4918 = vadd.f32 %v4916, %v4917
      %v4919 = vsel %vm313, %v4879, 0.0
      %v4920 = vadd.f32 %v4918, %v4919
      %v4921 = vsel %vm313, %v4880, 0.0
      %v4922 = vadd.f32 %v4920, %v4921
      %v4923 = vsel %vm313, %v4881, 0.0
      %v4924 = vadd.f32 %v4922, %v4923
      %v4925 = vsel %vm313, %v4882, 0.0
      %v4926 = vadd.f32 %v4924, %v4925
      %v4927 = vsel %vm313, %v4883, 0.0
      %v4928 = vadd.f32 %v4926, %v4927
      %v4929 = vsel %vm313, %v4884, 0.0
      %v4930 = vadd.f32 %v4928, %v4929
      %v4931 = vsel %vm313, %v4885, 0.0
      %v4932 = vadd.f32 %v4930, %v4931
      %v4933 = vsel %vm313, %v4886, 0.0
      %v4934 = vadd.f32 %v4932, %v4933
      %v4935 = vsel %vm313, %v4887, 0.0
      %v4936 = vadd.f32 %v4934, %v4935
      %v4937 = vsel %vm313, %v4888, 0.0
      %v4938 = vadd.f32 %v4936, %v4937
      %v4939 = vsel %vm313, %v4889, 0.0
      %v4940 = vadd.f32 %v4938, %v4939
      %v4941 = vsel %vm313, %v4890, 0.0
      %v4942 = vadd.f32 %v4940, %v4941
      %v4943 = vsel %vm313, %v4891, 0.0
      %v4944 = vadd.f32 %v4942, %v4943
      %v4945 = vsel %vm313, %v4892, 0.0
      %v4946 = vadd.f32 %v4944, %v4945
      %v4947 = vsel %vm313, %v4893, 0.0
      %v4948 = vadd.f32 %v4946, %v4947
      %v4949 = vsel %vm313, %v4894, 0.0
      %v4950 = vadd.f32 %v4948, %v4949
      %v4951 = vsel %vm313, %v4895, 0.0
      %v4952 = vadd.f32 %v4950, %v4951
      %v4953 = vsel %vm313, %v4896, 0.0
      %v4954 = vadd.f32 %v4952, %v4953
      %v4955 = vsel %vm313, %v4897, 0.0
      %v4956 = vadd.f32 %v4954, %v4955
      %v4957 = vsel %vm313, %v4898, 0.0
      %v4958 = vadd.f32 %v4956, %v4957
      %v4959 = vsel %vm313, %v4899, 0.0
      %v4960 = vadd.f32 %v4958, %v4959
      %v4961 = vsel %vm313, %v4900, 0.0
      %v4962 = vadd.f32 %v4960, %v4961
      %v4963 = vsel %vm313, %v4901, 0.0
      %v4964 = vadd.f32 %v4962, %v4963
      %v4965 = vrot.slane %v4964, 4
      %v4966 = vadd.f32 %v4964, %v4965
      %v4967 = vrot.slane %v4966, 2
      %v4968 = vadd.f32 %v4966, %v4967
      %v4969 = vrot.slane %v4968, 1
      %v4970 = vadd.f32 %v4968, %v4969
      %v4971 = vmul.f32 %v4970, %v2484
      %v4972 = vmul.f32 %v4869, %v4869
      %v4973 = vsub.f32 %v4971, %v4972
      %v4974 = vld [vmem:[%s5] sm:$0x1]
      %v4975 = vadd.f32 %v4973, 1e-05
      %v4976 = vrsqrt.pop %v4975
      %v4977 = vmul.f32 %v4974, %v4976
      %v4978 = vld [vmem:[%s6] sm:$0x1]
      %v4979 = vmul.f32 %v4869, %v4977
      %v4980 = vsub.f32 %v4978, %v4979
      %v4982 = vlaneseq
      %v4983 = vshrl.u32 %v4982, 7
      %v4984 = vsub.s32 0, %v4983
      %v4985 = vrot.slane %v4977, %v4984
      %v4987 = vmul.f32 %v4768, %v4985
      %v4988 = vmul.f32 %v4769, %v4985
      %v4989 = vmul.f32 %v4770, %v4985
      %v4990 = vmul.f32 %v4771, %v4985
      %v4991 = vmul.f32 %v4772, %v4985
      %v4992 = vmul.f32 %v4773, %v4985
      %v4993 = vmul.f32 %v4774, %v4985
      %v4994 = vmul.f32 %v4775, %v4985
      %v4995 = vmul.f32 %v4776, %v4985
      %v4996 = vmul.f32 %v4777, %v4985
      %v4997 = vmul.f32 %v4778, %v4985
      %v4998 = vmul.f32 %v4779, %v4985
      %v4999 = vmul.f32 %v4780, %v4985
      %v5000 = vmul.f32 %v4781, %v4985
      %v5001 = vmul.f32 %v4782, %v4985
      %v5002 = vmul.f32 %v4783, %v4985
      %v5003 = vmul.f32 %v4784, %v4985
      %v5004 = vmul.f32 %v4785, %v4985
      %v5005 = vmul.f32 %v4786, %v4985
      %v5006 = vmul.f32 %v4787, %v4985
      %v5007 = vmul.f32 %v4788, %v4985
      %v5008 = vmul.f32 %v4789, %v4985
      %v5009 = vmul.f32 %v4790, %v4985
      %v5010 = vmul.f32 %v4791, %v4985
      %v5011 = vmul.f32 %v4792, %v4985
      %v5012 = vmul.f32 %v4793, %v4985
      %v5013 = vmul.f32 %v4794, %v4985
      %v5014 = vmul.f32 %v4795, %v4985
      %v5015 = vmul.f32 %v4796, %v4985
      %v5016 = vmul.f32 %v4797, %v4985
      %v5017 = vmul.f32 %v4798, %v4985
      %v5018 = vmul.f32 %v4799, %v4985
      %v5020 = vlaneseq
      %v5021 = vshrl.u32 %v5020, 7
      %v5022 = vsub.s32 0, %v5021
      %v5023 = vrot.slane %v4980, %v5022
      %v5025 = vadd.f32 %v4987, %v5023
      %v5026 = vadd.f32 %v4988, %v5023
      %v5027 = vadd.f32 %v4989, %v5023
      %v5028 = vadd.f32 %v4990, %v5023
      %v5029 = vadd.f32 %v4991, %v5023
      %v5030 = vadd.f32 %v4992, %v5023
      %v5031 = vadd.f32 %v4993, %v5023
      %v5032 = vadd.f32 %v4994, %v5023
      %v5033 = vadd.f32 %v4995, %v5023
      %v5034 = vadd.f32 %v4996, %v5023
      %v5035 = vadd.f32 %v4997, %v5023
      %v5036 = vadd.f32 %v4998, %v5023
      %v5037 = vadd.f32 %v4999, %v5023
      %v5038 = vadd.f32 %v5000, %v5023
      %v5039 = vadd.f32 %v5001, %v5023
      %v5040 = vadd.f32 %v5002, %v5023
      %v5041 = vadd.f32 %v5003, %v5023
      %v5042 = vadd.f32 %v5004, %v5023
      %v5043 = vadd.f32 %v5005, %v5023
      %v5044 = vadd.f32 %v5006, %v5023
      %v5045 = vadd.f32 %v5007, %v5023
      %v5046 = vadd.f32 %v5008, %v5023
      %v5047 = vadd.f32 %v5009, %v5023
      %v5048 = vadd.f32 %v5010, %v5023
      %v5049 = vadd.f32 %v5011, %v5023
      %v5050 = vadd.f32 %v5012, %v5023
      %v5051 = vadd.f32 %v5013, %v5023
      %v5052 = vadd.f32 %v5014, %v5023
      %v5053 = vadd.f32 %v5015, %v5023
      %v5054 = vadd.f32 %v5016, %v5023
      %v5055 = vadd.f32 %v5017, %v5023
      %v5056 = vadd.f32 %v5018, %v5023
      %v5057 = vadd.f32 %v5025, %v280
      %v5058 = vadd.f32 %v5026, %v281
      %v5059 = vadd.f32 %v5027, %v282
      %v5060 = vadd.f32 %v5028, %v283
      %v5061 = vadd.f32 %v5029, %v284
      %v5062 = vadd.f32 %v5030, %v285
      %v5063 = vadd.f32 %v5031, %v286
      %v5064 = vadd.f32 %v5032, %v287
      %v5065 = vadd.f32 %v5033, %v288
      %v5066 = vadd.f32 %v5034, %v289
      %v5067 = vadd.f32 %v5035, %v290
      %v5068 = vadd.f32 %v5036, %v291
      %v5069 = vadd.f32 %v5037, %v292
      %v5070 = vadd.f32 %v5038, %v293
      %v5071 = vadd.f32 %v5039, %v294
      %v5072 = vadd.f32 %v5040, %v295
      %v5073 = vadd.f32 %v5041, %v296
      %v5074 = vadd.f32 %v5042, %v297
      %v5075 = vadd.f32 %v5043, %v298
      %v5076 = vadd.f32 %v5044, %v299
      %v5077 = vadd.f32 %v5045, %v300
      %v5078 = vadd.f32 %v5046, %v301
      %v5079 = vadd.f32 %v5047, %v302
      %v5080 = vadd.f32 %v5048, %v303
      %v5081 = vadd.f32 %v5049, %v304
      %v5082 = vadd.f32 %v5050, %v305
      %v5083 = vadd.f32 %v5051, %v306
      %v5084 = vadd.f32 %v5052, %v307
      %v5085 = vadd.f32 %v5053, %v308
      %v5086 = vadd.f32 %v5054, %v309
      %v5087 = vadd.f32 %v5055, %v310
      %v5088 = vadd.f32 %v5056, %v311
      %5089 = vst.msk [vmem:[%s278] sm:$0xff] %vm313, %v5057
      %5090 = vst.msk [vmem:[%s278 + $0x8] sm:$0xff] %vm313, %v5058
      %5091 = vst.msk [vmem:[%s278 + $0x10] sm:$0xff] %vm313, %v5059
      %5092 = vst.msk [vmem:[%s278 + $0x18] sm:$0xff] %vm313, %v5060
      %5093 = vst.msk [vmem:[%s278 + $0x20] sm:$0xff] %vm313, %v5061
      %5094 = vst.msk [vmem:[%s278 + $0x28] sm:$0xff] %vm313, %v5062
      %5095 = vst.msk [vmem:[%s278 + $0x30] sm:$0xff] %vm313, %v5063
      %5096 = vst.msk [vmem:[%s278 + $0x38] sm:$0xff] %vm313, %v5064
      %5097 = vst.msk [vmem:[%s278 + $0x40] sm:$0xff] %vm313, %v5065
      %5098 = vst.msk [vmem:[%s278 + $0x48] sm:$0xff] %vm313, %v5066
      %5099 = vst.msk [vmem:[%s278 + $0x50] sm:$0xff] %vm313, %v5067
      %5100 = vst.msk [vmem:[%s278 + $0x58] sm:$0xff] %vm313, %v5068
      %5101 = vst.msk [vmem:[%s278 + $0x60] sm:$0xff] %vm313, %v5069
      %5102 = vst.msk [vmem:[%s278 + $0x68] sm:$0xff] %vm313, %v5070
      %5103 = vst.msk [vmem:[%s278 + $0x70] sm:$0xff] %vm313, %v5071
      %5104 = vst.msk [vmem:[%s278 + $0x78] sm:$0xff] %vm313, %v5072
      %5105 = vst.msk [vmem:[%s278 + $0x80] sm:$0xff] %vm313, %v5073
      %5106 = vst.msk [vmem:[%s278 + $0x88] sm:$0xff] %vm313, %v5074
      %5107 = vst.msk [vmem:[%s278 + $0x90] sm:$0xff] %vm313, %v5075
      %5108 = vst.msk [vmem:[%s278 + $0x98] sm:$0xff] %vm313, %v5076
      %5109 = vst.msk [vmem:[%s278 + $0xa0] sm:$0xff] %vm313, %v5077
      %5110 = vst.msk [vmem:[%s278 + $0xa8] sm:$0xff] %vm313, %v5078
      %5111 = vst.msk [vmem:[%s278 + $0xb0] sm:$0xff] %vm313, %v5079
      %5112 = vst.msk [vmem:[%s278 + $0xb8] sm:$0xff] %vm313, %v5080
      %5113 = vst.msk [vmem:[%s278 + $0xc0] sm:$0xff] %vm313, %v5081
      %5114 = vst.msk [vmem:[%s278 + $0xc8] sm:$0xff] %vm313, %v5082
      %5115 = vst.msk [vmem:[%s278 + $0xd0] sm:$0xff] %vm313, %v5083
      %5116 = vst.msk [vmem:[%s278 + $0xd8] sm:$0xff] %vm313, %v5084
      %5117 = vst.msk [vmem:[%s278 + $0xe0] sm:$0xff] %vm313, %v5085
      %5118 = vst.msk [vmem:[%s278 + $0xe8] sm:$0xff] %vm313, %v5086
      %5119 = vst.msk [vmem:[%s278 + $0xf0] sm:$0xff] %vm313, %v5087
      %5120 = vst.msk [vmem:[%s278 + $0xf8] sm:$0xff] %vm313, %v5088
      %p5121 = scmp.lt.s32.totalorder %s18, 1
      %s5122 = scalar_select %p5121, %s18, 1
      %s5123 = smul.addr %s5122, 32
      %s5124 = smul.addr %s5123, 8
      %s5125 = scalar_lea.vmem %s7, %s5124
      // Predicated region
      $region49: #{tpu_custom_call.1} parent=47 // pred_check
        %p5126 = pneg %p188
      $region50: #{tpu_custom_call.1} parent=47 // pred_check_branch
        %5128 = sbr.rel (%p5126) target = $region52
      $region51: #{tpu_custom_call.1} parent=47 // pred_region
        _
      $region52: #{tpu_custom_call.1} parent=47 // pred_fallthru
        _
    $region48: #{tpu_custom_call.1} parent=5 // pred_fallthru
      _
    %p5129 = scmp.le.s32.totalorder 2, %s13
    // Predicated region
    $region53: #{tpu_custom_call.1} parent=5 // pred_check
      %p5130 = pneg %p5129
    $region54: #{tpu_custom_call.1} parent=5 // pred_check_branch
      %5132 = sbr.rel (%p5130) target = $region56
    $region55: #{tpu_custom_call.1} parent=5 // pred_region
      %s5133 = ssub.s32 %s13, 2
      // Predicated region
      $region57: #{tpu_custom_call.1} parent=55 // pred_check
        %p5134 = pneg %p194
      $region58: #{tpu_custom_call.1} parent=55 // pred_check_branch
        %5136 = sbr.rel (%p5134) target = $region60
      $region59: #{tpu_custom_call.1} parent=55 // pred_region
        %p5137 = scmp.lt.s32.totalorder %s19, 1
        %s5138 = scalar_select %p5137, %s19, 1
        %s5139 = smul.addr %s5138, 32
        %s5140 = smul.addr %s5139, 8
        %s5141 = scalar_lea.vmem %s7, %s5140
      $region60: #{tpu_custom_call.1} parent=55 // pred_fallthru
        _
    $region56: #{tpu_custom_call.1} parent=5 // pred_fallthru
      _
  $region6: #{tpu_custom_call.1} parent=0 // loop_footer
    %s17 = sadd.s32 1, %s13
  $region7: #{tpu_custom_call.1} parent=0 // loop_footer_branch
    %12 = sbr.rel target = $region3
  $region8: #{tpu_custom_call.1} parent=0 // loop_exit
    _

</llo_original>
